<compile_context>
chip_gen: v7x
topology: tpu7x:2x2x1
jax: 0.10.0
libtpu: 0.0.40
codegen_flags: <defaults>
</compile_context>

<pallas_src>
import functools
import math

import jax
import jax.numpy as jnp
from jax.experimental import pallas as pl
from jax.experimental.pallas import tpu as pltpu


# ----------------------------------------------------------------------------
# Hardware-aware knobs
# ----------------------------------------------------------------------------

@functools.lru_cache(maxsize=None)
def _vmem_limit():
    """64 MiB on 128-MiB-VMEM chips (v5e/v6e), ~48 MiB on v7x (64 MiB)."""
    try:
        cap = int(pltpu.get_tpu_info().vmem_capacity_bytes)
    except Exception:
        cap = 128 * 1024 * 1024
    return int(min(64 * 1024 * 1024, (cap * 3) // 4))


def _cparams(dimension_semantics):
    """Grid-rank-aware compiler params (pass the semantics tuple explicitly)."""
    return pltpu.CompilerParams(
        dimension_semantics=tuple(dimension_semantics),
        vmem_limit_bytes=_vmem_limit())


@functools.lru_cache(maxsize=None)
def _single_buffer_ok():
    """Probe whether pipeline_mode=pl.Buffered(1) is supported on this jax."""
    try:
        def k(x_ref, w_ref, o_ref):
            o_ref[...] = x_ref[...] + w_ref[...]

        f = pl.pallas_call(
            k,
            out_shape=jax.ShapeDtypeStruct((16, 128), jnp.float32),
            grid=(2,),
            in_specs=[
                pl.BlockSpec((8, 128), lambda i: (i, 0)),
                pl.BlockSpec((8, 128), lambda i: (0, 0),
                             pipeline_mode=pl.Buffered(1)),
            ],
            out_specs=pl.BlockSpec((8, 128), lambda i: (i, 0)),
        )
        jax.block_until_ready(f(jnp.zeros((16, 128), jnp.float32),
                                jnp.ones((8, 128), jnp.float32)))
        return True
    except Exception:
        return False


def _wspec(shape, index_map):
    """BlockSpec for a grid-constant operand: single-buffer it when possible
    (the default double buffer of a never-changing block is dead VMEM)."""
    if _single_buffer_ok():
        return pl.BlockSpec(shape, index_map, pipeline_mode=pl.Buffered(1))
    return pl.BlockSpec(shape, index_map)


def _row_tile(M, cap=512):
    """Largest row tile (multiple of 8, divisor of M, <= cap); prefers >= 2
    grid steps so v7x can shard rows across its two TensorCores."""
    if M % 8 != 0:
        return M
    divs = [t for t in range(8, min(M, cap) + 1, 8) if M % t == 0]
    if not divs:
        return M
    multi = [t for t in divs if M // t >= 2]
    return max(multi) if multi else max(divs)


# ----------------------------------------------------------------------------
# In-kernel math helpers
# ----------------------------------------------------------------------------

_SQRT_2_OVER_PI = math.sqrt(2.0 / math.pi)


def _gelu(y):
    # tanh approximation (routes through the EUP slot); ~1e-3 from exact erf.
    return 0.5 * y * (1.0 + jnp.tanh(_SQRT_2_OVER_PI
                                     * (y + 0.044715 * y * y * y)))


def _ln(x, g_ref, b_ref, eps):
    mean = jnp.mean(x, axis=-1, keepdims=True)
    var = jnp.mean(jnp.square(x - mean), axis=-1, keepdims=True)
    y = (x - mean) * jax.lax.rsqrt(var + eps)
    return y * g_ref[...].astype(jnp.float32) + b_ref[...].astype(jnp.float32)


# ----------------------------------------------------------------------------
# Pallas kernels
# ----------------------------------------------------------------------------

def _text_embed_kernel(wt_ref, pos_ref, g_ref, b_ref, o_ref, *, eps):
    x = wt_ref[0].astype(jnp.float32) + pos_ref[...].astype(jnp.float32)
    o_ref[0] = _ln(x, g_ref, b_ref, eps).astype(o_ref.dtype)


def text_embed_ln(wt, pos, g, b, eps=1e-12):
    """Fused (word+type emb) + positional emb + LayerNorm (one HBM pass)."""
    B, T, H = wt.shape
    kern = functools.partial(_text_embed_kernel, eps=eps)
    return pl.pallas_call(
        kern,
        out_shape=jax.ShapeDtypeStruct((B, T, H), jnp.float32),
        grid=(B,),
        in_specs=[
            pl.BlockSpec((1, T, H), lambda i: (i, 0, 0)),
            _wspec((T, H), lambda i: (0, 0)),
            _wspec((1, H), lambda i: (0, 0)),
            _wspec((1, H), lambda i: (0, 0)),
        ],
        out_specs=pl.BlockSpec((1, T, H), lambda i: (i, 0, 0)),
        compiler_params=_cparams(("parallel",)),
    )(wt, pos, g.reshape(1, H), b.reshape(1, H))


def _matmul_bias_kernel(x_ref, w_ref, b_ref, o_ref):
    x = x_ref[...].astype(w_ref.dtype)                       # bf16 MXU operands
    y = jnp.dot(x, w_ref[...], preferred_element_type=jnp.float32)
    o_ref[...] = (y + b_ref[...].astype(jnp.float32)).astype(o_ref.dtype)


def matmul_bias(x, w, b, out_dtype=jnp.float32):
    """o = x @ w + b; rows tiled over a parallel grid axis (patch projection)."""
    M, K = x.shape
    K2, N = w.shape
    assert K == K2
    tm = _row_tile(M)
    return pl.pallas_call(
        _matmul_bias_kernel,
        out_shape=jax.ShapeDtypeStruct((M, N), out_dtype),
        grid=(M // tm,),
        in_specs=[
            pl.BlockSpec((tm, K), lambda i: (i, 0)),
            _wspec((K, N), lambda i: (0, 0)),
            _wspec((1, N), lambda i: (0, 0)),
        ],
        out_specs=pl.BlockSpec((tm, N), lambda i: (i, 0)),
        compiler_params=_cparams(("parallel",)),
    )(x, w, b.reshape(1, N))


def _encoder_layer_kernel(x_ref, m_ref,
                          ln1g_ref, ln1b_ref, wqkv_ref, bqkv_ref,
                          wo_ref, bo_ref,
                          ln2g_ref, ln2b_ref, wi_ref, bi_ref,
                          wo2_ref, bo2_ref,
                          o_ref, *, NH, eps):
    H = x_ref.shape[-1]
    Dh = H // NH
    x = x_ref[0].astype(jnp.float32)                 # (S, H) residual, f32
    bias = m_ref[0].astype(jnp.float32)              # (1, S) additive key mask

    # ---- LN1 + fused QKV projection (bf16 MXU operands, f32 accumulate);
    #      the 1/sqrt(Dh) scale is pre-folded into the q columns of wqkv. ----
    h1 = _ln(x, ln1g_ref, ln1b_ref, eps)
    qkv = jnp.dot(h1.astype(wqkv_ref.dtype), wqkv_ref[...],
                  preferred_element_type=jnp.float32)
    qkv = (qkv + bqkv_ref[...].astype(jnp.float32)).astype(jnp.bfloat16)

    # ---- multi-head self-attention; qkv / scores / context stay in VMEM ----
    heads = []
    for hh in range(NH):
        qh = qkv[:, hh * Dh:(hh + 1) * Dh]
        kh = qkv[:, H + hh * Dh:H + (hh + 1) * Dh]
        vh = qkv[:, 2 * H + hh * Dh:2 * H + (hh + 1) * Dh]
        s = jax.lax.dot_general(qh, kh, (((1,), (1,)), ((), ())),
                                preferred_element_type=jnp.float32)
        s = s + bias                                  # (S, S) + (1, S)
        s = s - jnp.max(s, axis=-1, keepdims=True)
        p = jnp.exp(s)
        p = p * pl.reciprocal(jnp.sum(p, axis=-1, keepdims=True), approx=True)
        heads.append(jnp.dot(p.astype(vh.dtype), vh,
                             preferred_element_type=jnp.float32))
    ctx = jnp.concatenate(heads, axis=-1)             # (S, H), lane-dense
    attn = jnp.dot(ctx.astype(wo_ref.dtype), wo_ref[...],
                   preferred_element_type=jnp.float32)
    x = x + attn + bo_ref[...].astype(jnp.float32)    # residual 1

    # ---- LN2 + MLP (gelu) + residual; (S, INTER) never leaves VMEM ----
    h2 = _ln(x, ln2g_ref, ln2b_ref, eps)
    hi = jnp.dot(h2.astype(wi_ref.dtype), wi_ref[...],
                 preferred_element_type=jnp.float32)
    hi = _gelu(hi + bi_ref[...].astype(jnp.float32))
    y = jnp.dot(hi.astype(wo2_ref.dtype), wo2_ref[...],
                preferred_element_type=jnp.float32)
    o_ref[0] = (x + y + bo2_ref[...].astype(jnp.float32)).astype(o_ref.dtype)


def encoder_layer(lp, x, additive_mask, NH):
    """Whole transformer layer in one pallas_call; grid=(B,) (>=2 parallel
    steps at B>=2 for v7x megacore sharding; weights resident per step)."""
    B, S, H = x.shape
    I = lp["wi"].shape[1]
    kern = functools.partial(_encoder_layer_kernel, NH=NH, eps=1e-12)
    return pl.pallas_call(
        kern,
        out_shape=jax.ShapeDtypeStruct((B, S, H), x.dtype),
        grid=(B,),
        in_specs=[
            pl.BlockSpec((1, S, H), lambda i: (i, 0, 0)),
            pl.BlockSpec((1, 1, S), lambda i: (i, 0, 0)),
            _wspec((1, H), lambda i: (0, 0)),
            _wspec((1, H), lambda i: (0, 0)),
            _wspec((H, 3 * H), lambda i: (0, 0)),
            _wspec((1, 3 * H), lambda i: (0, 0)),
            _wspec((H, H), lambda i: (0, 0)),
            _wspec((1, H), lambda i: (0, 0)),
            _wspec((1, H), lambda i: (0, 0)),
            _wspec((1, H), lambda i: (0, 0)),
            _wspec((H, I), lambda i: (0, 0)),
            _wspec((1, I), lambda i: (0, 0)),
            _wspec((I, H), lambda i: (0, 0)),
            _wspec((1, H), lambda i: (0, 0)),
        ],
        out_specs=pl.BlockSpec((1, S, H), lambda i: (i, 0, 0)),
        compiler_params=_cparams(("parallel",)),
    )(x, additive_mask,
      lp["ln1_g"].reshape(1, H), lp["ln1_b"].reshape(1, H),
      lp["wqkv"], lp["bqkv"].reshape(1, 3 * H),
      lp["wo"], lp["bo"].reshape(1, H),
      lp["ln2_g"].reshape(1, H), lp["ln2_b"].reshape(1, H),
      lp["wi"], lp["bi"].reshape(1, I),
      lp["wo2"], lp["bo2"].reshape(1, H))


def _final_ln_pool_kernel(x_ref, g_ref, b_ref, pw_ref, pb_ref,
                          lh_ref, pool_ref, *, eps):
    x = x_ref[0].astype(jnp.float32)                  # (S, H)
    y = _ln(x, g_ref, b_ref, eps)
    lh_ref[0] = y.astype(lh_ref.dtype)
    cls = y[0:1, :]                                   # CLS row
    pooled = jnp.tanh(
        jnp.dot(cls.astype(pw_ref.dtype), pw_ref[...],
                preferred_element_type=jnp.float32)
        + pb_ref[...].astype(jnp.float32))
    pool_ref[0] = pooled.astype(pool_ref.dtype)


def final_ln_pool(x, g, b, pw, pb, eps=1e-12):
    """Fused final LayerNorm + pooler (tanh(CLS @ pw + pb))."""
    B, S, H = x.shape
    kern = functools.partial(_final_ln_pool_kernel, eps=eps)
    last_hidden, pooled = pl.pallas_call(
        kern,
        out_shape=(jax.ShapeDtypeStruct((B, S, H), jnp.float32),
                   jax.ShapeDtypeStruct((B, 1, H), jnp.float32)),
        grid=(B,),
        in_specs=[
            pl.BlockSpec((1, S, H), lambda i: (i, 0, 0)),
            _wspec((1, H), lambda i: (0, 0)),
            _wspec((1, H), lambda i: (0, 0)),
            _wspec((H, H), lambda i: (0, 0)),
            _wspec((1, H), lambda i: (0, 0)),
        ],
        out_specs=(pl.BlockSpec((1, S, H), lambda i: (i, 0, 0)),
                   pl.BlockSpec((1, 1, H), lambda i: (i, 0, 0))),
        compiler_params=_cparams(("parallel",)),
    )(x, g.reshape(1, H), b.reshape(1, H), pw, pb.reshape(1, H))
    return last_hidden, pooled[:, 0, :]


# ----------------------------------------------------------------------------
# Synthetic ViLT model (glue in JAX, math in Pallas)
# ----------------------------------------------------------------------------

def init_params(key, *, vocab, max_text_pos, n_img_tokens, H, NH, L, INTER,
                C, PATCH):
    keys = iter(jax.random.split(key, 8 + 6 * L))
    Dh = H // NH
    q_scale = 1.0 / math.sqrt(Dh)        # attention scale folded into wq / bq

    def randf(k, shape):
        return jax.random.normal(k, shape, jnp.float32) * 0.02

    p = {
        "word_emb": randf(next(keys), (vocab, H)),
        "text_pos_emb": randf(next(keys), (max_text_pos, H)),
        "type_emb": randf(next(keys), (2, H)),
        "text_ln_g": jnp.ones((H,), jnp.float32),
        "text_ln_b": jnp.zeros((H,), jnp.float32),
        "patch_w": randf(next(keys), (C * PATCH * PATCH, H)).astype(jnp.bfloat16),
        "patch_b": jnp.zeros((H,), jnp.float32),
        "cls_token": randf(next(keys), (1, 1, H)),
        "img_pos_emb": randf(next(keys), (n_img_tokens, H)),
        "final_ln_g": jnp.ones((H,), jnp.float32),
        "final_ln_b": jnp.zeros((H,), jnp.float32),
        "pool_w": randf(next(keys), (H, H)).astype(jnp.bfloat16),
        "pool_b": jnp.zeros((H,), jnp.float32),
        "layers": [],
    }
    for _ in range(L):
        wq = randf(next(keys), (H, H)) * q_scale      # scale folded in here
        wk = randf(next(keys), (H, H))
        wv = randf(next(keys), (H, H))
        lyr = {
            "ln1_g": jnp.ones((H,), jnp.float32),
            "ln1_b": jnp.zeros((H,), jnp.float32),
            "wqkv": jnp.concatenate([wq, wk, wv], axis=1).astype(jnp.bfloat16),
            "bqkv": jnp.zeros((3 * H,), jnp.float32),  # q-part would be scaled too
            "wo": randf(next(keys), (H, H)).astype(jnp.bfloat16),
            "bo": jnp.zeros((H,), jnp.float32),
            "ln2_g": jnp.ones((H,), jnp.float32),
            "ln2_b": jnp.zeros((H,), jnp.float32),
            "wi": randf(next(keys), (H, INTER)).astype(jnp.bfloat16),
            "bi": jnp.zeros((INTER,), jnp.float32),
            "wo2": randf(next(keys), (INTER, H)).astype(jnp.bfloat16),
            "bo2": jnp.zeros((H,), jnp.float32),
        }
        p["layers"].append(lyr)
    return p


def text_embeddings(params, input_ids, token_type_ids):
    _, T = input_ids.shape
    # embedding gathers stay in JAX glue (tiny tables); the positional add and
    # the LayerNorm are fused into one Pallas kernel (no standalone LN call).
    wt = params["word_emb"][input_ids] + params["type_emb"][token_type_ids]
    return text_embed_ln(wt, params["text_pos_emb"][:T],
                         params["text_ln_g"], params["text_ln_b"])


def image_embeddings(params, pixel_values, pixel_mask, patch):
    B, C, Hi, Wi = pixel_values.shape
    Hn, Wn = Hi // patch, Wi // patch
    nP = Hn * Wn
    # im2col matching NCHW conv weight flattening order [C, ph, pw]
    x = pixel_values.reshape(B, C, Hn, patch, Wn, patch)
    x = jnp.transpose(x, (0, 2, 4, 1, 3, 5)).reshape(B * nP, C * patch * patch)
    # patch projection (the conv) -> Pallas matmul, bf16 MXU operands
    pe = matmul_bias(x, params["patch_w"], params["patch_b"],
                     out_dtype=jnp.float32)
    H = pe.shape[-1]
    pe = pe.reshape(B, nP, H)
    cls = jnp.broadcast_to(params["cls_token"], (B, 1, H))
    img = jnp.concatenate([cls, pe], axis=1)                    # (B, nP+1, H)
    img = img + params["img_pos_emb"][None]
    img = img + params["type_emb"][1][None, None]               # modality 1
    # per-patch validity from pixel_mask (max over patch), cls always valid
    pm = pixel_mask.reshape(B, Hn, patch, Wn, patch).max(axis=(2, 4))
    img_mask = jnp.concatenate(
        [jnp.ones((B, 1), jnp.float32), pm.reshape(B, nP)], axis=1)
    return img, img_mask


def vilt_forward(params, input_ids, token_type_ids, attention_mask,
                 pixel_values, pixel_mask, *, patch, NH):
    txt = text_embeddings(params, input_ids, token_type_ids)       # (B,T,H)
    img, img_mask = image_embeddings(params, pixel_values, pixel_mask, patch)
    x = jnp.concatenate([txt, img], axis=1)                        # (B,S,H) f32
    mask = jnp.concatenate([attention_mask.astype(jnp.float32), img_mask],
                           axis=1)                                 # (B,S)
    B, S, H = x.shape
    # pad sequence to a multiple of 8 (sublane rule); padded positions are
    # masked out as attention keys and sliced off after the final LayerNorm.
    S_pad = ((S + 7) // 8) * 8
    if S_pad != S:
        x = jnp.pad(x, ((0, 0), (0, S_pad - S), (0, 0)))
        mask = jnp.pad(mask, ((0, 0), (0, S_pad - S)))
    additive_mask = ((1.0 - mask) * -1e9)[:, None, :]              # (B,1,Sp)

    # Residual stream stays f32 between layers (matches the fp32 torch module);
    # MXU operands are cast to bf16 inside the fused per-layer kernel.
    for lp in params["layers"]:
        x = encoder_layer(lp, x, additive_mask, NH)

    last_hidden_full, pooled = final_ln_pool(
        x, params["final_ln_g"], params["final_ln_b"],
        params["pool_w"], params["pool_b"])
    last_hidden = last_hidden_full[:, :S, :]          # drop padded rows
    # TODO(synk): tokenizer / PIL image loading / ViltFeatureExtractor (and the
    # optional MLM token masking) have no Pallas equivalent; inputs are assumed
    # pre-tokenized / pre-extracted and weights are synthetic (no checkpoint).
    return pooled, last_hidden


# ----------------------------------------------------------------------------
# main
# ----------------------------------------------------------------------------

if __name__ == "__main__":
    B, T = 2, 8                      # batch, text sequence length
    C, IMG, PATCH = 3, 16, 8         # NCHW image, patch size
    H, NH, L, INTER = 32, 4, 2, 128  # hidden, heads, layers, MLP width
    VOCAB = 64
    N_IMG_TOKENS = (IMG // PATCH) * (IMG // PATCH) + 1   # patches + cls

    # resolve hardware-dependent knobs once, outside any jit trace
    _vmem_limit()
    _single_buffer_ok()

    key = jax.random.PRNGKey(0)
    kp, kid, kpix = jax.random.split(key, 3)

    params = init_params(kp, vocab=VOCAB, max_text_pos=40,
                         n_img_tokens=N_IMG_TOKENS, H=H, NH=NH, L=L,
                         INTER=INTER, C=C, PATCH=PATCH)

    input_ids = jax.random.randint(kid, (B, T), 0, VOCAB, dtype=jnp.int32)
    token_type_ids = jnp.zeros((B, T), jnp.int32)
    attention_mask = jnp.ones((B, T), jnp.float32)
    pixel_values = jax.random.normal(kpix, (B, C, IMG, IMG), jnp.float32)
    pixel_mask = jnp.ones((B, IMG, IMG), jnp.float32)

    fwd = jax.jit(functools.partial(vilt_forward, patch=PATCH, NH=NH))
    pooled, last_hidden = fwd(params, input_ids, token_type_ids,
                              attention_mask, pixel_values, pixel_mask)
    jax.block_until_ready((pooled, last_hidden))

    assert pooled.shape == (B, H) and pooled.dtype == jnp.float32
    assert last_hidden.shape == (B, T + N_IMG_TOKENS, H)
    assert bool(jnp.isfinite(pooled).all())
    assert bool(jnp.isfinite(last_hidden).all())
    print("KERNEL_OK")
</pallas_src>

<mosaic_0001>
module attributes {stable_mosaic.version = 11 : i64} {
  func.func @k(%arg0: i32, %arg1: memref<8x128xf32, #tpu.memory_space<vmem>>, %arg2: memref<8x128xf32, #tpu.memory_space<vmem>>, %arg3: memref<8x128xf32, #tpu.memory_space<vmem>>) attributes {dimension_semantics = [#tpu.dimension_semantics<arbitrary>], iteration_bounds = array<i64: 2>, scalar_prefetch = 0 : i64, scratch_operands = 0 : i64, tpu.core_type = #tpu.core_type<tc>, window_params = [{transform_indices = @transform_0, window_bounds = array<i64: 8, 128>}, {pipeline_mode = #tpu.pipeline_mode<synchronous>, transform_indices = @transform_1, window_bounds = array<i64: 8, 128>}, {transform_indices = @transform_2, window_bounds = array<i64: 8, 128>}]} {
    %c0 = arith.constant 0 : index
    %c0_0 = arith.constant 0 : index
    %0 = vector.load %arg1[%c0, %c0_0] : memref<8x128xf32, #tpu.memory_space<vmem>>, vector<8x128xf32>
    %c0_1 = arith.constant 0 : index
    %c0_2 = arith.constant 0 : index
    %1 = vector.load %arg2[%c0_1, %c0_2] : memref<8x128xf32, #tpu.memory_space<vmem>>, vector<8x128xf32>
    %2 = arith.addf %0, %1 : vector<8x128xf32>
    %c0_3 = arith.constant 0 : index
    %c0_4 = arith.constant 0 : index
    %3 = vector.load %arg3[%c0_3, %c0_4] : memref<8x128xf32, #tpu.memory_space<vmem>>, vector<8x128xf32>
    tpu.vector_store %arg3[%c0_3, %c0_4], %2 {strides = array<i32>} : memref<8x128xf32, #tpu.memory_space<vmem>>, vector<8x128xf32>,
    return
  }
  func.func @transform_0(%arg0: i32) -> (i32, i32) {
    %c0_i32 = arith.constant 0 : i32
    %c0_i32_0 = arith.constant 0 : i32
    return %arg0, %c0_i32 : i32, i32
  }
  func.func @transform_1(%arg0: i32) -> (i32, i32) {
    %c0_i32 = arith.constant 0 : i32
    %c0_i32_0 = arith.constant 0 : i32
    %c0_i32_1 = arith.constant 0 : i32
    return %c0_i32, %c0_i32_0 : i32, i32
  }
  func.func @transform_2(%arg0: i32) -> (i32, i32) {
    %c0_i32 = arith.constant 0 : i32
    %c0_i32_0 = arith.constant 0 : i32
    return %arg0, %c0_i32 : i32, i32
  }
}

module attributes {stable_mosaic.version = 11 : i64} {
  func.func @_matmul_bias_kernel(%arg0: i32, %arg1: memref<8x192xf32, #tpu.memory_space<vmem>>, %arg2: memref<192x32xbf16, #tpu.memory_space<vmem>>, %arg3: memref<1x32xf32, #tpu.memory_space<vmem>>, %arg4: memref<8x32xf32, #tpu.memory_space<vmem>>) attributes {dimension_semantics = [#tpu.dimension_semantics<parallel>], iteration_bounds = array<i64: 1>, scalar_prefetch = 0 : i64, scratch_operands = 0 : i64, tpu.core_type = #tpu.core_type<tc>, window_params = [{transform_indices = @transform_0, window_bounds = array<i64: 8, 192>}, {pipeline_mode = #tpu.pipeline_mode<synchronous>, transform_indices = @transform_1, window_bounds = array<i64: 192, 32>}, {pipeline_mode = #tpu.pipeline_mode<synchronous>, transform_indices = @transform_2, window_bounds = array<i64: 1, 32>}, {transform_indices = @transform_3, window_bounds = array<i64: 8, 32>}]} {
    %c0 = arith.constant 0 : index
    %c0_0 = arith.constant 0 : index
    %0 = vector.load %arg1[%c0, %c0_0] : memref<8x192xf32, #tpu.memory_space<vmem>>, vector<8x192xf32>
    %1 = arith.truncf %0 : vector<8x192xf32> to vector<8x192xbf16>
    %c0_1 = arith.constant 0 : index
    %c0_2 = arith.constant 0 : index
    %2 = vector.load %arg2[%c0_1, %c0_2] : memref<192x32xbf16, #tpu.memory_space<vmem>>, vector<192x32xbf16>
    %cst = arith.constant dense<0.000000e+00> : vector<8x32xf32>
    %3 = tpu.matmul %1, %2, %cst {dimension_numbers = #tpu.dot_dimension_numbers<[1], [0], [0], [1], [0, 0, 1, 1], [], []>} : vector<8x192xbf16>, vector<192x32xbf16>, vector<8x32xf32> -> vector<8x32xf32>
    %c0_3 = arith.constant 0 : index
    %c0_4 = arith.constant 0 : index
    %4 = vector.load %arg3[%c0_3, %c0_4] : memref<1x32xf32, #tpu.memory_space<vmem>>, vector<1x32xf32>
    %5 = vector.broadcast %4 : vector<1x32xf32> to vector<8x32xf32>
    %6 = arith.addf %3, %5 : vector<8x32xf32>
    %c0_5 = arith.constant 0 : index
    %c0_6 = arith.constant 0 : index
    %7 = vector.load %arg4[%c0_5, %c0_6] : memref<8x32xf32, #tpu.memory_space<vmem>>, vector<8x32xf32>
    tpu.vector_store %arg4[%c0_5, %c0_6], %6 {strides = array<i32>} : memref<8x32xf32, #tpu.memory_space<vmem>>, vector<8x32xf32>,
    return
  }
  func.func @transform_0(%arg0: i32) -> (i32, i32) {
    %c0_i32 = arith.constant 0 : i32
    %c0_i32_0 = arith.constant 0 : i32
    return %arg0, %c0_i32 : i32, i32
  }
  func.func @transform_1(%arg0: i32) -> (i32, i32) {
    %c0_i32 = arith.constant 0 : i32
    %c0_i32_0 = arith.constant 0 : i32
    %c0_i32_1 = arith.constant 0 : i32
    return %c0_i32, %c0_i32_0 : i32, i32
  }
  func.func @transform_2(%arg0: i32) -> (i32, i32) {
    %c0_i32 = arith.constant 0 : i32
    %c0_i32_0 = arith.constant 0 : i32
    %c0_i32_1 = arith.constant 0 : i32
    return %c0_i32, %c0_i32_0 : i32, i32
  }
  func.func @transform_3(%arg0: i32) -> (i32, i32) {
    %c0_i32 = arith.constant 0 : i32
    %c0_i32_0 = arith.constant 0 : i32
    return %arg0, %c0_i32 : i32, i32
  }
}

module attributes {stable_mosaic.version = 11 : i64} {
  func.func @_text_embed_kernel(%arg0: i32, %arg1: memref<1x8x32xf32, #tpu.memory_space<vmem>>, %arg2: memref<8x32xf32, #tpu.memory_space<vmem>>, %arg3: memref<1x32xf32, #tpu.memory_space<vmem>>, %arg4: memref<1x32xf32, #tpu.memory_space<vmem>>, %arg5: memref<1x8x32xf32, #tpu.memory_space<vmem>>) attributes {dimension_semantics = [#tpu.dimension_semantics<parallel>], iteration_bounds = array<i64: 2>, scalar_prefetch = 0 : i64, scratch_operands = 0 : i64, tpu.core_type = #tpu.core_type<tc>, window_params = [{transform_indices = @transform_0, window_bounds = array<i64: 1, 8, 32>}, {pipeline_mode = #tpu.pipeline_mode<synchronous>, transform_indices = @transform_1, window_bounds = array<i64: 8, 32>}, {pipeline_mode = #tpu.pipeline_mode<synchronous>, transform_indices = @transform_2, window_bounds = array<i64: 1, 32>}, {pipeline_mode = #tpu.pipeline_mode<synchronous>, transform_indices = @transform_3, window_bounds = array<i64: 1, 32>}, {transform_indices = @transform_4, window_bounds = array<i64: 1, 8, 32>}]} {
    %c0 = arith.constant 0 : index
    %c0_0 = arith.constant 0 : index
    %c0_1 = arith.constant 0 : index
    %0 = vector.load %arg1[%c0, %c0_0, %c0_1] : memref<1x8x32xf32, #tpu.memory_space<vmem>>, vector<1x8x32xf32>
    %1 = vector.shape_cast %0 : vector<1x8x32xf32> to vector<8x32xf32>
    %c0_2 = arith.constant 0 : index
    %c0_3 = arith.constant 0 : index
    %2 = vector.load %arg2[%c0_2, %c0_3] : memref<8x32xf32, #tpu.memory_space<vmem>>, vector<8x32xf32>
    %3 = arith.addf %1, %2 : vector<8x32xf32>
    %cst = arith.constant dense<0.000000e+00> : vector<8xf32>
    %4 = vector.multi_reduction <add>, %3, %cst [1] : vector<8x32xf32> to vector<8xf32>
    %5 = vector.shape_cast %4 : vector<8xf32> to vector<8x1xf32>
    %cst_4 = arith.constant 3.200000e+01 : f32
    %6 = vector.broadcast %cst_4 : f32 to vector<8x1xf32>
    %7 = arith.divf %5, %6 : vector<8x1xf32>
    %8 = vector.broadcast %7 : vector<8x1xf32> to vector<8x32xf32>
    %9 = arith.subf %3, %8 : vector<8x32xf32>
    %10 = arith.mulf %9, %9 : vector<8x32xf32>
    %cst_5 = arith.constant dense<0.000000e+00> : vector<8xf32>
    %11 = vector.multi_reduction <add>, %10, %cst_5 [1] : vector<8x32xf32> to vector<8xf32>
    %12 = vector.shape_cast %11 : vector<8xf32> to vector<8x1xf32>
    %cst_6 = arith.constant 3.200000e+01 : f32
    %13 = vector.broadcast %cst_6 : f32 to vector<8x1xf32>
    %14 = arith.divf %12, %13 : vector<8x1xf32>
    %15 = vector.broadcast %7 : vector<8x1xf32> to vector<8x32xf32>
    %16 = arith.subf %3, %15 : vector<8x32xf32>
    %cst_7 = arith.constant 9.99999996E-13 : f32
    %17 = vector.broadcast %cst_7 : f32 to vector<8x1xf32>
    %18 = arith.addf %14, %17 : vector<8x1xf32>
    %19 = math.rsqrt %18 : vector<8x1xf32>
    %20 = vector.broadcast %19 : vector<8x1xf32> to vector<8x32xf32>
    %21 = arith.mulf %16, %20 : vector<8x32xf32>
    %c0_8 = arith.constant 0 : index
    %c0_9 = arith.constant 0 : index
    %22 = vector.load %arg3[%c0_8, %c0_9] : memref<1x32xf32, #tpu.memory_space<vmem>>, vector<1x32xf32>
    %23 = vector.broadcast %22 : vector<1x32xf32> to vector<8x32xf32>
    %24 = arith.mulf %21, %23 : vector<8x32xf32>
    %c0_10 = arith.constant 0 : index
    %c0_11 = arith.constant 0 : index
    %25 = vector.load %arg4[%c0_10, %c0_11] : memref<1x32xf32, #tpu.memory_space<vmem>>, vector<1x32xf32>
    %26 = vector.broadcast %25 : vector<1x32xf32> to vector<8x32xf32>
    %27 = arith.addf %24, %26 : vector<8x32xf32>
    %c0_12 = arith.constant 0 : index
    %c0_13 = arith.constant 0 : index
    %c0_14 = arith.constant 0 : index
    %28 = vector.load %arg5[%c0_12, %c0_13, %c0_14] : memref<1x8x32xf32, #tpu.memory_space<vmem>>, vector<1x8x32xf32>
    %29 = vector.shape_cast %28 : vector<1x8x32xf32> to vector<8x32xf32>
    %30 = vector.shape_cast %27 : vector<8x32xf32> to vector<1x8x32xf32>
    tpu.vector_store %arg5[%c0_12, %c0_13, %c0_14], %30 {strides = array<i32>} : memref<1x8x32xf32, #tpu.memory_space<vmem>>, vector<1x8x32xf32>,
    return
  }
  func.func @transform_0(%arg0: i32) -> (i32, i32, i32) {
    %c0_i32 = arith.constant 0 : i32
    %c0_i32_0 = arith.constant 0 : i32
    %c0_i32_1 = arith.constant 0 : i32
    return %arg0, %c0_i32, %c0_i32_0 : i32, i32, i32
  }
  func.func @transform_1(%arg0: i32) -> (i32, i32) {
    %c0_i32 = arith.constant 0 : i32
    %c0_i32_0 = arith.constant 0 : i32
    %c0_i32_1 = arith.constant 0 : i32
    return %c0_i32, %c0_i32_0 : i32, i32
  }
  func.func @transform_2(%arg0: i32) -> (i32, i32) {
    %c0_i32 = arith.constant 0 : i32
    %c0_i32_0 = arith.constant 0 : i32
    %c0_i32_1 = arith.constant 0 : i32
    return %c0_i32, %c0_i32_0 : i32, i32
  }
  func.func @transform_3(%arg0: i32) -> (i32, i32) {
    %c0_i32 = arith.constant 0 : i32
    %c0_i32_0 = arith.constant 0 : i32
    %c0_i32_1 = arith.constant 0 : i32
    return %c0_i32, %c0_i32_0 : i32, i32
  }
  func.func @transform_4(%arg0: i32) -> (i32, i32, i32) {
    %c0_i32 = arith.constant 0 : i32
    %c0_i32_0 = arith.constant 0 : i32
    %c0_i32_1 = arith.constant 0 : i32
    return %arg0, %c0_i32, %c0_i32_0 : i32, i32, i32
  }
}

module attributes {stable_mosaic.version = 11 : i64} {
  func.func @_encoder_layer_kernel(%arg0: i32, %arg1: memref<1x16x32xf32, #tpu.memory_space<vmem>>, %arg2: memref<1x1x16xf32, #tpu.memory_space<vmem>>, %arg3: memref<1x32xf32, #tpu.memory_space<vmem>>, %arg4: memref<1x32xf32, #tpu.memory_space<vmem>>, %arg5: memref<32x96xbf16, #tpu.memory_space<vmem>>, %arg6: memref<1x96xf32, #tpu.memory_space<vmem>>, %arg7: memref<32x32xbf16, #tpu.memory_space<vmem>>, %arg8: memref<1x32xf32, #tpu.memory_space<vmem>>, %arg9: memref<1x32xf32, #tpu.memory_space<vmem>>, %arg10: memref<1x32xf32, #tpu.memory_space<vmem>>, %arg11: memref<32x128xbf16, #tpu.memory_space<vmem>>, %arg12: memref<1x128xf32, #tpu.memory_space<vmem>>, %arg13: memref<128x32xbf16, #tpu.memory_space<vmem>>, %arg14: memref<1x32xf32, #tpu.memory_space<vmem>>, %arg15: memref<1x16x32xf32, #tpu.memory_space<vmem>>) attributes {dimension_semantics = [#tpu.dimension_semantics<parallel>], iteration_bounds = array<i64: 2>, scalar_prefetch = 0 : i64, scratch_operands = 0 : i64, tpu.core_type = #tpu.core_type<tc>, window_params = [{transform_indices = @transform_0, window_bounds = array<i64: 1, 16, 32>}, {transform_indices = @transform_1, window_bounds = array<i64: 1, 1, 16>}, {pipeline_mode = #tpu.pipeline_mode<synchronous>, transform_indices = @transform_2, window_bounds = array<i64: 1, 32>}, {pipeline_mode = #tpu.pipeline_mode<synchronous>, transform_indices = @transform_3, window_bounds = array<i64: 1, 32>}, {pipeline_mode = #tpu.pipeline_mode<synchronous>, transform_indices = @transform_4, window_bounds = array<i64: 32, 96>}, {pipeline_mode = #tpu.pipeline_mode<synchronous>, transform_indices = @transform_5, window_bounds = array<i64: 1, 96>}, {pipeline_mode = #tpu.pipeline_mode<synchronous>, transform_indices = @transform_6, window_bounds = array<i64: 32, 32>}, {pipeline_mode = #tpu.pipeline_mode<synchronous>, transform_indices = @transform_7, window_bounds = array<i64: 1, 32>}, {pipeline_mode = #tpu.pipeline_mode<synchronous>, transform_indices = @transform_8, window_bounds = array<i64: 1, 32>}, {pipeline_mode = #tpu.pipeline_mode<synchronous>, transform_indices = @transform_9, window_bounds = array<i64: 1, 32>}, {pipeline_mode = #tpu.pipeline_mode<synchronous>, transform_indices = @transform_10, window_bounds = array<i64: 32, 128>}, {pipeline_mode = #tpu.pipeline_mode<synchronous>, transform_indices = @transform_11, window_bounds = array<i64: 1, 128>}, {pipeline_mode = #tpu.pipeline_mode<synchronous>, transform_indices = @transform_12, window_bounds = array<i64: 128, 32>}, {pipeline_mode = #tpu.pipeline_mode<synchronous>, transform_indices = @transform_13, window_bounds = array<i64: 1, 32>}, {transform_indices = @transform_14, window_bounds = array<i64: 1, 16, 32>}]} {
    %c0 = arith.constant 0 : index
    %c0_0 = arith.constant 0 : index
    %c0_1 = arith.constant 0 : index
    %0 = vector.load %arg1[%c0, %c0_0, %c0_1] : memref<1x16x32xf32, #tpu.memory_space<vmem>>, vector<1x16x32xf32>
    %1 = vector.shape_cast %0 : vector<1x16x32xf32> to vector<16x32xf32>
    %c0_2 = arith.constant 0 : index
    %c0_3 = arith.constant 0 : index
    %c0_4 = arith.constant 0 : index
    %2 = vector.load %arg2[%c0_2, %c0_3, %c0_4] : memref<1x1x16xf32, #tpu.memory_space<vmem>>, vector<1x1x16xf32>
    %3 = vector.shape_cast %2 : vector<1x1x16xf32> to vector<1x16xf32>
    %cst = arith.constant dense<0.000000e+00> : vector<16xf32>
    %4 = vector.multi_reduction <add>, %1, %cst [1] : vector<16x32xf32> to vector<16xf32>
    %5 = vector.shape_cast %4 : vector<16xf32> to vector<16x1xf32>
    %cst_5 = arith.constant 3.200000e+01 : f32
    %6 = vector.broadcast %cst_5 : f32 to vector<16x1xf32>
    %7 = arith.divf %5, %6 : vector<16x1xf32>
    %8 = vector.broadcast %7 : vector<16x1xf32> to vector<16x32xf32>
    %9 = arith.subf %1, %8 : vector<16x32xf32>
    %10 = arith.mulf %9, %9 : vector<16x32xf32>
    %cst_6 = arith.constant dense<0.000000e+00> : vector<16xf32>
    %11 = vector.multi_reduction <add>, %10, %cst_6 [1] : vector<16x32xf32> to vector<16xf32>
    %12 = vector.shape_cast %11 : vector<16xf32> to vector<16x1xf32>
    %cst_7 = arith.constant 3.200000e+01 : f32
    %13 = vector.broadcast %cst_7 : f32 to vector<16x1xf32>
    %14 = arith.divf %12, %13 : vector<16x1xf32>
    %15 = vector.broadcast %7 : vector<16x1xf32> to vector<16x32xf32>
    %16 = arith.subf %1, %15 : vector<16x32xf32>
    %cst_8 = arith.constant 9.99999996E-13 : f32
    %17 = vector.broadcast %cst_8 : f32 to vector<16x1xf32>
    %18 = arith.addf %14, %17 : vector<16x1xf32>
    %19 = math.rsqrt %18 : vector<16x1xf32>
    %20 = vector.broadcast %19 : vector<16x1xf32> to vector<16x32xf32>
    %21 = arith.mulf %16, %20 : vector<16x32xf32>
    %c0_9 = arith.constant 0 : index
    %c0_10 = arith.constant 0 : index
    %22 = vector.load %arg3[%c0_9, %c0_10] : memref<1x32xf32, #tpu.memory_space<vmem>>, vector<1x32xf32>
    %23 = vector.broadcast %22 : vector<1x32xf32> to vector<16x32xf32>
    %24 = arith.mulf %21, %23 : vector<16x32xf32>
    %c0_11 = arith.constant 0 : index
    %c0_12 = arith.constant 0 : index
    %25 = vector.load %arg4[%c0_11, %c0_12] : memref<1x32xf32, #tpu.memory_space<vmem>>, vector<1x32xf32>
    %26 = vector.broadcast %25 : vector<1x32xf32> to vector<16x32xf32>
    %27 = arith.addf %24, %26 : vector<16x32xf32>
    %28 = arith.truncf %27 : vector<16x32xf32> to vector<16x32xbf16>
    %c0_13 = arith.constant 0 : index
    %c0_14 = arith.constant 0 : index
    %29 = vector.load %arg5[%c0_13, %c0_14] : memref<32x96xbf16, #tpu.memory_space<vmem>>, vector<32x96xbf16>
    %cst_15 = arith.constant dense<0.000000e+00> : vector<16x96xf32>
    %30 = tpu.matmul %28, %29, %cst_15 {dimension_numbers = #tpu.dot_dimension_numbers<[1], [0], [0], [1], [0, 0, 1, 1], [], []>} : vector<16x32xbf16>, vector<32x96xbf16>, vector<16x96xf32> -> vector<16x96xf32>
    %c0_16 = arith.constant 0 : index
    %c0_17 = arith.constant 0 : index
    %31 = vector.load %arg6[%c0_16, %c0_17] : memref<1x96xf32, #tpu.memory_space<vmem>>, vector<1x96xf32>
    %32 = vector.broadcast %31 : vector<1x96xf32> to vector<16x96xf32>
    %33 = arith.addf %30, %32 : vector<16x96xf32>
    %34 = arith.truncf %33 : vector<16x96xf32> to vector<16x96xbf16>
    %35 = vector.extract_strided_slice %34 {offsets = [0, 0], sizes = [16, 8], strides = [1, 1]} : vector<16x96xbf16> to vector<16x8xbf16>
    %36 = vector.extract_strided_slice %34 {offsets = [0, 32], sizes = [16, 8], strides = [1, 1]} : vector<16x96xbf16> to vector<16x8xbf16>
    %37 = vector.extract_strided_slice %34 {offsets = [0, 64], sizes = [16, 8], strides = [1, 1]} : vector<16x96xbf16> to vector<16x8xbf16>
    %cst_18 = arith.constant dense<0.000000e+00> : vector<16x16xf32>
    %38 = tpu.matmul %35, %36, %cst_18 {dimension_numbers = #tpu.dot_dimension_numbers<[1], [1], [0], [0], [0, 0, 1, 0], [], []>} : vector<16x8xbf16>, vector<16x8xbf16>, vector<16x16xf32> -> vector<16x16xf32>
    %39 = vector.broadcast %3 : vector<1x16xf32> to vector<16x16xf32>
    %40 = arith.addf %38, %39 : vector<16x16xf32>
    %cst_19 = arith.constant dense<0xFF800000> : vector<16xf32>
    %41 = vector.multi_reduction <maximumf>, %40, %cst_19 [1] : vector<16x16xf32> to vector<16xf32>
    %42 = vector.shape_cast %41 : vector<16xf32> to vector<16x1xf32>
    %43 = vector.broadcast %42 : vector<16x1xf32> to vector<16x16xf32>
    %44 = arith.subf %40, %43 : vector<16x16xf32>
    %45 = math.exp %44 : vector<16x16xf32>
    %cst_20 = arith.constant dense<0.000000e+00> : vector<16xf32>
    %46 = vector.multi_reduction <add>, %45, %cst_20 [1] : vector<16x16xf32> to vector<16xf32>
    %47 = vector.shape_cast %46 : vector<16xf32> to vector<16x1xf32>
    %48 = tpu.reciprocal %47 {approx = true} : vector<16x1xf32> -> vector<16x1xf32>
    %49 = vector.broadcast %48 : vector<16x1xf32> to vector<16x16xf32>
    %50 = arith.mulf %45, %49 : vector<16x16xf32>
    %51 = arith.truncf %50 : vector<16x16xf32> to vector<16x16xbf16>
    %cst_21 = arith.constant dense<0.000000e+00> : vector<16x8xf32>
    %52 = tpu.matmul %51, %37, %cst_21 {dimension_numbers = #tpu.dot_dimension_numbers<[1], [0], [0], [1], [0, 0, 1, 1], [], []>} : vector<16x16xbf16>, vector<16x8xbf16>, vector<16x8xf32> -> vector<16x8xf32>
    %53 = vector.extract_strided_slice %34 {offsets = [0, 8], sizes = [16, 8], strides = [1, 1]} : vector<16x96xbf16> to vector<16x8xbf16>
    %54 = vector.extract_strided_slice %34 {offsets = [0, 40], sizes = [16, 8], strides = [1, 1]} : vector<16x96xbf16> to vector<16x8xbf16>
    %55 = vector.extract_strided_slice %34 {offsets = [0, 72], sizes = [16, 8], strides = [1, 1]} : vector<16x96xbf16> to vector<16x8xbf16>
    %cst_22 = arith.constant dense<0.000000e+00> : vector<16x16xf32>
    %56 = tpu.matmul %53, %54, %cst_22 {dimension_numbers = #tpu.dot_dimension_numbers<[1], [1], [0], [0], [0, 0, 1, 0], [], []>} : vector<16x8xbf16>, vector<16x8xbf16>, vector<16x16xf32> -> vector<16x16xf32>
    %57 = vector.broadcast %3 : vector<1x16xf32> to vector<16x16xf32>
    %58 = arith.addf %56, %57 : vector<16x16xf32>
    %cst_23 = arith.constant dense<0xFF800000> : vector<16xf32>
    %59 = vector.multi_reduction <maximumf>, %58, %cst_23 [1] : vector<16x16xf32> to vector<16xf32>
    %60 = vector.shape_cast %59 : vector<16xf32> to vector<16x1xf32>
    %61 = vector.broadcast %60 : vector<16x1xf32> to vector<16x16xf32>
    %62 = arith.subf %58, %61 : vector<16x16xf32>
    %63 = math.exp %62 : vector<16x16xf32>
    %cst_24 = arith.constant dense<0.000000e+00> : vector<16xf32>
    %64 = vector.multi_reduction <add>, %63, %cst_24 [1] : vector<16x16xf32> to vector<16xf32>
    %65 = vector.shape_cast %64 : vector<16xf32> to vector<16x1xf32>
    %66 = tpu.reciprocal %65 {approx = true} : vector<16x1xf32> -> vector<16x1xf32>
    %67 = vector.broadcast %66 : vector<16x1xf32> to vector<16x16xf32>
    %68 = arith.mulf %63, %67 : vector<16x16xf32>
    %69 = arith.truncf %68 : vector<16x16xf32> to vector<16x16xbf16>
    %cst_25 = arith.constant dense<0.000000e+00> : vector<16x8xf32>
    %70 = tpu.matmul %69, %55, %cst_25 {dimension_numbers = #tpu.dot_dimension_numbers<[1], [0], [0], [1], [0, 0, 1, 1], [], []>} : vector<16x16xbf16>, vector<16x8xbf16>, vector<16x8xf32> -> vector<16x8xf32>
    %71 = vector.extract_strided_slice %34 {offsets = [0, 16], sizes = [16, 8], strides = [1, 1]} : vector<16x96xbf16> to vector<16x8xbf16>
    %72 = vector.extract_strided_slice %34 {offsets = [0, 48], sizes = [16, 8], strides = [1, 1]} : vector<16x96xbf16> to vector<16x8xbf16>
    %73 = vector.extract_strided_slice %34 {offsets = [0, 80], sizes = [16, 8], strides = [1, 1]} : vector<16x96xbf16> to vector<16x8xbf16>
    %cst_26 = arith.constant dense<0.000000e+00> : vector<16x16xf32>
    %74 = tpu.matmul %71, %72, %cst_26 {dimension_numbers = #tpu.dot_dimension_numbers<[1], [1], [0], [0], [0, 0, 1, 0], [], []>} : vector<16x8xbf16>, vector<16x8xbf16>, vector<16x16xf32> -> vector<16x16xf32>
    %75 = vector.broadcast %3 : vector<1x16xf32> to vector<16x16xf32>
    %76 = arith.addf %74, %75 : vector<16x16xf32>
    %cst_27 = arith.constant dense<0xFF800000> : vector<16xf32>
    %77 = vector.multi_reduction <maximumf>, %76, %cst_27 [1] : vector<16x16xf32> to vector<16xf32>
    %78 = vector.shape_cast %77 : vector<16xf32> to vector<16x1xf32>
    %79 = vector.broadcast %78 : vector<16x1xf32> to vector<16x16xf32>
    %80 = arith.subf %76, %79 : vector<16x16xf32>
    %81 = math.exp %80 : vector<16x16xf32>
    %cst_28 = arith.constant dense<0.000000e+00> : vector<16xf32>
    %82 = vector.multi_reduction <add>, %81, %cst_28 [1] : vector<16x16xf32> to vector<16xf32>
    %83 = vector.shape_cast %82 : vector<16xf32> to vector<16x1xf32>
    %84 = tpu.reciprocal %83 {approx = true} : vector<16x1xf32> -> vector<16x1xf32>
    %85 = vector.broadcast %84 : vector<16x1xf32> to vector<16x16xf32>
    %86 = arith.mulf %81, %85 : vector<16x16xf32>
    %87 = arith.truncf %86 : vector<16x16xf32> to vector<16x16xbf16>
    %cst_29 = arith.constant dense<0.000000e+00> : vector<16x8xf32>
    %88 = tpu.matmul %87, %73, %cst_29 {dimension_numbers = #tpu.dot_dimension_numbers<[1], [0], [0], [1], [0, 0, 1, 1], [], []>} : vector<16x16xbf16>, vector<16x8xbf16>, vector<16x8xf32> -> vector<16x8xf32>
    %89 = vector.extract_strided_slice %34 {offsets = [0, 24], sizes = [16, 8], strides = [1, 1]} : vector<16x96xbf16> to vector<16x8xbf16>
    %90 = vector.extract_strided_slice %34 {offsets = [0, 56], sizes = [16, 8], strides = [1, 1]} : vector<16x96xbf16> to vector<16x8xbf16>
    %91 = vector.extract_strided_slice %34 {offsets = [0, 88], sizes = [16, 8], strides = [1, 1]} : vector<16x96xbf16> to vector<16x8xbf16>
    %cst_30 = arith.constant dense<0.000000e+00> : vector<16x16xf32>
    %92 = tpu.matmul %89, %90, %cst_30 {dimension_numbers = #tpu.dot_dimension_numbers<[1], [1], [0], [0], [0, 0, 1, 0], [], []>} : vector<16x8xbf16>, vector<16x8xbf16>, vector<16x16xf32> -> vector<16x16xf32>
    %93 = vector.broadcast %3 : vector<1x16xf32> to vector<16x16xf32>
    %94 = arith.addf %92, %93 : vector<16x16xf32>
    %cst_31 = arith.constant dense<0xFF800000> : vector<16xf32>
    %95 = vector.multi_reduction <maximumf>, %94, %cst_31 [1] : vector<16x16xf32> to vector<16xf32>
    %96 = vector.shape_cast %95 : vector<16xf32> to vector<16x1xf32>
    %97 = vector.broadcast %96 : vector<16x1xf32> to vector<16x16xf32>
    %98 = arith.subf %94, %97 : vector<16x16xf32>
    %99 = math.exp %98 : vector<16x16xf32>
    %cst_32 = arith.constant dense<0.000000e+00> : vector<16xf32>
    %100 = vector.multi_reduction <add>, %99, %cst_32 [1] : vector<16x16xf32> to vector<16xf32>
    %101 = vector.shape_cast %100 : vector<16xf32> to vector<16x1xf32>
    %102 = tpu.reciprocal %101 {approx = true} : vector<16x1xf32> -> vector<16x1xf32>
    %103 = vector.broadcast %102 : vector<16x1xf32> to vector<16x16xf32>
    %104 = arith.mulf %99, %103 : vector<16x16xf32>
    %105 = arith.truncf %104 : vector<16x16xf32> to vector<16x16xbf16>
    %cst_33 = arith.constant dense<0.000000e+00> : vector<16x8xf32>
    %106 = tpu.matmul %105, %91, %cst_33 {dimension_numbers = #tpu.dot_dimension_numbers<[1], [0], [0], [1], [0, 0, 1, 1], [], []>} : vector<16x16xbf16>, vector<16x8xbf16>, vector<16x8xf32> -> vector<16x8xf32>
    %107 = tpu.concatenate %52, %70, %88, %106 in 1 : vector<16x8xf32>, vector<16x8xf32>, vector<16x8xf32>, vector<16x8xf32> -> vector<16x32xf32>
    %108 = arith.truncf %107 : vector<16x32xf32> to vector<16x32xbf16>
    %c0_34 = arith.constant 0 : index
    %c0_35 = arith.constant 0 : index
    %109 = vector.load %arg7[%c0_34, %c0_35] : memref<32x32xbf16, #tpu.memory_space<vmem>>, vector<32x32xbf16>
    %cst_36 = arith.constant dense<0.000000e+00> : vector<16x32xf32>
    %110 = tpu.matmul %108, %109, %cst_36 {dimension_numbers = #tpu.dot_dimension_numbers<[1], [0], [0], [1], [0, 0, 1, 1], [], []>} : vector<16x32xbf16>, vector<32x32xbf16>, vector<16x32xf32> -> vector<16x32xf32>
    %111 = arith.addf %1, %110 : vector<16x32xf32>
    %c0_37 = arith.constant 0 : index
    %c0_38 = arith.constant 0 : index
    %112 = vector.load %arg8[%c0_37, %c0_38] : memref<1x32xf32, #tpu.memory_space<vmem>>, vector<1x32xf32>
    %113 = vector.broadcast %112 : vector<1x32xf32> to vector<16x32xf32>
    %114 = arith.addf %111, %113 : vector<16x32xf32>
    %cst_39 = arith.constant dense<0.000000e+00> : vector<16xf32>
    %115 = vector.multi_reduction <add>, %114, %cst_39 [1] : vector<16x32xf32> to vector<16xf32>
    %116 = vector.shape_cast %115 : vector<16xf32> to vector<16x1xf32>
    %cst_40 = arith.constant 3.200000e+01 : f32
    %117 = vector.broadcast %cst_40 : f32 to vector<16x1xf32>
    %118 = arith.divf %116, %117 : vector<16x1xf32>
    %119 = vector.broadcast %118 : vector<16x1xf32> to vector<16x32xf32>
    %120 = arith.subf %114, %119 : vector<16x32xf32>
    %121 = arith.mulf %120, %120 : vector<16x32xf32>
    %cst_41 = arith.constant dense<0.000000e+00> : vector<16xf32>
    %122 = vector.multi_reduction <add>, %121, %cst_41 [1] : vector<16x32xf32> to vector<16xf32>
    %123 = vector.shape_cast %122 : vector<16xf32> to vector<16x1xf32>
    %cst_42 = arith.constant 3.200000e+01 : f32
    %124 = vector.broadcast %cst_42 : f32 to vector<16x1xf32>
    %125 = arith.divf %123, %124 : vector<16x1xf32>
    %126 = vector.broadcast %118 : vector<16x1xf32> to vector<16x32xf32>
    %127 = arith.subf %114, %126 : vector<16x32xf32>
    %cst_43 = arith.constant 9.99999996E-13 : f32
    %128 = vector.broadcast %cst_43 : f32 to vector<16x1xf32>
    %129 = arith.addf %125, %128 : vector<16x1xf32>
    %130 = math.rsqrt %129 : vector<16x1xf32>
    %131 = vector.broadcast %130 : vector<16x1xf32> to vector<16x32xf32>
    %132 = arith.mulf %127, %131 : vector<16x32xf32>
    %c0_44 = arith.constant 0 : index
    %c0_45 = arith.constant 0 : index
    %133 = vector.load %arg9[%c0_44, %c0_45] : memref<1x32xf32, #tpu.memory_space<vmem>>, vector<1x32xf32>
    %134 = vector.broadcast %133 : vector<1x32xf32> to vector<16x32xf32>
    %135 = arith.mulf %132, %134 : vector<16x32xf32>
    %c0_46 = arith.constant 0 : index
    %c0_47 = arith.constant 0 : index
    %136 = vector.load %arg10[%c0_46, %c0_47] : memref<1x32xf32, #tpu.memory_space<vmem>>, vector<1x32xf32>
    %137 = vector.broadcast %136 : vector<1x32xf32> to vector<16x32xf32>
    %138 = arith.addf %135, %137 : vector<16x32xf32>
    %139 = arith.truncf %138 : vector<16x32xf32> to vector<16x32xbf16>
    %c0_48 = arith.constant 0 : index
    %c0_49 = arith.constant 0 : index
    %140 = vector.load %arg11[%c0_48, %c0_49] : memref<32x128xbf16, #tpu.memory_space<vmem>>, vector<32x128xbf16>
    %cst_50 = arith.constant dense<0.000000e+00> : vector<16x128xf32>
    %141 = tpu.matmul %139, %140, %cst_50 {dimension_numbers = #tpu.dot_dimension_numbers<[1], [0], [0], [1], [0, 0, 1, 1], [], []>} : vector<16x32xbf16>, vector<32x128xbf16>, vector<16x128xf32> -> vector<16x128xf32>
    %c0_51 = arith.constant 0 : index
    %c0_52 = arith.constant 0 : index
    %142 = vector.load %arg12[%c0_51, %c0_52] : memref<1x128xf32, #tpu.memory_space<vmem>>, vector<1x128xf32>
    %143 = vector.broadcast %142 : vector<1x128xf32> to vector<16x128xf32>
    %144 = arith.addf %141, %143 : vector<16x128xf32>
    %cst_53 = arith.constant 5.000000e-01 : f32
    %145 = vector.broadcast %cst_53 : f32 to vector<16x128xf32>
    %146 = arith.mulf %145, %144 : vector<16x128xf32>
    %cst_54 = arith.constant 4.471500e-02 : f32
    %147 = vector.broadcast %cst_54 : f32 to vector<16x128xf32>
    %148 = arith.mulf %147, %144 : vector<16x128xf32>
    %149 = arith.mulf %148, %144 : vector<16x128xf32>
    %150 = arith.mulf %149, %144 : vector<16x128xf32>
    %151 = arith.addf %144, %150 : vector<16x128xf32>
    %cst_55 = arith.constant 0.797884583 : f32
    %152 = vector.broadcast %cst_55 : f32 to vector<16x128xf32>
    %153 = arith.mulf %152, %151 : vector<16x128xf32>
    %154 = math.tanh %153 : vector<16x128xf32>
    %cst_56 = arith.constant 1.000000e+00 : f32
    %155 = vector.broadcast %cst_56 : f32 to vector<16x128xf32>
    %156 = arith.addf %155, %154 : vector<16x128xf32>
    %157 = arith.mulf %146, %156 : vector<16x128xf32>
    %158 = arith.truncf %157 : vector<16x128xf32> to vector<16x128xbf16>
    %c0_57 = arith.constant 0 : index
    %c0_58 = arith.constant 0 : index
    %159 = vector.load %arg13[%c0_57, %c0_58] : memref<128x32xbf16, #tpu.memory_space<vmem>>, vector<128x32xbf16>
    %cst_59 = arith.constant dense<0.000000e+00> : vector<16x32xf32>
    %160 = tpu.matmul %158, %159, %cst_59 {dimension_numbers = #tpu.dot_dimension_numbers<[1], [0], [0], [1], [0, 0, 1, 1], [], []>} : vector<16x128xbf16>, vector<128x32xbf16>, vector<16x32xf32> -> vector<16x32xf32>
    %161 = arith.addf %114, %160 : vector<16x32xf32>
    %c0_60 = arith.constant 0 : index
    %c0_61 = arith.constant 0 : index
    %162 = vector.load %arg14[%c0_60, %c0_61] : memref<1x32xf32, #tpu.memory_space<vmem>>, vector<1x32xf32>
    %163 = vector.broadcast %162 : vector<1x32xf32> to vector<16x32xf32>
    %164 = arith.addf %161, %163 : vector<16x32xf32>
    %c0_62 = arith.constant 0 : index
    %c0_63 = arith.constant 0 : index
    %c0_64 = arith.constant 0 : index
    %165 = vector.load %arg15[%c0_62, %c0_63, %c0_64] : memref<1x16x32xf32, #tpu.memory_space<vmem>>, vector<1x16x32xf32>
    %166 = vector.shape_cast %165 : vector<1x16x32xf32> to vector<16x32xf32>
    %167 = vector.shape_cast %164 : vector<16x32xf32> to vector<1x16x32xf32>
    tpu.vector_store %arg15[%c0_62, %c0_63, %c0_64], %167 {strides = array<i32>} : memref<1x16x32xf32, #tpu.memory_space<vmem>>, vector<1x16x32xf32>,
    return
  }
  func.func @transform_0(%arg0: i32) -> (i32, i32, i32) {
    %c0_i32 = arith.constant 0 : i32
    %c0_i32_0 = arith.constant 0 : i32
    %c0_i32_1 = arith.constant 0 : i32
    return %arg0, %c0_i32, %c0_i32_0 : i32, i32, i32
  }
  func.func @transform_1(%arg0: i32) -> (i32, i32, i32) {
    %c0_i32 = arith.constant 0 : i32
    %c0_i32_0 = arith.constant 0 : i32
    %c0_i32_1 = arith.constant 0 : i32
    return %arg0, %c0_i32, %c0_i32_0 : i32, i32, i32
  }
  func.func @transform_2(%arg0: i32) -> (i32, i32) {
    %c0_i32 = arith.constant 0 : i32
    %c0_i32_0 = arith.constant 0 : i32
    %c0_i32_1 = arith.constant 0 : i32
    return %c0_i32, %c0_i32_0 : i32, i32
  }
  func.func @transform_3(%arg0: i32) -> (i32, i32) {
    %c0_i32 = arith.constant 0 : i32
    %c0_i32_0 = arith.constant 0 : i32
    %c0_i32_1 = arith.constant 0 : i32
    return %c0_i32, %c0_i32_0 : i32, i32
  }
  func.func @transform_4(%arg0: i32) -> (i32, i32) {
    %c0_i32 = arith.constant 0 : i32
    %c0_i32_0 = arith.constant 0 : i32
    %c0_i32_1 = arith.constant 0 : i32
    return %c0_i32, %c0_i32_0 : i32, i32
  }
  func.func @transform_5(%arg0: i32) -> (i32, i32) {
    %c0_i32 = arith.constant 0 : i32
    %c0_i32_0 = arith.constant 0 : i32
    %c0_i32_1 = arith.constant 0 : i32
    return %c0_i32, %c0_i32_0 : i32, i32
  }
  func.func @transform_6(%arg0: i32) -> (i32, i32) {
    %c0_i32 = arith.constant 0 : i32
    %c0_i32_0 = arith.constant 0 : i32
    %c0_i32_1 = arith.constant 0 : i32
    return %c0_i32, %c0_i32_0 : i32, i32
  }
  func.func @transform_7(%arg0: i32) -> (i32, i32) {
    %c0_i32 = arith.constant 0 : i32
    %c0_i32_0 = arith.constant 0 : i32
    %c0_i32_1 = arith.constant 0 : i32
    return %c0_i32, %c0_i32_0 : i32, i32
  }
  func.func @transform_8(%arg0: i32) -> (i32, i32) {
    %c0_i32 = arith.constant 0 : i32
    %c0_i32_0 = arith.constant 0 : i32
    %c0_i32_1 = arith.constant 0 : i32
    return %c0_i32, %c0_i32_0 : i32, i32
  }
  func.func @transform_9(%arg0: i32) -> (i32, i32) {
    %c0_i32 = arith.constant 0 : i32
    %c0_i32_0 = arith.constant 0 : i32
    %c0_i32_1 = arith.constant 0 : i32
    return %c0_i32, %c0_i32_0 : i32, i32
  }
  func.func @transform_10(%arg0: i32) -> (i32, i32) {
    %c0_i32 = arith.constant 0 : i32
    %c0_i32_0 = arith.constant 0 : i32
    %c0_i32_1 = arith.constant 0 : i32
    return %c0_i32, %c0_i32_0 : i32, i32
  }
  func.func @transform_11(%arg0: i32) -> (i32, i32) {
    %c0_i32 = arith.constant 0 : i32
    %c0_i32_0 = arith.constant 0 : i32
    %c0_i32_1 = arith.constant 0 : i32
    return %c0_i32, %c0_i32_0 : i32, i32
  }
  func.func @transform_12(%arg0: i32) -> (i32, i32) {
    %c0_i32 = arith.constant 0 : i32
    %c0_i32_0 = arith.constant 0 : i32
    %c0_i32_1 = arith.constant 0 : i32
    return %c0_i32, %c0_i32_0 : i32, i32
  }
  func.func @transform_13(%arg0: i32) -> (i32, i32) {
    %c0_i32 = arith.constant 0 : i32
    %c0_i32_0 = arith.constant 0 : i32
    %c0_i32_1 = arith.constant 0 : i32
    return %c0_i32, %c0_i32_0 : i32, i32
  }
  func.func @transform_14(%arg0: i32) -> (i32, i32, i32) {
    %c0_i32 = arith.constant 0 : i32
    %c0_i32_0 = arith.constant 0 : i32
    %c0_i32_1 = arith.constant 0 : i32
    return %arg0, %c0_i32, %c0_i32_0 : i32, i32, i32
  }
}

module attributes {stable_mosaic.version = 11 : i64} {
  func.func @_final_ln_pool_kernel(%arg0: i32, %arg1: memref<1x16x32xf32, #tpu.memory_space<vmem>>, %arg2: memref<1x32xf32, #tpu.memory_space<vmem>>, %arg3: memref<1x32xf32, #tpu.memory_space<vmem>>, %arg4: memref<32x32xbf16, #tpu.memory_space<vmem>>, %arg5: memref<1x32xf32, #tpu.memory_space<vmem>>, %arg6: memref<1x16x32xf32, #tpu.memory_space<vmem>>, %arg7: memref<1x1x32xf32, #tpu.memory_space<vmem>>) attributes {dimension_semantics = [#tpu.dimension_semantics<parallel>], iteration_bounds = array<i64: 2>, scalar_prefetch = 0 : i64, scratch_operands = 0 : i64, tpu.core_type = #tpu.core_type<tc>, window_params = [{transform_indices = @transform_0, window_bounds = array<i64: 1, 16, 32>}, {pipeline_mode = #tpu.pipeline_mode<synchronous>, transform_indices = @transform_1, window_bounds = array<i64: 1, 32>}, {pipeline_mode = #tpu.pipeline_mode<synchronous>, transform_indices = @transform_2, window_bounds = array<i64: 1, 32>}, {pipeline_mode = #tpu.pipeline_mode<synchronous>, transform_indices = @transform_3, window_bounds = array<i64: 32, 32>}, {pipeline_mode = #tpu.pipeline_mode<synchronous>, transform_indices = @transform_4, window_bounds = array<i64: 1, 32>}, {transform_indices = @transform_5, window_bounds = array<i64: 1, 16, 32>}, {transform_indices = @transform_6, window_bounds = array<i64: 1, 1, 32>}]} {
    %c0 = arith.constant 0 : index
    %c0_0 = arith.constant 0 : index
    %c0_1 = arith.constant 0 : index
    %0 = vector.load %arg1[%c0, %c0_0, %c0_1] : memref<1x16x32xf32, #tpu.memory_space<vmem>>, vector<1x16x32xf32>
    %1 = vector.shape_cast %0 : vector<1x16x32xf32> to vector<16x32xf32>
    %cst = arith.constant dense<0.000000e+00> : vector<16xf32>
    %2 = vector.multi_reduction <add>, %1, %cst [1] : vector<16x32xf32> to vector<16xf32>
    %3 = vector.shape_cast %2 : vector<16xf32> to vector<16x1xf32>
    %cst_2 = arith.constant 3.200000e+01 : f32
    %4 = vector.broadcast %cst_2 : f32 to vector<16x1xf32>
    %5 = arith.divf %3, %4 : vector<16x1xf32>
    %6 = vector.broadcast %5 : vector<16x1xf32> to vector<16x32xf32>
    %7 = arith.subf %1, %6 : vector<16x32xf32>
    %8 = arith.mulf %7, %7 : vector<16x32xf32>
    %cst_3 = arith.constant dense<0.000000e+00> : vector<16xf32>
    %9 = vector.multi_reduction <add>, %8, %cst_3 [1] : vector<16x32xf32> to vector<16xf32>
    %10 = vector.shape_cast %9 : vector<16xf32> to vector<16x1xf32>
    %cst_4 = arith.constant 3.200000e+01 : f32
    %11 = vector.broadcast %cst_4 : f32 to vector<16x1xf32>
    %12 = arith.divf %10, %11 : vector<16x1xf32>
    %13 = vector.broadcast %5 : vector<16x1xf32> to vector<16x32xf32>
    %14 = arith.subf %1, %13 : vector<16x32xf32>
    %cst_5 = arith.constant 9.99999996E-13 : f32
    %15 = vector.broadcast %cst_5 : f32 to vector<16x1xf32>
    %16 = arith.addf %12, %15 : vector<16x1xf32>
    %17 = math.rsqrt %16 : vector<16x1xf32>
    %18 = vector.broadcast %17 : vector<16x1xf32> to vector<16x32xf32>
    %19 = arith.mulf %14, %18 : vector<16x32xf32>
    %c0_6 = arith.constant 0 : index
    %c0_7 = arith.constant 0 : index
    %20 = vector.load %arg2[%c0_6, %c0_7] : memref<1x32xf32, #tpu.memory_space<vmem>>, vector<1x32xf32>
    %21 = vector.broadcast %20 : vector<1x32xf32> to vector<16x32xf32>
    %22 = arith.mulf %19, %21 : vector<16x32xf32>
    %c0_8 = arith.constant 0 : index
    %c0_9 = arith.constant 0 : index
    %23 = vector.load %arg3[%c0_8, %c0_9] : memref<1x32xf32, #tpu.memory_space<vmem>>, vector<1x32xf32>
    %24 = vector.broadcast %23 : vector<1x32xf32> to vector<16x32xf32>
    %25 = arith.addf %22, %24 : vector<16x32xf32>
    %c0_10 = arith.constant 0 : index
    %c0_11 = arith.constant 0 : index
    %c0_12 = arith.constant 0 : index
    %26 = vector.load %arg6[%c0_10, %c0_11, %c0_12] : memref<1x16x32xf32, #tpu.memory_space<vmem>>, vector<1x16x32xf32>
    %27 = vector.shape_cast %26 : vector<1x16x32xf32> to vector<16x32xf32>
    %28 = vector.shape_cast %25 : vector<16x32xf32> to vector<1x16x32xf32>
    tpu.vector_store %arg6[%c0_10, %c0_11, %c0_12], %28 {strides = array<i32>} : memref<1x16x32xf32, #tpu.memory_space<vmem>>, vector<1x16x32xf32>,
    %29 = vector.extract_strided_slice %25 {offsets = [0, 0], sizes = [1, 32], strides = [1, 1]} : vector<16x32xf32> to vector<1x32xf32>
    %30 = arith.truncf %29 : vector<1x32xf32> to vector<1x32xbf16>
    %c0_13 = arith.constant 0 : index
    %c0_14 = arith.constant 0 : index
    %31 = vector.load %arg4[%c0_13, %c0_14] : memref<32x32xbf16, #tpu.memory_space<vmem>>, vector<32x32xbf16>
    %cst_15 = arith.constant dense<0.000000e+00> : vector<1x32xf32>
    %32 = tpu.matmul %30, %31, %cst_15 {dimension_numbers = #tpu.dot_dimension_numbers<[1], [0], [0], [1], [0, 0, 1, 1], [], []>} : vector<1x32xbf16>, vector<32x32xbf16>, vector<1x32xf32> -> vector<1x32xf32>
    %c0_16 = arith.constant 0 : index
    %c0_17 = arith.constant 0 : index
    %33 = vector.load %arg5[%c0_16, %c0_17] : memref<1x32xf32, #tpu.memory_space<vmem>>, vector<1x32xf32>
    %34 = arith.addf %32, %33 : vector<1x32xf32>
    %35 = math.tanh %34 : vector<1x32xf32>
    %c0_18 = arith.constant 0 : index
    %c0_19 = arith.constant 0 : index
    %c0_20 = arith.constant 0 : index
    %36 = vector.load %arg7[%c0_18, %c0_19, %c0_20] : memref<1x1x32xf32, #tpu.memory_space<vmem>>, vector<1x1x32xf32>
    %37 = vector.shape_cast %36 : vector<1x1x32xf32> to vector<1x32xf32>
    %38 = vector.shape_cast %35 : vector<1x32xf32> to vector<1x1x32xf32>
    tpu.vector_store %arg7[%c0_18, %c0_19, %c0_20], %38 {strides = array<i32>} : memref<1x1x32xf32, #tpu.memory_space<vmem>>, vector<1x1x32xf32>,
    return
  }
  func.func @transform_0(%arg0: i32) -> (i32, i32, i32) {
    %c0_i32 = arith.constant 0 : i32
    %c0_i32_0 = arith.constant 0 : i32
    %c0_i32_1 = arith.constant 0 : i32
    return %arg0, %c0_i32, %c0_i32_0 : i32, i32, i32
  }
  func.func @transform_1(%arg0: i32) -> (i32, i32) {
    %c0_i32 = arith.constant 0 : i32
    %c0_i32_0 = arith.constant 0 : i32
    %c0_i32_1 = arith.constant 0 : i32
    return %c0_i32, %c0_i32_0 : i32, i32
  }
  func.func @transform_2(%arg0: i32) -> (i32, i32) {
    %c0_i32 = arith.constant 0 : i32
    %c0_i32_0 = arith.constant 0 : i32
    %c0_i32_1 = arith.constant 0 : i32
    return %c0_i32, %c0_i32_0 : i32, i32
  }
  func.func @transform_3(%arg0: i32) -> (i32, i32) {
    %c0_i32 = arith.constant 0 : i32
    %c0_i32_0 = arith.constant 0 : i32
    %c0_i32_1 = arith.constant 0 : i32
    return %c0_i32, %c0_i32_0 : i32, i32
  }
  func.func @transform_4(%arg0: i32) -> (i32, i32) {
    %c0_i32 = arith.constant 0 : i32
    %c0_i32_0 = arith.constant 0 : i32
    %c0_i32_1 = arith.constant 0 : i32
    return %c0_i32, %c0_i32_0 : i32, i32
  }
  func.func @transform_5(%arg0: i32) -> (i32, i32, i32) {
    %c0_i32 = arith.constant 0 : i32
    %c0_i32_0 = arith.constant 0 : i32
    %c0_i32_1 = arith.constant 0 : i32
    return %arg0, %c0_i32, %c0_i32_0 : i32, i32, i32
  }
  func.func @transform_6(%arg0: i32) -> (i32, i32, i32) {
    %c0_i32 = arith.constant 0 : i32
    %c0_i32_0 = arith.constant 0 : i32
    %c0_i32_1 = arith.constant 0 : i32
    return %arg0, %c0_i32, %c0_i32_0 : i32, i32, i32
  }
}

</mosaic_0001>

<llo_original>
// kernel: tpu_custom_call.1
$region0: #{tpu_custom_call.1}
  #allocation0 [shape = 'u32[]', space=smem, size = 0x4, offset = 0x4, fixed_abs, tag = 'smem constant byte address 0x4 - core index']
  #allocation1 [shape = 'u32[144,128]{1,0:T(1,128)}', space=vmem, size = 0x12000, scoped, tag = 'internal scratch']
  %s0 = inlined_call_operand.hbm [shape: f32[16,128], index: 0, kind: input, shape index: {}]
  %s1 = inlined_call_operand.hbm [shape: f32[8,128], index: 1, kind: input, shape index: {}]
  %s2 = inlined_call_operand.hbm [shape: f32[16,128], index: 2, kind: output, shape index: {}]
  %s3 = sld [smem:[#allocation0]]
  $region49: #{tpu_custom_call.1} parent=0
    _
  %s5 = ssub.s32 1, %s3
  %s6 = scalar_select 0, %s5, %s3
  $region1: #{tpu_custom_call.1} parent=0
    #allocation2 [shape = 'u8[8192]{0}', space=vmem, size = 0x2000, scoped, tag = 'input window, operand 0']
    #allocation3 [shape = 's32[2]{0}', space=sflag, size = 0x8, scoped, tag = 'scoped memory for tpu_custom_call.1']
    #allocation4 [shape = 's32[2]{0}', space=sflag, size = 0x8, scoped, tag = 'scoped memory for tpu_custom_call.1']
    #allocation5 [shape = 'u8[4096]{0}', space=vmem, size = 0x1000, scoped, tag = 'input window, operand 1, single buffered']
    #allocation6 [shape = 's32[1]{0}', space=sflag, size = 0x4, scoped, tag = 'scoped memory for tpu_custom_call.1']
    #allocation7 [shape = 'u8[8192]{0}', space=vmem, size = 0x2000, scoped, tag = 'output window, operand 0']
    %7 = vsyncpa [#allocation3], 0
    %s8 = scalar_lea.sflag [#allocation3], 1
    %9 = vsyncpa %s8, 0
    %10 = vsyncpa [#allocation6], 0
    %11 = vsyncpa [#allocation4], 0
    %s12 = scalar_lea.sflag [#allocation4], 1
    %13 = vsyncpa %s12, 0
    loop: start=0, step=1, limit=4
    $region2: #{tpu_custom_call.1} parent=1 // loop_pre_header
      _
    $region3: #{tpu_custom_call.1} parent=1 // loop_header
      %s15 = sphi 0, %s19
      %p16 = scmp.ge.s32.totalorder %s15, 4
      %s25 = sphi 0, %s27
      %s28 = sphi 0, %s25
      %s29 = sphi 0, %s28
      %s45 = sphi 0, %s29
      %s49 = sphi 0, %s49
      %s51 = sphi 0, %s49
      %s52 = sphi 0, %s51
      %s66 = sphi 0, %s52
      %s72 = sphi 0, %s74
      %s75 = sphi 0, %s72
      %s76 = sphi 0, %s75
      %s92 = sphi 0, %s76
    $region4: #{tpu_custom_call.1} parent=1 // loop_header_branch
      %18 = sbr.rel (%p16) target = $region8
    $region5: #{tpu_custom_call.1} parent=1 // loop_body
      %s20 = ssub.s32 %s15, 1
      %s21 = ssub.s32 %s15, 2
      %s22 = sadd.s32 %s15, 1
      %s23 = ssub.s32 %s15, %s22
      %p24 = scmp.eq.s32.totalorder %s23, 0
      %s26 = sadd.s32 %s25, 1
      %s27 = scalar_select %p24, %s25, %s26
      %p30 = pneg %p24
      %p31 = scmp.eq.s32.totalorder %s15, 1
      %p32 = por %p30, %p31
      %p33 = scmp.ne.s32.totalorder %s25, %s28
      %p34 = scmp.eq.s32.totalorder %s15, 0
      %p35 = por %p33, %p34
      %p36 = scmp.ne.s32.totalorder %s25, %s28
      %p37 = scmp.eq.s32.totalorder %s20, 1
      %p38 = por %p36, %p37
      %p39 = scmp.ne.s32.totalorder %s28, %s29
      %p40 = scmp.eq.s32.totalorder %s20, 0
      %p41 = por %p39, %p40
      %p42 = scmp.ne.s32.totalorder %s28, %s29
      %p43 = scmp.eq.s32.totalorder %s21, 1
      %p44 = por %p42, %p43
      %p46 = scmp.ne.s32.totalorder %s29, %s45
      %p47 = scmp.eq.s32.totalorder %s21, 0
      %p48 = por %p46, %p47
      %s50 = sadd.s32 %s49, 1
      %p53 = scmp.eq.s32.totalorder %s15, 1
      %p54 = scmp.ne.s32.totalorder %s49, %s51
      %p55 = scmp.eq.s32.totalorder %s15, 0
      %p56 = por %p54, %p55
      %p57 = scmp.ne.s32.totalorder %s49, %s51
      %p58 = scmp.eq.s32.totalorder %s20, 1
      %p59 = por %p57, %p58
      %p60 = scmp.ne.s32.totalorder %s51, %s52
      %p61 = scmp.eq.s32.totalorder %s20, 0
      %p62 = por %p60, %p61
      %p63 = scmp.ne.s32.totalorder %s51, %s52
      %p64 = scmp.eq.s32.totalorder %s21, 1
      %p65 = por %p63, %p64
      %p67 = scmp.ne.s32.totalorder %s52, %s66
      %p68 = scmp.eq.s32.totalorder %s21, 0
      %p69 = por %p67, %p68
      %s70 = ssub.s32 %s15, %s22
      %p71 = scmp.eq.s32.totalorder %s70, 0
      %s73 = sadd.s32 %s72, 1
      %s74 = scalar_select %p71, %s72, %s73
      %p77 = pneg %p71
      %p78 = scmp.eq.s32.totalorder %s15, 1
      %p79 = por %p77, %p78
      %p80 = scmp.ne.s32.totalorder %s72, %s75
      %p81 = scmp.eq.s32.totalorder %s15, 0
      %p82 = por %p80, %p81
      %p83 = scmp.ne.s32.totalorder %s72, %s75
      %p84 = scmp.eq.s32.totalorder %s20, 1
      %p85 = por %p83, %p84
      %p86 = scmp.ne.s32.totalorder %s75, %s76
      %p87 = scmp.eq.s32.totalorder %s20, 0
      %p88 = por %p86, %p87
      %p89 = scmp.ne.s32.totalorder %s75, %s76
      %p90 = scmp.eq.s32.totalorder %s21, 1
      %p91 = por %p89, %p90
      %p93 = scmp.ne.s32.totalorder %s76, %s92
      %p94 = scmp.eq.s32.totalorder %s21, 0
      %p95 = por %p93, %p94
      %p96 = scmp.le.s32.totalorder 1, %s15
      %p97 = scmp.lt.s32.totalorder %s15, 3
      %p98 = pnand %p96, %p97
      %p99 = pneg %p98
      // Predicated region
      $region9: #{tpu_custom_call.1} parent=5 // pred_check
        _
      $region10: #{tpu_custom_call.1} parent=5 // pred_check_branch
        %101 = sbr.rel (%p98) target = $region12
      $region11: #{tpu_custom_call.1} parent=5 // pred_region
        %s102 = ssub.s32 %s15, 1
        // Predicated region
        $region13: #{tpu_custom_call.1} parent=11 // pred_check
          %p103 = pneg %p62
        $region14: #{tpu_custom_call.1} parent=11 // pred_check_branch
          %105 = sbr.rel (%p103) target = $region16
        $region15: #{tpu_custom_call.1} parent=11 // pred_region
          %s107 = ssub.s32 128, 128
          %108 = vsyncadd [#allocation6], %s107
          %s110 = sshll.u32 [#allocation5], 4
          %s111 = int_to_ptr.vmem [resolvable:$true] %s110
          %113 = dma.hbm_to_vmem [thread:$0]  %s1, 128, %s111, [#allocation6]
        $region16: #{tpu_custom_call.1} parent=11 // pred_fallthru
          _
      $region12: #{tpu_custom_call.1} parent=5 // pred_fallthru
        _
      %p114 = scmp.lt.s32.totalorder %s15, 2
      // Predicated region
      $region17: #{tpu_custom_call.1} parent=5 // pred_check
        %p115 = pneg %p114
      $region18: #{tpu_custom_call.1} parent=5 // pred_check_branch
        %117 = sbr.rel (%p115) target = $region20
      $region19: #{tpu_custom_call.1} parent=5 // pred_region
        // Predicated region
        $region21: #{tpu_custom_call.1} parent=19 // pred_check
          %p118 = pneg %p35
        $region22: #{tpu_custom_call.1} parent=19 // pred_check_branch
          %120 = sbr.rel (%p118) target = $region24
        $region23: #{tpu_custom_call.1} parent=19 // pred_region
          %s121 = sand.u32 %s25, 1
          %s122 = scalar_lea.sflag [#allocation3], %s121
          %s123 = sand.u32 %s25, 1
          %s124 = smul.addr %s123, 8
          %s125 = scalar_lea.vmem [#allocation2], %s124
          %s127 = ssub.s32 128, 128
          %128 = vsyncadd %s122, %s127
          %s129 = smul.addr %s15, 128
          %s130 = scalar_lea.hbm %s0, %s129
          %s132 = sshll.u32 %s125, 4
          %s133 = int_to_ptr.vmem [resolvable:$true] %s132
          %135 = dma.hbm_to_vmem [thread:$0]  %s130, 128, %s133, %s122
        $region24: #{tpu_custom_call.1} parent=19 // pred_fallthru
          _
      $region20: #{tpu_custom_call.1} parent=5 // pred_fallthru
        _
      %p136 = scmp.le.s32.totalorder 1, %s15
      %p137 = scmp.lt.s32.totalorder %s15, 3
      %p138 = pnand %p136, %p137
      %p139 = pneg %p138
      // Predicated region
      $region25: #{tpu_custom_call.1} parent=5 // pred_check
        _
      $region26: #{tpu_custom_call.1} parent=5 // pred_check_branch
        %141 = sbr.rel (%p138) target = $region28
      $region27: #{tpu_custom_call.1} parent=5 // pred_region
        %s142 = ssub.s32 %s15, 1
        %s143 = sand.u32 %s28, 1
        %s144 = scalar_lea.sflag [#allocation3], %s143
        %s145 = sand.u32 %s28, 1
        %s146 = smul.addr %s145, 8
        %s147 = scalar_lea.vmem [#allocation2], %s146
        // Predicated region
        $region29: #{tpu_custom_call.1} parent=27 // pred_check
          %p148 = pneg %p41
        $region30: #{tpu_custom_call.1} parent=27 // pred_check_branch
          %150 = sbr.rel (%p148) target = $region32
        $region31: #{tpu_custom_call.1} parent=27 // pred_region
          %151 = dma.done %s144, 128
        $region32: #{tpu_custom_call.1} parent=27 // pred_fallthru
          _
        // Predicated region
        $region33: #{tpu_custom_call.1} parent=27 // pred_check
          %p152 = pneg %p62
        $region34: #{tpu_custom_call.1} parent=27 // pred_check_branch
          %154 = sbr.rel (%p152) target = $region36
        $region35: #{tpu_custom_call.1} parent=27 // pred_region
          %155 = dma.done [#allocation6], 128
        $region36: #{tpu_custom_call.1} parent=27 // pred_fallthru
          _
        %s156 = sand.u32 %s28, 1
        %s157 = scalar_lea.sflag [#allocation3], %s156
        %s158 = sand.u32 %s28, 1
        %s159 = smul.addr %s158, 8
        %s160 = scalar_lea.vmem [#allocation2], %s159
        %p161 = pneg %p41
        %p162 = pneg %p38
        %p163 = pneg %p62
        %p164 = pneg %p59
        %p165 = pneg %p88
        %p166 = pneg %p85
        %s167 = sand.u32 %s75, 1
        %s168 = scalar_lea.sflag [#allocation4], %s167
        %s169 = sand.u32 %s75, 1
        %s170 = smul.addr %s169, 8
        %s171 = scalar_lea.vmem [#allocation7], %s170
        %v172 = vld [vmem:[%s147] sm:$0xff]
        %v173 = vld [vmem:[#allocation5] sm:$0xff]
        %v174 = vadd.f32 %v172, %v173
        %175 = vst [vmem:[%s171] sm:$0xff] %v174
        %s176 = sand.u32 %s75, 1
        %s177 = scalar_lea.sflag [#allocation4], %s176
        %s178 = sand.u32 %s75, 1
        %s179 = smul.addr %s178, 8
        %s180 = scalar_lea.vmem [#allocation7], %s179
        // Predicated region
        $region37: #{tpu_custom_call.1} parent=27 // pred_check
          %p181 = pneg %p85
        $region38: #{tpu_custom_call.1} parent=27 // pred_check_branch
          %183 = sbr.rel (%p181) target = $region40
        $region39: #{tpu_custom_call.1} parent=27 // pred_region
          %s185 = ssub.s32 128, 128
          %186 = vsyncadd %s177, %s185
          %s187 = smul.addr %s20, 128
          %s188 = scalar_lea.hbm %s2, %s187
          %s190 = sshll.u32 %s180, 4
          %s191 = int_to_ptr.vmem [resolvable:$true] %s190
          %193 = dma.vmem_to_hbm [thread:$0]  %s191, 128, %s188, %s177
        $region40: #{tpu_custom_call.1} parent=27 // pred_fallthru
          _
      $region28: #{tpu_custom_call.1} parent=5 // pred_fallthru
        _
      %p194 = scmp.le.s32.totalorder 2, %s15
      // Predicated region
      $region41: #{tpu_custom_call.1} parent=5 // pred_check
        %p195 = pneg %p194
      $region42: #{tpu_custom_call.1} parent=5 // pred_check_branch
        %197 = sbr.rel (%p195) target = $region44
      $region43: #{tpu_custom_call.1} parent=5 // pred_region
        %s198 = ssub.s32 %s15, 2
        // Predicated region
        $region45: #{tpu_custom_call.1} parent=43 // pred_check
          %p199 = pneg %p91
        $region46: #{tpu_custom_call.1} parent=43 // pred_check_branch
          %201 = sbr.rel (%p199) target = $region48
        $region47: #{tpu_custom_call.1} parent=43 // pred_region
          %s202 = sand.u32 %s76, 1
          %s203 = scalar_lea.sflag [#allocation4], %s202
          %s204 = sand.u32 %s76, 1
          %s205 = smul.addr %s204, 8
          %s206 = scalar_lea.vmem [#allocation7], %s205
          %207 = dma.done %s203, 128
        $region48: #{tpu_custom_call.1} parent=43 // pred_fallthru
          _
      $region44: #{tpu_custom_call.1} parent=5 // pred_fallthru
        _
    $region6: #{tpu_custom_call.1} parent=1 // loop_footer
      %s19 = sadd.s32 1, %s15
    $region7: #{tpu_custom_call.1} parent=1 // loop_footer_branch
      %14 = sbr.rel target = $region3
    $region8: #{tpu_custom_call.1} parent=1 // loop_exit
      _
    %208 = vsyncpa [#allocation3], 1
    %s209 = scalar_lea.sflag [#allocation3], 1
    %210 = vsyncpa %s209, 1
    %211 = vsyncpa [#allocation6], 1
    %212 = vsyncpa [#allocation4], 1
    %s213 = scalar_lea.sflag [#allocation4], 1
    %214 = vsyncpa %s213, 1

// kernel: vilt_forward.6
$region0: #{vilt_forward.6}
  #allocation0 [shape = 'u32[]', space=smem, size = 0x4, offset = 0x4, fixed_abs, tag = 'smem constant byte address 0x4 - core index']
  #allocation1 [shape = 'u32[144,128]{1,0:T(1,128)}', space=vmem, size = 0x12000, scoped, tag = 'internal scratch']
  %s0 = inlined_call_operand.hbm [shape: f32[8,192], index: 0, kind: input, shape index: {}]
  %s1 = inlined_call_operand.hbm [shape: bf16[192,32], index: 1, kind: input, shape index: {}]
  %s2 = inlined_call_operand.hbm [shape: f32[1,32], index: 2, kind: input, shape index: {}]
  %s3 = inlined_call_operand.hbm [shape: f32[8,32], index: 3, kind: output, shape index: {}]
  %s4 = sld [smem:[#allocation0]]
  $region34: #{vilt_forward.6} parent=0
    _
  %s6 = ssub.s32 1, %s4
  %s7 = scalar_select 0, %s6, %s4
  $region1: #{vilt_forward.6} parent=0
    #allocation2 [shape = 'u8[8192]{0}', space=vmem, size = 0x2000, scoped, tag = 'input window, operand 0, single buffered']
    #allocation3 [shape = 's32[1]{0}', space=sflag, size = 0x4, scoped, tag = 'scoped memory for vilt_forward.6']
    #allocation4 [shape = 's32[1]{0}', space=sflag, size = 0x4, scoped, tag = 'scoped memory for vilt_forward.6']
    #allocation5 [shape = 'u8[49152]{0}', space=vmem, size = 0xc000, scoped, tag = 'input window, operand 1, single buffered']
    #allocation6 [shape = 's32[1]{0}', space=sflag, size = 0x4, scoped, tag = 'scoped memory for vilt_forward.6']
    #allocation7 [shape = 'u8[512]{0}', space=vmem, size = 0x400, scoped, tag = 'input window, operand 2, single buffered']
    #allocation8 [shape = 'u8[4096]{0}', space=vmem, size = 0x1000, scoped, tag = 'output window, operand 0, single buffered']
    %8 = vsyncpa [#allocation3], 0
    %9 = vsyncpa [#allocation6], 0
    %10 = vsyncpa [#allocation4], 0
    // Predicated region
    $region2: #{vilt_forward.6} parent=1 // pred_check
      _
    $region3: #{vilt_forward.6} parent=1 // pred_check_branch
      %12 = sbr.rel (0) target = $region5
    $region4: #{vilt_forward.6} parent=1 // pred_region
      %s14 = ssub.s32 256, 256
      %15 = vsyncadd [#allocation3], %s14
      %s17 = sshll.u32 [#allocation2], 4
      %s18 = int_to_ptr.vmem [resolvable:$true] %s17
      %20 = dma.hbm_to_vmem [thread:$0]  %s0, 256, %s18, [#allocation3]
    $region5: #{vilt_forward.6} parent=1 // pred_fallthru
      _
    // Predicated region
    $region6: #{vilt_forward.6} parent=1 // pred_check
      _
    $region7: #{vilt_forward.6} parent=1 // pred_check_branch
      %22 = sbr.rel (0) target = $region9
    $region8: #{vilt_forward.6} parent=1 // pred_region
      %s24 = ssub.s32 1536, 1536
      %25 = vsyncadd [#allocation6], %s24
      %s26 = sshll.u32 [#allocation5], 4
      %s27 = int_to_ptr.vmem [resolvable:$true] %s26
      %32 = dma.hbm_to_vmem [thread:$0]  %s1, 1536, %s27, [#allocation6], 64, 64, 4
    $region9: #{vilt_forward.6} parent=1 // pred_fallthru
      _
    // Predicated region
    $region10: #{vilt_forward.6} parent=1 // pred_check
      _
    $region11: #{vilt_forward.6} parent=1 // pred_check_branch
      %34 = sbr.rel (0) target = $region13
    $region12: #{vilt_forward.6} parent=1 // pred_region
      %s36 = ssub.s32 16, 16
      %37 = vsyncadd [#allocation6], %s36
      %s39 = sshll.u32 [#allocation7], 4
      %s40 = int_to_ptr.vmem [resolvable:$true] %s39
      %42 = dma.hbm_to_vmem [thread:$0]  %s2, 16, %s40, [#allocation6]
    $region13: #{vilt_forward.6} parent=1 // pred_fallthru
      _
    // Predicated region
    $region14: #{vilt_forward.6} parent=1 // pred_check
      _
    $region15: #{vilt_forward.6} parent=1 // pred_check_branch
      %44 = sbr.rel (0) target = $region17
    $region16: #{vilt_forward.6} parent=1 // pred_region
      %45 = dma.done [#allocation3], 256
    $region17: #{vilt_forward.6} parent=1 // pred_fallthru
      _
    // Predicated region
    $region18: #{vilt_forward.6} parent=1 // pred_check
      _
    $region19: #{vilt_forward.6} parent=1 // pred_check_branch
      %47 = sbr.rel (0) target = $region21
    $region20: #{vilt_forward.6} parent=1 // pred_region
      %48 = dma.done [#allocation6], 1536
    $region21: #{vilt_forward.6} parent=1 // pred_fallthru
      _
    // Predicated region
    $region22: #{vilt_forward.6} parent=1 // pred_check
      _
    $region23: #{vilt_forward.6} parent=1 // pred_check_branch
      %50 = sbr.rel (0) target = $region25
    $region24: #{vilt_forward.6} parent=1 // pred_region
      %51 = dma.done [#allocation6], 16
    $region25: #{vilt_forward.6} parent=1 // pred_fallthru
      _
    %v53 = vld [vmem:[#allocation2] sm:$0xff]
    %v54 = vld [vmem:[#allocation2 + $0x8] sm:$0xff]
    %v55 = vpack.c.bf16 %v53, %v53
    %v56 = vpack.c.bf16 %v54, %v54
    %v57 = vld [vmem:[#allocation5] sm:$0xf]
    %v58 = vld [vmem:[#allocation5 + $0x4] sm:$0xf]
    %v59 = vld [vmem:[#allocation5 + $0x8] sm:$0xf]
    %v60 = vld [vmem:[#allocation5 + $0xc] sm:$0xf]
    %v61 = vld [vmem:[#allocation5 + $0x10] sm:$0xf]
    %v62 = vld [vmem:[#allocation5 + $0x14] sm:$0xf]
    %v63 = vld [vmem:[#allocation5 + $0x18] sm:$0xf]
    %v64 = vld [vmem:[#allocation5 + $0x1c] sm:$0xf]
    %v65 = vld [vmem:[#allocation5 + $0x20] sm:$0xf]
    %v66 = vld [vmem:[#allocation5 + $0x24] sm:$0xf]
    %v67 = vld [vmem:[#allocation5 + $0x28] sm:$0xf]
    %v68 = vld [vmem:[#allocation5 + $0x2c] sm:$0xf]
    %v69 = vld [vmem:[#allocation5 + $0x30] sm:$0xf]
    %v70 = vld [vmem:[#allocation5 + $0x34] sm:$0xf]
    %v71 = vld [vmem:[#allocation5 + $0x38] sm:$0xf]
    %v72 = vld [vmem:[#allocation5 + $0x3c] sm:$0xf]
    %v73 = vld [vmem:[#allocation5 + $0x40] sm:$0xf]
    %v74 = vld [vmem:[#allocation5 + $0x44] sm:$0xf]
    %v75 = vld [vmem:[#allocation5 + $0x48] sm:$0xf]
    %v76 = vld [vmem:[#allocation5 + $0x4c] sm:$0xf]
    %v77 = vld [vmem:[#allocation5 + $0x50] sm:$0xf]
    %v78 = vld [vmem:[#allocation5 + $0x54] sm:$0xf]
    %v79 = vld [vmem:[#allocation5 + $0x58] sm:$0xf]
    %v80 = vld [vmem:[#allocation5 + $0x5c] sm:$0xf]
    %v81 = vld [vmem:[#allocation7] sm:$0x1]
    %v83 = vlaneseq
    %v84 = vshrl.u32 %v83, 7
    %v85 = vsub.s32 0, %v84
    %v86 = vrot.slane %v81, %v85
    %v112 = vunpack.c.l.b16 %v57
    %v113 = vunpack.c.l.b16 %v58
    %v114 = vunpack.c.l.b16 %v59
    %v115 = vunpack.c.l.b16 %v60
    %v116 = vunpack.c.l.b16 %v61
    %v117 = vunpack.c.l.b16 %v62
    %v118 = vunpack.c.l.b16 %v63
    %v119 = vunpack.c.l.b16 %v64
    %v120 = vunpack.c.l.b16 %v65
    %v121 = vunpack.c.l.b16 %v66
    %v122 = vunpack.c.l.b16 %v67
    %v123 = vunpack.c.l.b16 %v68
    %v124 = vunpack.c.l.b16 %v69
    %v125 = vunpack.c.l.b16 %v70
    %v126 = vunpack.c.l.b16 %v71
    %v127 = vunpack.c.l.b16 %v72
    %v128 = vunpack.c.l.b16 %v73
    %v129 = vunpack.c.l.b16 %v74
    %v130 = vunpack.c.l.b16 %v75
    %v131 = vunpack.c.l.b16 %v76
    %v132 = vunpack.c.l.b16 %v77
    %v133 = vunpack.c.l.b16 %v78
    %v134 = vunpack.c.l.b16 %v79
    %v135 = vunpack.c.l.b16 %v80
    %v136 = vpack.c.b16 %v113, %v112
    %v137 = vpack.c.b16 %v115, %v114
    %v138 = vpack.c.b16 %v117, %v116
    %v139 = vpack.c.b16 %v119, %v118
    %v140 = vpack.c.b16 %v121, %v120
    %v141 = vpack.c.b16 %v123, %v122
    %v142 = vpack.c.b16 %v125, %v124
    %v143 = vpack.c.b16 %v127, %v126
    %v144 = vpack.c.b16 %v129, %v128
    %v145 = vpack.c.b16 %v131, %v130
    %v146 = vpack.c.b16 %v133, %v132
    %v147 = vpack.c.b16 %v135, %v134
    %vm160 = vcmask 523264
    %v162 = vsel %vm160, %v56, 0
    %164 = vmatprep.subr.bf16.mxu0 0
    %165 = vmatpush1.bf16.msra.mxu0 %v136
    %166 = vmatprep.subr.bf16.mxu0 0
    %167 = vmatpush1.bf16.msra.mxu0 %v137
    %168 = vmatprep.subr.bf16.mxu0 0
    %169 = vmatpush1.bf16.msra.mxu0 %v138
    %170 = vmatprep.subr.bf16.mxu0 0
    %171 = vmatpush1.bf16.msra.mxu0 %v139
    %172 = vmatprep.subr.bf16.mxu0 0
    %173 = vmatpush1.bf16.msra.mxu0 %v140
    %174 = vmatprep.subr.bf16.mxu0 0
    %175 = vmatpush1.bf16.msra.mxu0 %v141
    %176 = vmatprep.subr.bf16.mxu0 0
    %177 = vmatpush1.bf16.msra.mxu0 %v142
    %178 = vmatprep.subr.bf16.mxu0 0
    %179 = vmatpush1.bf16.msra.mxu0 %v143
    %180 = vmatprep.subr.bf16.mxu0 0
    %181 = vmatpush1.bf16.msra.mxu0 %v144
    %182 = vmatprep.subr.bf16.mxu0 0
    %183 = vmatpush1.bf16.msra.mxu0 %v145
    %184 = vmatprep.subr.bf16.mxu0 0
    %185 = vmatpush1.bf16.msra.mxu0 %v146
    %186 = vmatprep.subr.bf16.mxu0 0
    %187 = vmatpush1.bf16.msra.mxu0 %v147
    %188 = vmatprep.subr.bf16.mxu0 0
    %189 = vmatpush1.bf16.msra.mxu0 0
    %190 = vmatprep.subr.bf16.mxu0 0
    %191 = vmatpush1.bf16.msra.mxu0 0
    %192 = vmatprep.subr.bf16.mxu0 0
    %193 = vmatpush1.bf16.msra.mxu0 0
    %194 = vmatprep.subr.bf16.mxu0 0
    %195 = vmatpush1.bf16.msra.mxu0 0
    %196 = vmatprep.mubr.bf16.mxu0 %v162
    %197 = vmatmul.mubr.bf16.gmra.mrb[0].mxu0 %v55
    %v198 = vpop.f32.mrb[0].mxu0
    %v199 = vadd.f32 %v86, %v198
    %v200 = vpop.f32.mrb[0].mxu0
    %v201 = vpop.f32.mrb[0].mxu0
    %v202 = vpop.f32.mrb[0].mxu0
    %203 = vdwg.mxu0
    %vm204 = vcmask 261120
    %205 = vst.msk [vmem:[#allocation8] sm:$0xff] %vm204, %v199
    // Predicated region
    $region26: #{vilt_forward.6} parent=1 // pred_check
      _
    $region27: #{vilt_forward.6} parent=1 // pred_check_branch
      %207 = sbr.rel (0) target = $region29
    $region28: #{vilt_forward.6} parent=1 // pred_region
      %s209 = ssub.s32 128, 128
      %210 = vsyncadd [#allocation4], %s209
      %s212 = sshll.u32 [#allocation8], 4
      %s213 = int_to_ptr.vmem [resolvable:$true] %s212
      %215 = dma.vmem_to_hbm [thread:$0]  %s213, 128, %s3, [#allocation4]
    $region29: #{vilt_forward.6} parent=1 // pred_fallthru
      _
    // Predicated region
    $region30: #{vilt_forward.6} parent=1 // pred_check
      _
    $region31: #{vilt_forward.6} parent=1 // pred_check_branch
      %217 = sbr.rel (0) target = $region33
    $region32: #{vilt_forward.6} parent=1 // pred_region
      %218 = dma.done [#allocation4], 128
    $region33: #{vilt_forward.6} parent=1 // pred_fallthru
      _
    %219 = vsyncpa [#allocation3], 1
    %220 = vsyncpa [#allocation6], 1
    %221 = vsyncpa [#allocation4], 1

// kernel: vilt_forward.5
$region0: #{vilt_forward.5}
  #allocation0 [shape = 'u32[]', space=smem, size = 0x4, offset = 0x4, fixed_abs, tag = 'smem constant byte address 0x4 - core index']
  #allocation1 [shape = 'u32[144,128]{1,0:T(1,128)}', space=vmem, size = 0x12000, scoped, tag = 'internal scratch']
  %s0 = inlined_call_operand.hbm [shape: f32[2,8,32], index: 0, kind: input, shape index: {}]
  %s1 = inlined_call_operand.hbm [shape: f32[8,32], index: 1, kind: input, shape index: {}]
  %s2 = inlined_call_operand.hbm [shape: f32[1,32], index: 2, kind: input, shape index: {}]
  %s3 = inlined_call_operand.hbm [shape: f32[1,32], index: 3, kind: input, shape index: {}]
  %s4 = inlined_call_operand.hbm [shape: f32[2,8,32], index: 4, kind: output, shape index: {}]
  %s5 = sld [smem:[#allocation0]]
  $region65: #{vilt_forward.5} parent=0
    _
  %s7 = ssub.s32 1, %s5
  %s8 = scalar_select 0, %s7, %s5
  $region1: #{vilt_forward.5} parent=0
    #allocation2 [shape = 'u8[8192]{0}', space=vmem, size = 0x2000, scoped, tag = 'input window, operand 0']
    #allocation3 [shape = 's32[2]{0}', space=sflag, size = 0x8, scoped, tag = 'scoped memory for vilt_forward.5']
    #allocation4 [shape = 's32[2]{0}', space=sflag, size = 0x8, scoped, tag = 'scoped memory for vilt_forward.5']
    #allocation5 [shape = 'u8[4096]{0}', space=vmem, size = 0x1000, scoped, tag = 'input window, operand 1, single buffered']
    #allocation6 [shape = 's32[1]{0}', space=sflag, size = 0x4, scoped, tag = 'scoped memory for vilt_forward.5']
    #allocation7 [shape = 'u8[512]{0}', space=vmem, size = 0x400, scoped, tag = 'input window, operand 2, single buffered']
    #allocation8 [shape = 'u8[512]{0}', space=vmem, size = 0x400, scoped, tag = 'input window, operand 3, single buffered']
    #allocation9 [shape = 's32[1]{0}', space=sflag, size = 0x4, scoped, tag = 'scoped memory for vilt_forward.5']
    #allocation10 [shape = 'u8[8192]{0}', space=vmem, size = 0x2000, scoped, tag = 'output window, operand 0']
    %9 = vsyncpa [#allocation3], 0
    %s10 = scalar_lea.sflag [#allocation3], 1
    %11 = vsyncpa %s10, 0
    %12 = vsyncpa [#allocation6], 0
    %13 = vsyncpa [#allocation9], 0
    %14 = vsyncpa [#allocation4], 0
    %s15 = scalar_lea.sflag [#allocation4], 1
    %16 = vsyncpa %s15, 0
    loop: start=0, step=1, limit=4
    $region2: #{vilt_forward.5} parent=1 // loop_pre_header
      _
    $region3: #{vilt_forward.5} parent=1 // loop_header
      %s18 = sphi 0, %s22
      %p19 = scmp.ge.s32.totalorder %s18, 4
      %s28 = sphi 0, %s30
      %s31 = sphi 0, %s28
      %s32 = sphi 0, %s31
      %s48 = sphi 0, %s32
      %s52 = sphi 0, %s52
      %s54 = sphi 0, %s52
      %s55 = sphi 0, %s54
      %s69 = sphi 0, %s55
      %s73 = sphi 0, %s73
      %s75 = sphi 0, %s73
      %s76 = sphi 0, %s75
      %s90 = sphi 0, %s76
      %s94 = sphi 0, %s94
      %s96 = sphi 0, %s94
      %s97 = sphi 0, %s96
      %s111 = sphi 0, %s97
      %s117 = sphi 0, %s119
      %s120 = sphi 0, %s117
      %s121 = sphi 0, %s120
      %s137 = sphi 0, %s121
    $region4: #{vilt_forward.5} parent=1 // loop_header_branch
      %21 = sbr.rel (%p19) target = $region8
    $region5: #{vilt_forward.5} parent=1 // loop_body
      %s23 = ssub.s32 %s18, 1
      %s24 = ssub.s32 %s18, 2
      %s25 = sadd.s32 %s18, 1
      %s26 = ssub.s32 %s18, %s25
      %p27 = scmp.eq.s32.totalorder %s26, 0
      %s29 = sadd.s32 %s28, 1
      %s30 = scalar_select %p27, %s28, %s29
      %p33 = pneg %p27
      %p34 = scmp.eq.s32.totalorder %s18, 1
      %p35 = por %p33, %p34
      %p36 = scmp.ne.s32.totalorder %s28, %s31
      %p37 = scmp.eq.s32.totalorder %s18, 0
      %p38 = por %p36, %p37
      %p39 = scmp.ne.s32.totalorder %s28, %s31
      %p40 = scmp.eq.s32.totalorder %s23, 1
      %p41 = por %p39, %p40
      %p42 = scmp.ne.s32.totalorder %s31, %s32
      %p43 = scmp.eq.s32.totalorder %s23, 0
      %p44 = por %p42, %p43
      %p45 = scmp.ne.s32.totalorder %s31, %s32
      %p46 = scmp.eq.s32.totalorder %s24, 1
      %p47 = por %p45, %p46
      %p49 = scmp.ne.s32.totalorder %s32, %s48
      %p50 = scmp.eq.s32.totalorder %s24, 0
      %p51 = por %p49, %p50
      %s53 = sadd.s32 %s52, 1
      %p56 = scmp.eq.s32.totalorder %s18, 1
      %p57 = scmp.ne.s32.totalorder %s52, %s54
      %p58 = scmp.eq.s32.totalorder %s18, 0
      %p59 = por %p57, %p58
      %p60 = scmp.ne.s32.totalorder %s52, %s54
      %p61 = scmp.eq.s32.totalorder %s23, 1
      %p62 = por %p60, %p61
      %p63 = scmp.ne.s32.totalorder %s54, %s55
      %p64 = scmp.eq.s32.totalorder %s23, 0
      %p65 = por %p63, %p64
      %p66 = scmp.ne.s32.totalorder %s54, %s55
      %p67 = scmp.eq.s32.totalorder %s24, 1
      %p68 = por %p66, %p67
      %p70 = scmp.ne.s32.totalorder %s55, %s69
      %p71 = scmp.eq.s32.totalorder %s24, 0
      %p72 = por %p70, %p71
      %s74 = sadd.s32 %s73, 1
      %p77 = scmp.eq.s32.totalorder %s18, 1
      %p78 = scmp.ne.s32.totalorder %s73, %s75
      %p79 = scmp.eq.s32.totalorder %s18, 0
      %p80 = por %p78, %p79
      %p81 = scmp.ne.s32.totalorder %s73, %s75
      %p82 = scmp.eq.s32.totalorder %s23, 1
      %p83 = por %p81, %p82
      %p84 = scmp.ne.s32.totalorder %s75, %s76
      %p85 = scmp.eq.s32.totalorder %s23, 0
      %p86 = por %p84, %p85
      %p87 = scmp.ne.s32.totalorder %s75, %s76
      %p88 = scmp.eq.s32.totalorder %s24, 1
      %p89 = por %p87, %p88
      %p91 = scmp.ne.s32.totalorder %s76, %s90
      %p92 = scmp.eq.s32.totalorder %s24, 0
      %p93 = por %p91, %p92
      %s95 = sadd.s32 %s94, 1
      %p98 = scmp.eq.s32.totalorder %s18, 1
      %p99 = scmp.ne.s32.totalorder %s94, %s96
      %p100 = scmp.eq.s32.totalorder %s18, 0
      %p101 = por %p99, %p100
      %p102 = scmp.ne.s32.totalorder %s94, %s96
      %p103 = scmp.eq.s32.totalorder %s23, 1
      %p104 = por %p102, %p103
      %p105 = scmp.ne.s32.totalorder %s96, %s97
      %p106 = scmp.eq.s32.totalorder %s23, 0
      %p107 = por %p105, %p106
      %p108 = scmp.ne.s32.totalorder %s96, %s97
      %p109 = scmp.eq.s32.totalorder %s24, 1
      %p110 = por %p108, %p109
      %p112 = scmp.ne.s32.totalorder %s97, %s111
      %p113 = scmp.eq.s32.totalorder %s24, 0
      %p114 = por %p112, %p113
      %s115 = ssub.s32 %s18, %s25
      %p116 = scmp.eq.s32.totalorder %s115, 0
      %s118 = sadd.s32 %s117, 1
      %s119 = scalar_select %p116, %s117, %s118
      %p122 = pneg %p116
      %p123 = scmp.eq.s32.totalorder %s18, 1
      %p124 = por %p122, %p123
      %p125 = scmp.ne.s32.totalorder %s117, %s120
      %p126 = scmp.eq.s32.totalorder %s18, 0
      %p127 = por %p125, %p126
      %p128 = scmp.ne.s32.totalorder %s117, %s120
      %p129 = scmp.eq.s32.totalorder %s23, 1
      %p130 = por %p128, %p129
      %p131 = scmp.ne.s32.totalorder %s120, %s121
      %p132 = scmp.eq.s32.totalorder %s23, 0
      %p133 = por %p131, %p132
      %p134 = scmp.ne.s32.totalorder %s120, %s121
      %p135 = scmp.eq.s32.totalorder %s24, 1
      %p136 = por %p134, %p135
      %p138 = scmp.ne.s32.totalorder %s121, %s137
      %p139 = scmp.eq.s32.totalorder %s24, 0
      %p140 = por %p138, %p139
      %p141 = scmp.le.s32.totalorder 1, %s18
      %p142 = scmp.lt.s32.totalorder %s18, 3
      %p143 = pnand %p141, %p142
      %p144 = pneg %p143
      // Predicated region
      $region9: #{vilt_forward.5} parent=5 // pred_check
        _
      $region10: #{vilt_forward.5} parent=5 // pred_check_branch
        %146 = sbr.rel (%p143) target = $region12
      $region11: #{vilt_forward.5} parent=5 // pred_region
        %s147 = ssub.s32 %s18, 1
        // Predicated region
        $region13: #{vilt_forward.5} parent=11 // pred_check
          %p148 = pneg %p65
        $region14: #{vilt_forward.5} parent=11 // pred_check_branch
          %150 = sbr.rel (%p148) target = $region16
        $region15: #{vilt_forward.5} parent=11 // pred_region
          %s152 = ssub.s32 128, 128
          %153 = vsyncadd [#allocation6], %s152
          %s155 = sshll.u32 [#allocation5], 4
          %s156 = int_to_ptr.vmem [resolvable:$true] %s155
          %158 = dma.hbm_to_vmem [thread:$0]  %s1, 128, %s156, [#allocation6]
        $region16: #{vilt_forward.5} parent=11 // pred_fallthru
          _
        // Predicated region
        $region17: #{vilt_forward.5} parent=11 // pred_check
          %p159 = pneg %p86
        $region18: #{vilt_forward.5} parent=11 // pred_check_branch
          %161 = sbr.rel (%p159) target = $region20
        $region19: #{vilt_forward.5} parent=11 // pred_region
          %s163 = ssub.s32 16, 16
          %164 = vsyncadd [#allocation6], %s163
          %s166 = sshll.u32 [#allocation7], 4
          %s167 = int_to_ptr.vmem [resolvable:$true] %s166
          %169 = dma.hbm_to_vmem [thread:$0]  %s2, 16, %s167, [#allocation6]
        $region20: #{vilt_forward.5} parent=11 // pred_fallthru
          _
        // Predicated region
        $region21: #{vilt_forward.5} parent=11 // pred_check
          %p170 = pneg %p107
        $region22: #{vilt_forward.5} parent=11 // pred_check_branch
          %172 = sbr.rel (%p170) target = $region24
        $region23: #{vilt_forward.5} parent=11 // pred_region
          %s174 = ssub.s32 16, 16
          %175 = vsyncadd [#allocation9], %s174
          %s177 = sshll.u32 [#allocation8], 4
          %s178 = int_to_ptr.vmem [resolvable:$true] %s177
          %180 = dma.hbm_to_vmem [thread:$0]  %s3, 16, %s178, [#allocation9]
        $region24: #{vilt_forward.5} parent=11 // pred_fallthru
          _
      $region12: #{vilt_forward.5} parent=5 // pred_fallthru
        _
      %p181 = scmp.lt.s32.totalorder %s18, 2
      // Predicated region
      $region25: #{vilt_forward.5} parent=5 // pred_check
        %p182 = pneg %p181
      $region26: #{vilt_forward.5} parent=5 // pred_check_branch
        %184 = sbr.rel (%p182) target = $region28
      $region27: #{vilt_forward.5} parent=5 // pred_region
        // Predicated region
        $region29: #{vilt_forward.5} parent=27 // pred_check
          %p185 = pneg %p38
        $region30: #{vilt_forward.5} parent=27 // pred_check_branch
          %187 = sbr.rel (%p185) target = $region32
        $region31: #{vilt_forward.5} parent=27 // pred_region
          %s188 = sand.u32 %s28, 1
          %s189 = scalar_lea.sflag [#allocation3], %s188
          %s190 = sand.u32 %s28, 1
          %s191 = smul.addr %s190, 8
          %s192 = scalar_lea.vmem [#allocation2], %s191
          %s194 = ssub.s32 128, 128
          %195 = vsyncadd %s189, %s194
          %s196 = smul.addr %s18, 128
          %s197 = scalar_lea.hbm %s0, %s196
          %s199 = sshll.u32 %s192, 4
          %s200 = int_to_ptr.vmem [resolvable:$true] %s199
          %202 = dma.hbm_to_vmem [thread:$0]  %s197, 128, %s200, %s189
        $region32: #{vilt_forward.5} parent=27 // pred_fallthru
          _
      $region28: #{vilt_forward.5} parent=5 // pred_fallthru
        _
      %p203 = scmp.le.s32.totalorder 1, %s18
      %p204 = scmp.lt.s32.totalorder %s18, 3
      %p205 = pnand %p203, %p204
      %p206 = pneg %p205
      // Predicated region
      $region33: #{vilt_forward.5} parent=5 // pred_check
        _
      $region34: #{vilt_forward.5} parent=5 // pred_check_branch
        %208 = sbr.rel (%p205) target = $region36
      $region35: #{vilt_forward.5} parent=5 // pred_region
        %s209 = ssub.s32 %s18, 1
        %s210 = sand.u32 %s31, 1
        %s211 = scalar_lea.sflag [#allocation3], %s210
        %s212 = sand.u32 %s31, 1
        %s213 = smul.addr %s212, 8
        %s214 = scalar_lea.vmem [#allocation2], %s213
        // Predicated region
        $region37: #{vilt_forward.5} parent=35 // pred_check
          %p215 = pneg %p44
        $region38: #{vilt_forward.5} parent=35 // pred_check_branch
          %217 = sbr.rel (%p215) target = $region40
        $region39: #{vilt_forward.5} parent=35 // pred_region
          %218 = dma.done %s211, 128
        $region40: #{vilt_forward.5} parent=35 // pred_fallthru
          _
        // Predicated region
        $region41: #{vilt_forward.5} parent=35 // pred_check
          %p219 = pneg %p65
        $region42: #{vilt_forward.5} parent=35 // pred_check_branch
          %221 = sbr.rel (%p219) target = $region44
        $region43: #{vilt_forward.5} parent=35 // pred_region
          %222 = dma.done [#allocation6], 128
        $region44: #{vilt_forward.5} parent=35 // pred_fallthru
          _
        // Predicated region
        $region45: #{vilt_forward.5} parent=35 // pred_check
          %p223 = pneg %p86
        $region46: #{vilt_forward.5} parent=35 // pred_check_branch
          %225 = sbr.rel (%p223) target = $region48
        $region47: #{vilt_forward.5} parent=35 // pred_region
          %226 = dma.done [#allocation6], 16
        $region48: #{vilt_forward.5} parent=35 // pred_fallthru
          _
        // Predicated region
        $region49: #{vilt_forward.5} parent=35 // pred_check
          %p227 = pneg %p107
        $region50: #{vilt_forward.5} parent=35 // pred_check_branch
          %229 = sbr.rel (%p227) target = $region52
        $region51: #{vilt_forward.5} parent=35 // pred_region
          %230 = dma.done [#allocation9], 16
        $region52: #{vilt_forward.5} parent=35 // pred_fallthru
          _
        %s231 = sand.u32 %s31, 1
        %s232 = scalar_lea.sflag [#allocation3], %s231
        %s233 = sand.u32 %s31, 1
        %s234 = smul.addr %s233, 8
        %s235 = scalar_lea.vmem [#allocation2], %s234
        %p236 = pneg %p44
        %p237 = pneg %p41
        %p238 = pneg %p65
        %p239 = pneg %p62
        %p240 = pneg %p86
        %p241 = pneg %p83
        %p242 = pneg %p107
        %p243 = pneg %p104
        %p244 = pneg %p133
        %p245 = pneg %p130
        %s246 = sand.u32 %s120, 1
        %s247 = scalar_lea.sflag [#allocation4], %s246
        %s248 = sand.u32 %s120, 1
        %s249 = smul.addr %s248, 8
        %s250 = scalar_lea.vmem [#allocation10], %s249
        %v251 = vld [vmem:[%s214] sm:$0xff]
        %v252 = vld [vmem:[#allocation5] sm:$0xff]
        %v253 = vadd.f32 %v251, %v252
        %vm254 = vcmask 261120
        %v255 = vsel %vm254, %v253, 0.0
        %256 = vadd.xlane.f32.xlu0 %v255
        %v257 = vpop.xlane.xlu0 %256
        %v258 = vrcp.pop 32.0
        %v259 = vmul.f32 %v257, %v258
        %v260 = vsub.f32 %v253, %v259
        %v261 = vmul.f32 %v260, %v260
        %v262 = vsel %vm254, %v261, 0.0
        %263 = vadd.xlane.f32.xlu0 %v262
        %v264 = vpop.xlane.xlu0 %263
        %v265 = vmul.f32 %v264, %v258
        %v266 = vadd.f32 %v265, 1e-12
        %v267 = vrsqrt.pop %v266
        %v268 = vmul.f32 %v260, %v267
        %v269 = vld [vmem:[#allocation7] sm:$0x1]
        %v271 = vlaneseq
        %v272 = vshrl.u32 %v271, 7
        %v273 = vsub.s32 0, %v272
        %v274 = vrot.slane %v269, %v273
        %v276 = vmul.f32 %v268, %v274
        %v277 = vld [vmem:[#allocation8] sm:$0x1]
        %v279 = vlaneseq
        %v280 = vshrl.u32 %v279, 7
        %v281 = vsub.s32 0, %v280
        %v282 = vrot.slane %v277, %v281
        %v284 = vadd.f32 %v276, %v282
        %285 = vst.msk [vmem:[%s250] sm:$0xff] %vm254, %v284
        %s286 = sand.u32 %s120, 1
        %s287 = scalar_lea.sflag [#allocation4], %s286
        %s288 = sand.u32 %s120, 1
        %s289 = smul.addr %s288, 8
        %s290 = scalar_lea.vmem [#allocation10], %s289
        // Predicated region
        $region53: #{vilt_forward.5} parent=35 // pred_check
          %p291 = pneg %p130
        $region54: #{vilt_forward.5} parent=35 // pred_check_branch
          %293 = sbr.rel (%p291) target = $region56
        $region55: #{vilt_forward.5} parent=35 // pred_region
          %s295 = ssub.s32 128, 128
          %296 = vsyncadd %s287, %s295
          %s297 = smul.addr %s23, 128
          %s298 = scalar_lea.hbm %s4, %s297
          %s300 = sshll.u32 %s290, 4
          %s301 = int_to_ptr.vmem [resolvable:$true] %s300
          %303 = dma.vmem_to_hbm [thread:$0]  %s301, 128, %s298, %s287
        $region56: #{vilt_forward.5} parent=35 // pred_fallthru
          _
      $region36: #{vilt_forward.5} parent=5 // pred_fallthru
        _
      %p304 = scmp.le.s32.totalorder 2, %s18
      // Predicated region
      $region57: #{vilt_forward.5} parent=5 // pred_check
        %p305 = pneg %p304
      $region58: #{vilt_forward.5} parent=5 // pred_check_branch
        %307 = sbr.rel (%p305) target = $region60
      $region59: #{vilt_forward.5} parent=5 // pred_region
        %s308 = ssub.s32 %s18, 2
        // Predicated region
        $region61: #{vilt_forward.5} parent=59 // pred_check
          %p309 = pneg %p136
        $region62: #{vilt_forward.5} parent=59 // pred_check_branch
          %311 = sbr.rel (%p309) target = $region64
        $region63: #{vilt_forward.5} parent=59 // pred_region
          %s312 = sand.u32 %s121, 1
          %s313 = scalar_lea.sflag [#allocation4], %s312
          %s314 = sand.u32 %s121, 1
          %s315 = smul.addr %s314, 8
          %s316 = scalar_lea.vmem [#allocation10], %s315
          %317 = dma.done %s313, 128
        $region64: #{vilt_forward.5} parent=59 // pred_fallthru
          _
      $region60: #{vilt_forward.5} parent=5 // pred_fallthru
        _
    $region6: #{vilt_forward.5} parent=1 // loop_footer
      %s22 = sadd.s32 1, %s18
    $region7: #{vilt_forward.5} parent=1 // loop_footer_branch
      %17 = sbr.rel target = $region3
    $region8: #{vilt_forward.5} parent=1 // loop_exit
      _
    %318 = vsyncpa [#allocation3], 1
    %s319 = scalar_lea.sflag [#allocation3], 1
    %320 = vsyncpa %s319, 1
    %321 = vsyncpa [#allocation6], 1
    %322 = vsyncpa [#allocation9], 1
    %323 = vsyncpa [#allocation4], 1
    %s324 = scalar_lea.sflag [#allocation4], 1
    %325 = vsyncpa %s324, 1

// kernel: vilt_forward.9
$region0: #{vilt_forward.9}
  #allocation0 [shape = 'u32[]', space=smem, size = 0x4, offset = 0x4, fixed_abs, tag = 'smem constant byte address 0x4 - core index']
  #allocation1 [shape = 'u32[144,128]{1,0:T(1,128)}', space=vmem, size = 0x12000, scoped, tag = 'internal scratch']
  %s0 = inlined_call_operand.hbm [shape: f32[2,16,32], index: 0, kind: input, shape index: {}]
  %s1 = inlined_call_operand.hbm [shape: f32[1,32], index: 1, kind: input, shape index: {}]
  %s2 = inlined_call_operand.hbm [shape: f32[1,32], index: 2, kind: input, shape index: {}]
  %s3 = inlined_call_operand.hbm [shape: bf16[32,32], index: 3, kind: input, shape index: {}]
  %s4 = inlined_call_operand.hbm [shape: f32[1,32], index: 4, kind: input, shape index: {}]
  %s5 = inlined_call_operand.hbm [shape: f32[2,16,32], index: 5, kind: output, shape index: {0}]
  %s6 = inlined_call_operand.hbm [shape: f32[2,1,32], index: 6, kind: output, shape index: {1}]
  %7 = xla_tuple %s5, %s6
  %s8 = sld [smem:[#allocation0]]
  $region81: #{vilt_forward.9} parent=0
    _
  %s10 = ssub.s32 1, %s8
  %s11 = scalar_select 0, %s10, %s8
  $region1: #{vilt_forward.9} parent=0
    #allocation2 [shape = 'u8[16384]{0}', space=vmem, size = 0x4000, scoped, tag = 'input window, operand 0']
    #allocation3 [shape = 's32[2]{0}', space=sflag, size = 0x8, scoped, tag = 'scoped memory for vilt_forward.9']
    #allocation4 [shape = 's32[2]{0}', space=sflag, size = 0x8, scoped, tag = 'scoped memory for vilt_forward.9']
    #allocation5 [shape = 'u8[512]{0}', space=vmem, size = 0x400, scoped, tag = 'input window, operand 1, single buffered']
    #allocation6 [shape = 's32[1]{0}', space=sflag, size = 0x4, scoped, tag = 'scoped memory for vilt_forward.9']
    #allocation7 [shape = 'u8[512]{0}', space=vmem, size = 0x400, scoped, tag = 'input window, operand 2, single buffered']
    #allocation8 [shape = 'u8[8192]{0}', space=vmem, size = 0x2000, scoped, tag = 'input window, operand 3, single buffered']
    #allocation9 [shape = 's32[1]{0}', space=sflag, size = 0x4, scoped, tag = 'scoped memory for vilt_forward.9']
    #allocation10 [shape = 'u8[512]{0}', space=vmem, size = 0x400, scoped, tag = 'input window, operand 4, single buffered']
    #allocation11 [shape = 'u8[16384]{0}', space=vmem, size = 0x4000, scoped, tag = 'output window, operand 0']
    #allocation12 [shape = 'u8[1024]{0}', space=vmem, size = 0x400, scoped, tag = 'output window, operand 1']
    #allocation13 [shape = 's32[2]{0}', space=sflag, size = 0x8, scoped, tag = 'scoped memory for vilt_forward.9']
    %12 = vsyncpa [#allocation3], 0
    %s13 = scalar_lea.sflag [#allocation3], 1
    %14 = vsyncpa %s13, 0
    %15 = vsyncpa [#allocation6], 0
    %16 = vsyncpa [#allocation9], 0
    %17 = vsyncpa [#allocation4], 0
    %s18 = scalar_lea.sflag [#allocation4], 1
    %19 = vsyncpa %s18, 0
    %20 = vsyncpa [#allocation13], 0
    %s21 = scalar_lea.sflag [#allocation13], 1
    %22 = vsyncpa %s21, 0
    loop: start=0, step=1, limit=4
    $region2: #{vilt_forward.9} parent=1 // loop_pre_header
      _
    $region3: #{vilt_forward.9} parent=1 // loop_header
      %s24 = sphi 0, %s28
      %p25 = scmp.ge.s32.totalorder %s24, 4
      %s34 = sphi 0, %s36
      %s37 = sphi 0, %s34
      %s38 = sphi 0, %s37
      %s54 = sphi 0, %s38
      %s58 = sphi 0, %s58
      %s60 = sphi 0, %s58
      %s61 = sphi 0, %s60
      %s75 = sphi 0, %s61
      %s79 = sphi 0, %s79
      %s81 = sphi 0, %s79
      %s82 = sphi 0, %s81
      %s96 = sphi 0, %s82
      %s100 = sphi 0, %s100
      %s102 = sphi 0, %s100
      %s103 = sphi 0, %s102
      %s117 = sphi 0, %s103
      %s121 = sphi 0, %s121
      %s123 = sphi 0, %s121
      %s124 = sphi 0, %s123
      %s138 = sphi 0, %s124
      %s144 = sphi 0, %s146
      %s147 = sphi 0, %s144
      %s148 = sphi 0, %s147
      %s164 = sphi 0, %s148
      %s170 = sphi 0, %s172
      %s173 = sphi 0, %s170
      %s174 = sphi 0, %s173
      %s190 = sphi 0, %s174
    $region4: #{vilt_forward.9} parent=1 // loop_header_branch
      %27 = sbr.rel (%p25) target = $region8
    $region5: #{vilt_forward.9} parent=1 // loop_body
      %s29 = ssub.s32 %s24, 1
      %s30 = ssub.s32 %s24, 2
      %s31 = sadd.s32 %s24, 1
      %s32 = ssub.s32 %s24, %s31
      %p33 = scmp.eq.s32.totalorder %s32, 0
      %s35 = sadd.s32 %s34, 1
      %s36 = scalar_select %p33, %s34, %s35
      %p39 = pneg %p33
      %p40 = scmp.eq.s32.totalorder %s24, 1
      %p41 = por %p39, %p40
      %p42 = scmp.ne.s32.totalorder %s34, %s37
      %p43 = scmp.eq.s32.totalorder %s24, 0
      %p44 = por %p42, %p43
      %p45 = scmp.ne.s32.totalorder %s34, %s37
      %p46 = scmp.eq.s32.totalorder %s29, 1
      %p47 = por %p45, %p46
      %p48 = scmp.ne.s32.totalorder %s37, %s38
      %p49 = scmp.eq.s32.totalorder %s29, 0
      %p50 = por %p48, %p49
      %p51 = scmp.ne.s32.totalorder %s37, %s38
      %p52 = scmp.eq.s32.totalorder %s30, 1
      %p53 = por %p51, %p52
      %p55 = scmp.ne.s32.totalorder %s38, %s54
      %p56 = scmp.eq.s32.totalorder %s30, 0
      %p57 = por %p55, %p56
      %s59 = sadd.s32 %s58, 1
      %p62 = scmp.eq.s32.totalorder %s24, 1
      %p63 = scmp.ne.s32.totalorder %s58, %s60
      %p64 = scmp.eq.s32.totalorder %s24, 0
      %p65 = por %p63, %p64
      %p66 = scmp.ne.s32.totalorder %s58, %s60
      %p67 = scmp.eq.s32.totalorder %s29, 1
      %p68 = por %p66, %p67
      %p69 = scmp.ne.s32.totalorder %s60, %s61
      %p70 = scmp.eq.s32.totalorder %s29, 0
      %p71 = por %p69, %p70
      %p72 = scmp.ne.s32.totalorder %s60, %s61
      %p73 = scmp.eq.s32.totalorder %s30, 1
      %p74 = por %p72, %p73
      %p76 = scmp.ne.s32.totalorder %s61, %s75
      %p77 = scmp.eq.s32.totalorder %s30, 0
      %p78 = por %p76, %p77
      %s80 = sadd.s32 %s79, 1
      %p83 = scmp.eq.s32.totalorder %s24, 1
      %p84 = scmp.ne.s32.totalorder %s79, %s81
      %p85 = scmp.eq.s32.totalorder %s24, 0
      %p86 = por %p84, %p85
      %p87 = scmp.ne.s32.totalorder %s79, %s81
      %p88 = scmp.eq.s32.totalorder %s29, 1
      %p89 = por %p87, %p88
      %p90 = scmp.ne.s32.totalorder %s81, %s82
      %p91 = scmp.eq.s32.totalorder %s29, 0
      %p92 = por %p90, %p91
      %p93 = scmp.ne.s32.totalorder %s81, %s82
      %p94 = scmp.eq.s32.totalorder %s30, 1
      %p95 = por %p93, %p94
      %p97 = scmp.ne.s32.totalorder %s82, %s96
      %p98 = scmp.eq.s32.totalorder %s30, 0
      %p99 = por %p97, %p98
      %s101 = sadd.s32 %s100, 1
      %p104 = scmp.eq.s32.totalorder %s24, 1
      %p105 = scmp.ne.s32.totalorder %s100, %s102
      %p106 = scmp.eq.s32.totalorder %s24, 0
      %p107 = por %p105, %p106
      %p108 = scmp.ne.s32.totalorder %s100, %s102
      %p109 = scmp.eq.s32.totalorder %s29, 1
      %p110 = por %p108, %p109
      %p111 = scmp.ne.s32.totalorder %s102, %s103
      %p112 = scmp.eq.s32.totalorder %s29, 0
      %p113 = por %p111, %p112
      %p114 = scmp.ne.s32.totalorder %s102, %s103
      %p115 = scmp.eq.s32.totalorder %s30, 1
      %p116 = por %p114, %p115
      %p118 = scmp.ne.s32.totalorder %s103, %s117
      %p119 = scmp.eq.s32.totalorder %s30, 0
      %p120 = por %p118, %p119
      %s122 = sadd.s32 %s121, 1
      %p125 = scmp.eq.s32.totalorder %s24, 1
      %p126 = scmp.ne.s32.totalorder %s121, %s123
      %p127 = scmp.eq.s32.totalorder %s24, 0
      %p128 = por %p126, %p127
      %p129 = scmp.ne.s32.totalorder %s121, %s123
      %p130 = scmp.eq.s32.totalorder %s29, 1
      %p131 = por %p129, %p130
      %p132 = scmp.ne.s32.totalorder %s123, %s124
      %p133 = scmp.eq.s32.totalorder %s29, 0
      %p134 = por %p132, %p133
      %p135 = scmp.ne.s32.totalorder %s123, %s124
      %p136 = scmp.eq.s32.totalorder %s30, 1
      %p137 = por %p135, %p136
      %p139 = scmp.ne.s32.totalorder %s124, %s138
      %p140 = scmp.eq.s32.totalorder %s30, 0
      %p141 = por %p139, %p140
      %s142 = ssub.s32 %s24, %s31
      %p143 = scmp.eq.s32.totalorder %s142, 0
      %s145 = sadd.s32 %s144, 1
      %s146 = scalar_select %p143, %s144, %s145
      %p149 = pneg %p143
      %p150 = scmp.eq.s32.totalorder %s24, 1
      %p151 = por %p149, %p150
      %p152 = scmp.ne.s32.totalorder %s144, %s147
      %p153 = scmp.eq.s32.totalorder %s24, 0
      %p154 = por %p152, %p153
      %p155 = scmp.ne.s32.totalorder %s144, %s147
      %p156 = scmp.eq.s32.totalorder %s29, 1
      %p157 = por %p155, %p156
      %p158 = scmp.ne.s32.totalorder %s147, %s148
      %p159 = scmp.eq.s32.totalorder %s29, 0
      %p160 = por %p158, %p159
      %p161 = scmp.ne.s32.totalorder %s147, %s148
      %p162 = scmp.eq.s32.totalorder %s30, 1
      %p163 = por %p161, %p162
      %p165 = scmp.ne.s32.totalorder %s148, %s164
      %p166 = scmp.eq.s32.totalorder %s30, 0
      %p167 = por %p165, %p166
      %s168 = ssub.s32 %s24, %s31
      %p169 = scmp.eq.s32.totalorder %s168, 0
      %s171 = sadd.s32 %s170, 1
      %s172 = scalar_select %p169, %s170, %s171
      %p175 = pneg %p169
      %p176 = scmp.eq.s32.totalorder %s24, 1
      %p177 = por %p175, %p176
      %p178 = scmp.ne.s32.totalorder %s170, %s173
      %p179 = scmp.eq.s32.totalorder %s24, 0
      %p180 = por %p178, %p179
      %p181 = scmp.ne.s32.totalorder %s170, %s173
      %p182 = scmp.eq.s32.totalorder %s29, 1
      %p183 = por %p181, %p182
      %p184 = scmp.ne.s32.totalorder %s173, %s174
      %p185 = scmp.eq.s32.totalorder %s29, 0
      %p186 = por %p184, %p185
      %p187 = scmp.ne.s32.totalorder %s173, %s174
      %p188 = scmp.eq.s32.totalorder %s30, 1
      %p189 = por %p187, %p188
      %p191 = scmp.ne.s32.totalorder %s174, %s190
      %p192 = scmp.eq.s32.totalorder %s30, 0
      %p193 = por %p191, %p192
      %p194 = scmp.le.s32.totalorder 1, %s24
      %p195 = scmp.lt.s32.totalorder %s24, 3
      %p196 = pnand %p194, %p195
      %p197 = pneg %p196
      // Predicated region
      $region9: #{vilt_forward.9} parent=5 // pred_check
        _
      $region10: #{vilt_forward.9} parent=5 // pred_check_branch
        %199 = sbr.rel (%p196) target = $region12
      $region11: #{vilt_forward.9} parent=5 // pred_region
        %s200 = ssub.s32 %s24, 1
        // Predicated region
        $region13: #{vilt_forward.9} parent=11 // pred_check
          %p201 = pneg %p71
        $region14: #{vilt_forward.9} parent=11 // pred_check_branch
          %203 = sbr.rel (%p201) target = $region16
        $region15: #{vilt_forward.9} parent=11 // pred_region
          %s205 = ssub.s32 16, 16
          %206 = vsyncadd [#allocation6], %s205
          %s208 = sshll.u32 [#allocation5], 4
          %s209 = int_to_ptr.vmem [resolvable:$true] %s208
          %211 = dma.hbm_to_vmem [thread:$0]  %s1, 16, %s209, [#allocation6]
        $region16: #{vilt_forward.9} parent=11 // pred_fallthru
          _
        // Predicated region
        $region17: #{vilt_forward.9} parent=11 // pred_check
          %p212 = pneg %p92
        $region18: #{vilt_forward.9} parent=11 // pred_check_branch
          %214 = sbr.rel (%p212) target = $region20
        $region19: #{vilt_forward.9} parent=11 // pred_region
          %s216 = ssub.s32 16, 16
          %217 = vsyncadd [#allocation6], %s216
          %s219 = sshll.u32 [#allocation7], 4
          %s220 = int_to_ptr.vmem [resolvable:$true] %s219
          %222 = dma.hbm_to_vmem [thread:$0]  %s2, 16, %s220, [#allocation6]
        $region20: #{vilt_forward.9} parent=11 // pred_fallthru
          _
        // Predicated region
        $region21: #{vilt_forward.9} parent=11 // pred_check
          %p223 = pneg %p113
        $region22: #{vilt_forward.9} parent=11 // pred_check_branch
          %225 = sbr.rel (%p223) target = $region24
        $region23: #{vilt_forward.9} parent=11 // pred_region
          %s227 = ssub.s32 256, 256
          %228 = vsyncadd [#allocation9], %s227
          %s229 = sshll.u32 [#allocation8], 4
          %s230 = int_to_ptr.vmem [resolvable:$true] %s229
          %235 = dma.hbm_to_vmem [thread:$0]  %s3, 256, %s230, [#allocation9], 64, 64, 4
        $region24: #{vilt_forward.9} parent=11 // pred_fallthru
          _
        // Predicated region
        $region25: #{vilt_forward.9} parent=11 // pred_check
          %p236 = pneg %p134
        $region26: #{vilt_forward.9} parent=11 // pred_check_branch
          %238 = sbr.rel (%p236) target = $region28
        $region27: #{vilt_forward.9} parent=11 // pred_region
          %s240 = ssub.s32 16, 16
          %241 = vsyncadd [#allocation9], %s240
          %s243 = sshll.u32 [#allocation10], 4
          %s244 = int_to_ptr.vmem [resolvable:$true] %s243
          %246 = dma.hbm_to_vmem [thread:$0]  %s4, 16, %s244, [#allocation9]
        $region28: #{vilt_forward.9} parent=11 // pred_fallthru
          _
      $region12: #{vilt_forward.9} parent=5 // pred_fallthru
        _
      %p247 = scmp.lt.s32.totalorder %s24, 2
      // Predicated region
      $region29: #{vilt_forward.9} parent=5 // pred_check
        %p248 = pneg %p247
      $region30: #{vilt_forward.9} parent=5 // pred_check_branch
        %250 = sbr.rel (%p248) target = $region32
      $region31: #{vilt_forward.9} parent=5 // pred_region
        // Predicated region
        $region33: #{vilt_forward.9} parent=31 // pred_check
          %p251 = pneg %p44
        $region34: #{vilt_forward.9} parent=31 // pred_check_branch
          %253 = sbr.rel (%p251) target = $region36
        $region35: #{vilt_forward.9} parent=31 // pred_region
          %s254 = sand.u32 %s34, 1
          %s255 = scalar_lea.sflag [#allocation3], %s254
          %s256 = sand.u32 %s34, 1
          %s257 = smul.addr %s256, 16
          %s258 = scalar_lea.vmem [#allocation2], %s257
          %s260 = ssub.s32 256, 256
          %261 = vsyncadd %s255, %s260
          %s262 = smul.addr %s24, 2
          %s263 = smul.addr %s262, 128
          %s264 = scalar_lea.hbm %s0, %s263
          %s265 = sshll.u32 %s258, 4
          %s266 = int_to_ptr.vmem [resolvable:$true] %s265
          %271 = dma.hbm_to_vmem [thread:$0]  %s264, 256, %s266, %s255, 128, 128, 8
        $region36: #{vilt_forward.9} parent=31 // pred_fallthru
          _
      $region32: #{vilt_forward.9} parent=5 // pred_fallthru
        _
      %p272 = scmp.le.s32.totalorder 1, %s24
      %p273 = scmp.lt.s32.totalorder %s24, 3
      %p274 = pnand %p272, %p273
      %p275 = pneg %p274
      // Predicated region
      $region37: #{vilt_forward.9} parent=5 // pred_check
        _
      $region38: #{vilt_forward.9} parent=5 // pred_check_branch
        %277 = sbr.rel (%p274) target = $region40
      $region39: #{vilt_forward.9} parent=5 // pred_region
        %s278 = ssub.s32 %s24, 1
        %s279 = sand.u32 %s37, 1
        %s280 = scalar_lea.sflag [#allocation3], %s279
        %s281 = sand.u32 %s37, 1
        %s282 = smul.addr %s281, 16
        %s283 = scalar_lea.vmem [#allocation2], %s282
        // Predicated region
        $region41: #{vilt_forward.9} parent=39 // pred_check
          %p284 = pneg %p50
        $region42: #{vilt_forward.9} parent=39 // pred_check_branch
          %286 = sbr.rel (%p284) target = $region44
        $region43: #{vilt_forward.9} parent=39 // pred_region
          %287 = dma.done %s280, 256
        $region44: #{vilt_forward.9} parent=39 // pred_fallthru
          _
        // Predicated region
        $region45: #{vilt_forward.9} parent=39 // pred_check
          %p288 = pneg %p71
        $region46: #{vilt_forward.9} parent=39 // pred_check_branch
          %290 = sbr.rel (%p288) target = $region48
        $region47: #{vilt_forward.9} parent=39 // pred_region
          %291 = dma.done [#allocation6], 16
        $region48: #{vilt_forward.9} parent=39 // pred_fallthru
          _
        // Predicated region
        $region49: #{vilt_forward.9} parent=39 // pred_check
          %p292 = pneg %p92
        $region50: #{vilt_forward.9} parent=39 // pred_check_branch
          %294 = sbr.rel (%p292) target = $region52
        $region51: #{vilt_forward.9} parent=39 // pred_region
          %295 = dma.done [#allocation6], 16
        $region52: #{vilt_forward.9} parent=39 // pred_fallthru
          _
        // Predicated region
        $region53: #{vilt_forward.9} parent=39 // pred_check
          %p296 = pneg %p113
        $region54: #{vilt_forward.9} parent=39 // pred_check_branch
          %298 = sbr.rel (%p296) target = $region56
        $region55: #{vilt_forward.9} parent=39 // pred_region
          %299 = dma.done [#allocation9], 256
        $region56: #{vilt_forward.9} parent=39 // pred_fallthru
          _
        // Predicated region
        $region57: #{vilt_forward.9} parent=39 // pred_check
          %p300 = pneg %p134
        $region58: #{vilt_forward.9} parent=39 // pred_check_branch
          %302 = sbr.rel (%p300) target = $region60
        $region59: #{vilt_forward.9} parent=39 // pred_region
          %303 = dma.done [#allocation9], 16
        $region60: #{vilt_forward.9} parent=39 // pred_fallthru
          _
        %s304 = sand.u32 %s37, 1
        %s305 = scalar_lea.sflag [#allocation3], %s304
        %s306 = sand.u32 %s37, 1
        %s307 = smul.addr %s306, 16
        %s308 = scalar_lea.vmem [#allocation2], %s307
        %p309 = pneg %p50
        %p310 = pneg %p47
        %p311 = pneg %p71
        %p312 = pneg %p68
        %p313 = pneg %p92
        %p314 = pneg %p89
        %p315 = pneg %p113
        %p316 = pneg %p110
        %p317 = pneg %p134
        %p318 = pneg %p131
        %p319 = pneg %p160
        %p320 = pneg %p157
        %s321 = sand.u32 %s147, 1
        %s322 = scalar_lea.sflag [#allocation4], %s321
        %s323 = sand.u32 %s147, 1
        %s324 = smul.addr %s323, 16
        %s325 = scalar_lea.vmem [#allocation11], %s324
        %p326 = pneg %p186
        %p327 = pneg %p183
        %s328 = sand.u32 %s173, 1
        %s329 = scalar_lea.sflag [#allocation13], %s328
        %s330 = sand.u32 %s173, 1
        %s331 = scalar_lea.vmem [#allocation12], %s330
        %v333 = vld [vmem:[%s283] sm:$0xff]
        %v334 = vld [vmem:[%s283 + $0x8] sm:$0xff]
        %vm335 = vcmask 261120
        %v336 = vsel %vm335, %v333, 0.0
        %337 = vadd.xlane.f32.xlu0 %v336
        %v338 = vpop.xlane.xlu0 %337
        %v339 = vsel %vm335, %v334, 0.0
        %340 = vadd.xlane.f32.xlu0 %v339
        %v341 = vpop.xlane.xlu0 %340
        %v342 = vrcp.pop 32.0
        %v343 = vmul.f32 %v338, %v342
        %v344 = vmul.f32 %v341, %v342
        %v345 = vsub.f32 %v333, %v343
        %v346 = vsub.f32 %v334, %v344
        %v347 = vmul.f32 %v345, %v345
        %v348 = vmul.f32 %v346, %v346
        %v349 = vsel %vm335, %v347, 0.0
        %350 = vadd.xlane.f32.xlu0 %v349
        %v351 = vpop.xlane.xlu0 %350
        %v352 = vsel %vm335, %v348, 0.0
        %353 = vadd.xlane.f32.xlu0 %v352
        %v354 = vpop.xlane.xlu0 %353
        %v355 = vmul.f32 %v351, %v342
        %v356 = vmul.f32 %v354, %v342
        %v357 = vadd.f32 %v355, 1e-12
        %v358 = vadd.f32 %v356, 1e-12
        %v359 = vrsqrt.pop %v357
        %v360 = vrsqrt.pop %v358
        %v361 = vmul.f32 %v345, %v359
        %v362 = vmul.f32 %v346, %v360
        %v363 = vld [vmem:[#allocation5] sm:$0x1]
        %v365 = vlaneseq
        %v366 = vshrl.u32 %v365, 7
        %v367 = vsub.s32 0, %v366
        %v368 = vrot.slane %v363, %v367
        %v370 = vmul.f32 %v361, %v368
        %v371 = vmul.f32 %v362, %v368
        %v372 = vld [vmem:[#allocation7] sm:$0x1]
        %v374 = vlaneseq
        %v375 = vshrl.u32 %v374, 7
        %v376 = vsub.s32 0, %v375
        %v377 = vrot.slane %v372, %v376
        %v379 = vadd.f32 %v370, %v377
        %v380 = vadd.f32 %v371, %v377
        %381 = vst.msk [vmem:[%s325] sm:$0xff] %vm335, %v379
        %382 = vst.msk [vmem:[%s325 + $0x8] sm:$0xff] %vm335, %v380
        %v383 = vpack.c.bf16 %v379, %v379
        %v384 = vld [vmem:[#allocation8] sm:$0xf]
        %v385 = vld [vmem:[#allocation8 + $0x4] sm:$0xf]
        %v386 = vld [vmem:[#allocation8 + $0x8] sm:$0xf]
        %v387 = vld [vmem:[#allocation8 + $0xc] sm:$0xf]
        %v388 = vld [vmem:[#allocation10] sm:$0x1]
        %v393 = vunpack.c.l.b16 %v384
        %v394 = vunpack.c.l.b16 %v385
        %v395 = vunpack.c.l.b16 %v386
        %v396 = vunpack.c.l.b16 %v387
        %v397 = vpack.c.b16 %v394, %v393
        %v398 = vpack.c.b16 %v396, %v395
        %v402 = vsel %vm335, %v383, 0
        %404 = vmatprep.subr.bf16.mxu0 0
        %405 = vmatpush1.bf16.msra.mxu0 %v397
        %406 = vmatprep.subr.bf16.mxu0 0
        %407 = vmatpush1.bf16.msra.mxu0 %v398
        %408 = vmatprep.subr.bf16.mxu0 0
        %409 = vmatpush1.bf16.msra.mxu0 0
        %410 = vmatprep.subr.bf16.mxu0 0
        %411 = vmatpush1.bf16.msra.mxu0 0
        %412 = vmatprep.subr.bf16.mxu0 0
        %413 = vmatpush1.bf16.msra.mxu0 0
        %414 = vmatprep.subr.bf16.mxu0 0
        %415 = vmatpush1.bf16.msra.mxu0 0
        %416 = vmatprep.subr.bf16.mxu0 0
        %417 = vmatpush1.bf16.msra.mxu0 0
        %418 = vmatprep.subr.bf16.mxu0 0
        %419 = vmatpush1.bf16.msra.mxu0 0
        %420 = vmatprep.subr.bf16.mxu0 0
        %421 = vmatpush1.bf16.msra.mxu0 0
        %422 = vmatprep.subr.bf16.mxu0 0
        %423 = vmatpush1.bf16.msra.mxu0 0
        %424 = vmatprep.subr.bf16.mxu0 0
        %425 = vmatpush1.bf16.msra.mxu0 0
        %426 = vmatprep.subr.bf16.mxu0 0
        %427 = vmatpush1.bf16.msra.mxu0 0
        %428 = vmatprep.subr.bf16.mxu0 0
        %429 = vmatpush1.bf16.msra.mxu0 0
        %430 = vmatprep.subr.bf16.mxu0 0
        %431 = vmatpush1.bf16.msra.mxu0 0
        %432 = vmatprep.subr.bf16.mxu0 0
        %433 = vmatpush1.bf16.msra.mxu0 0
        %434 = vmatprep.subr.bf16.mxu0 0
        %435 = vmatpush1.bf16.msra.mxu0 0
        %436 = vmatprep.mubr.bf16.mxu0 0
        %437 = vmatmul.mubr.bf16.gmra.mrb[0].mxu0 %v402
        %v438 = vpop.f32.mrb[0].mxu0
        %v439 = vadd.f32 %v388, %v438
        %v440 = vpop.f32.mrb[0].mxu0
        %v441 = vpop.f32.mrb[0].mxu0
        %v442 = vpop.f32.mrb[0].mxu0
        %443 = vdwg.mxu0
        %v444 = vtanh.pop %v439
        %vm445 = vcmask 253952
        %446 = vst.msk [vmem:[%s331] sm:$0x1] %vm445, %v444
        %s447 = sand.u32 %s147, 1
        %s448 = scalar_lea.sflag [#allocation4], %s447
        %s449 = sand.u32 %s147, 1
        %s450 = smul.addr %s449, 16
        %s451 = scalar_lea.vmem [#allocation11], %s450
        %s452 = sand.u32 %s173, 1
        %s453 = scalar_lea.sflag [#allocation13], %s452
        %s454 = sand.u32 %s173, 1
        %s455 = scalar_lea.vmem [#allocation12], %s454
        // Predicated region
        $region61: #{vilt_forward.9} parent=39 // pred_check
          %p456 = pneg %p157
        $region62: #{vilt_forward.9} parent=39 // pred_check_branch
          %458 = sbr.rel (%p456) target = $region64
        $region63: #{vilt_forward.9} parent=39 // pred_region
          %s460 = ssub.s32 256, 256
          %461 = vsyncadd %s448, %s460
          %s462 = smul.addr %s29, 2
          %s463 = smul.addr %s462, 128
          %s464 = scalar_lea.hbm %s5, %s463
          %s465 = sshll.u32 %s451, 4
          %s466 = int_to_ptr.vmem [resolvable:$true] %s465
          %471 = dma.vmem_to_hbm [thread:$0]  %s466, 256, %s464, %s448, 128, 128, 8
        $region64: #{vilt_forward.9} parent=39 // pred_fallthru
          _
        // Predicated region
        $region65: #{vilt_forward.9} parent=39 // pred_check
          %p472 = pneg %p183
        $region66: #{vilt_forward.9} parent=39 // pred_check_branch
          %474 = sbr.rel (%p472) target = $region68
        $region67: #{vilt_forward.9} parent=39 // pred_region
          %s476 = ssub.s32 16, 16
          %477 = vsyncadd %s453, %s476
          %s478 = smul.addr %s29, 16
          %s479 = scalar_lea.hbm %s6, %s478
          %s481 = sshll.u32 %s455, 4
          %s482 = int_to_ptr.vmem [resolvable:$true] %s481
          %484 = dma.vmem_to_hbm [thread:$0]  %s482, 16, %s479, %s453
        $region68: #{vilt_forward.9} parent=39 // pred_fallthru
          _
      $region40: #{vilt_forward.9} parent=5 // pred_fallthru
        _
      %p485 = scmp.le.s32.totalorder 2, %s24
      // Predicated region
      $region69: #{vilt_forward.9} parent=5 // pred_check
        %p486 = pneg %p485
      $region70: #{vilt_forward.9} parent=5 // pred_check_branch
        %488 = sbr.rel (%p486) target = $region72
      $region71: #{vilt_forward.9} parent=5 // pred_region
        %s489 = ssub.s32 %s24, 2
        // Predicated region
        $region73: #{vilt_forward.9} parent=71 // pred_check
          %p490 = pneg %p163
        $region74: #{vilt_forward.9} parent=71 // pred_check_branch
          %492 = sbr.rel (%p490) target = $region76
        $region75: #{vilt_forward.9} parent=71 // pred_region
          %s493 = sand.u32 %s148, 1
          %s494 = scalar_lea.sflag [#allocation4], %s493
          %s495 = sand.u32 %s148, 1
          %s496 = smul.addr %s495, 16
          %s497 = scalar_lea.vmem [#allocation11], %s496
          %498 = dma.done %s494, 256
        $region76: #{vilt_forward.9} parent=71 // pred_fallthru
          _
        // Predicated region
        $region77: #{vilt_forward.9} parent=71 // pred_check
          %p499 = pneg %p189
        $region78: #{vilt_forward.9} parent=71 // pred_check_branch
          %501 = sbr.rel (%p499) target = $region80
        $region79: #{vilt_forward.9} parent=71 // pred_region
          %s502 = sand.u32 %s174, 1
          %s503 = scalar_lea.sflag [#allocation13], %s502
          %s504 = sand.u32 %s174, 1
          %s505 = scalar_lea.vmem [#allocation12], %s504
          %506 = dma.done %s503, 16
        $region80: #{vilt_forward.9} parent=71 // pred_fallthru
          _
      $region72: #{vilt_forward.9} parent=5 // pred_fallthru
        _
    $region6: #{vilt_forward.9} parent=1 // loop_footer
      %s28 = sadd.s32 1, %s24
    $region7: #{vilt_forward.9} parent=1 // loop_footer_branch
      %23 = sbr.rel target = $region3
    $region8: #{vilt_forward.9} parent=1 // loop_exit
      _
    %507 = vsyncpa [#allocation3], 1
    %s508 = scalar_lea.sflag [#allocation3], 1
    %509 = vsyncpa %s508, 1
    %510 = vsyncpa [#allocation6], 1
    %511 = vsyncpa [#allocation9], 1
    %512 = vsyncpa [#allocation4], 1
    %s513 = scalar_lea.sflag [#allocation4], 1
    %514 = vsyncpa %s513, 1
    %515 = vsyncpa [#allocation13], 1
    %s516 = scalar_lea.sflag [#allocation13], 1
    %517 = vsyncpa %s516, 1

// kernel: vilt_forward.7
$region0: #{vilt_forward.7}
  #allocation0 [shape = 'u32[]', space=smem, size = 0x4, offset = 0x4, fixed_abs, tag = 'smem constant byte address 0x4 - core index']
  #allocation1 [shape = 'u32[144,128]{1,0:T(1,128)}', space=vmem, size = 0x12000, scoped, tag = 'internal scratch']
  %s0 = inlined_call_operand.hbm [shape: f32[2,16,32], index: 0, kind: input, shape index: {}]
  %s1 = inlined_call_operand.hbm [shape: f32[2,1,16], index: 1, kind: input, shape index: {}]
  %s2 = inlined_call_operand.hbm [shape: f32[1,32], index: 2, kind: input, shape index: {}]
  %s3 = inlined_call_operand.hbm [shape: f32[1,32], index: 3, kind: input, shape index: {}]
  %s4 = inlined_call_operand.hbm [shape: bf16[32,96], index: 4, kind: input, shape index: {}]
  %s5 = inlined_call_operand.hbm [shape: f32[1,96], index: 5, kind: input, shape index: {}]
  %s6 = inlined_call_operand.hbm [shape: bf16[32,32], index: 6, kind: input, shape index: {}]
  %s7 = inlined_call_operand.hbm [shape: f32[1,32], index: 7, kind: input, shape index: {}]
  %s8 = inlined_call_operand.hbm [shape: f32[1,32], index: 8, kind: input, shape index: {}]
  %s9 = inlined_call_operand.hbm [shape: f32[1,32], index: 9, kind: input, shape index: {}]
  %s10 = inlined_call_operand.hbm [shape: bf16[32,128], index: 10, kind: input, shape index: {}]
  %s11 = inlined_call_operand.hbm [shape: f32[1,128], index: 11, kind: input, shape index: {}]
  %s12 = inlined_call_operand.hbm [shape: bf16[128,32], index: 12, kind: input, shape index: {}]
  %s13 = inlined_call_operand.hbm [shape: f32[1,32], index: 13, kind: input, shape index: {}]
  %s14 = inlined_call_operand.hbm [shape: f32[2,16,32], index: 14, kind: output, shape index: {}]
  %s15 = sld [smem:[#allocation0]]
  $region145: #{vilt_forward.7} parent=0
    _
  %s17 = ssub.s32 1, %s15
  %s18 = scalar_select 0, %s17, %s15
  $region1: #{vilt_forward.7} parent=0
    #allocation2 [shape = 'u8[16384]{0}', space=vmem, size = 0x4000, scoped, tag = 'input window, operand 0']
    #allocation3 [shape = 's32[2]{0}', space=sflag, size = 0x8, scoped, tag = 'scoped memory for vilt_forward.7']
    #allocation4 [shape = 's32[2]{0}', space=sflag, size = 0x8, scoped, tag = 'scoped memory for vilt_forward.7']
    #allocation5 [shape = 'u8[1024]{0}', space=vmem, size = 0x400, scoped, tag = 'input window, operand 1']
    #allocation6 [shape = 's32[2]{0}', space=sflag, size = 0x8, scoped, tag = 'scoped memory for vilt_forward.7']
    #allocation7 [shape = 'u8[512]{0}', space=vmem, size = 0x400, scoped, tag = 'input window, operand 2, single buffered']
    #allocation8 [shape = 'u8[512]{0}', space=vmem, size = 0x400, scoped, tag = 'input window, operand 3, single buffered']
    #allocation9 [shape = 's32[1]{0}', space=sflag, size = 0x4, scoped, tag = 'scoped memory for vilt_forward.7']
    #allocation10 [shape = 'u8[8192]{0}', space=vmem, size = 0x2000, scoped, tag = 'input window, operand 4, single buffered']
    #allocation11 [shape = 'u8[512]{0}', space=vmem, size = 0x400, scoped, tag = 'input window, operand 5, single buffered']
    #allocation12 [shape = 's32[1]{0}', space=sflag, size = 0x4, scoped, tag = 'scoped memory for vilt_forward.7']
    #allocation13 [shape = 'u8[8192]{0}', space=vmem, size = 0x2000, scoped, tag = 'input window, operand 6, single buffered']
    #allocation14 [shape = 'u8[512]{0}', space=vmem, size = 0x400, scoped, tag = 'input window, operand 7, single buffered']
    #allocation15 [shape = 's32[1]{0}', space=sflag, size = 0x4, scoped, tag = 'scoped memory for vilt_forward.7']
    #allocation16 [shape = 'u8[512]{0}', space=vmem, size = 0x400, scoped, tag = 'input window, operand 8, single buffered']
    #allocation17 [shape = 'u8[512]{0}', space=vmem, size = 0x400, scoped, tag = 'input window, operand 9, single buffered']
    #allocation18 [shape = 's32[1]{0}', space=sflag, size = 0x4, scoped, tag = 'scoped memory for vilt_forward.7']
    #allocation19 [shape = 'u8[8192]{0}', space=vmem, size = 0x2000, scoped, tag = 'input window, operand 10, single buffered']
    #allocation20 [shape = 'u8[512]{0}', space=vmem, size = 0x400, scoped, tag = 'input window, operand 11, single buffered']
    #allocation21 [shape = 's32[1]{0}', space=sflag, size = 0x4, scoped, tag = 'scoped memory for vilt_forward.7']
    #allocation22 [shape = 'u8[32768]{0}', space=vmem, size = 0x8000, scoped, tag = 'input window, operand 12, single buffered']
    #allocation23 [shape = 'u8[512]{0}', space=vmem, size = 0x400, scoped, tag = 'input window, operand 13, single buffered']
    #allocation24 [shape = 's32[1]{0}', space=sflag, size = 0x4, scoped, tag = 'scoped memory for vilt_forward.7']
    #allocation25 [shape = 'u8[16384]{0}', space=vmem, size = 0x4000, scoped, tag = 'output window, operand 0']
    %19 = vsyncpa [#allocation3], 0
    %s20 = scalar_lea.sflag [#allocation3], 1
    %21 = vsyncpa %s20, 0
    %22 = vsyncpa [#allocation6], 0
    %s23 = scalar_lea.sflag [#allocation6], 1
    %24 = vsyncpa %s23, 0
    %25 = vsyncpa [#allocation9], 0
    %26 = vsyncpa [#allocation12], 0
    %27 = vsyncpa [#allocation15], 0
    %28 = vsyncpa [#allocation18], 0
    %29 = vsyncpa [#allocation21], 0
    %30 = vsyncpa [#allocation24], 0
    %31 = vsyncpa [#allocation4], 0
    %s32 = scalar_lea.sflag [#allocation4], 1
    %33 = vsyncpa %s32, 0
    loop: start=0, step=1, limit=4
    $region2: #{vilt_forward.7} parent=1 // loop_pre_header
      _
    $region3: #{vilt_forward.7} parent=1 // loop_header
      %s35 = sphi 0, %s39
      %p36 = scmp.ge.s32.totalorder %s35, 4
      %s45 = sphi 0, %s47
      %s48 = sphi 0, %s45
      %s49 = sphi 0, %s48
      %s65 = sphi 0, %s49
      %s71 = sphi 0, %s73
      %s74 = sphi 0, %s71
      %s75 = sphi 0, %s74
      %s91 = sphi 0, %s75
      %s95 = sphi 0, %s95
      %s97 = sphi 0, %s95
      %s98 = sphi 0, %s97
      %s112 = sphi 0, %s98
      %s116 = sphi 0, %s116
      %s118 = sphi 0, %s116
      %s119 = sphi 0, %s118
      %s133 = sphi 0, %s119
      %s137 = sphi 0, %s137
      %s139 = sphi 0, %s137
      %s140 = sphi 0, %s139
      %s154 = sphi 0, %s140
      %s158 = sphi 0, %s158
      %s160 = sphi 0, %s158
      %s161 = sphi 0, %s160
      %s175 = sphi 0, %s161
      %s179 = sphi 0, %s179
      %s181 = sphi 0, %s179
      %s182 = sphi 0, %s181
      %s196 = sphi 0, %s182
      %s200 = sphi 0, %s200
      %s202 = sphi 0, %s200
      %s203 = sphi 0, %s202
      %s217 = sphi 0, %s203
      %s221 = sphi 0, %s221
      %s223 = sphi 0, %s221
      %s224 = sphi 0, %s223
      %s238 = sphi 0, %s224
      %s242 = sphi 0, %s242
      %s244 = sphi 0, %s242
      %s245 = sphi 0, %s244
      %s259 = sphi 0, %s245
      %s263 = sphi 0, %s263
      %s265 = sphi 0, %s263
      %s266 = sphi 0, %s265
      %s280 = sphi 0, %s266
      %s284 = sphi 0, %s284
      %s286 = sphi 0, %s284
      %s287 = sphi 0, %s286
      %s301 = sphi 0, %s287
      %s305 = sphi 0, %s305
      %s307 = sphi 0, %s305
      %s308 = sphi 0, %s307
      %s322 = sphi 0, %s308
      %s326 = sphi 0, %s326
      %s328 = sphi 0, %s326
      %s329 = sphi 0, %s328
      %s343 = sphi 0, %s329
      %s349 = sphi 0, %s351
      %s352 = sphi 0, %s349
      %s353 = sphi 0, %s352
      %s369 = sphi 0, %s353
    $region4: #{vilt_forward.7} parent=1 // loop_header_branch
      %38 = sbr.rel (%p36) target = $region8
    $region5: #{vilt_forward.7} parent=1 // loop_body
      %s40 = ssub.s32 %s35, 1
      %s41 = ssub.s32 %s35, 2
      %s42 = sadd.s32 %s35, 1
      %s43 = ssub.s32 %s35, %s42
      %p44 = scmp.eq.s32.totalorder %s43, 0
      %s46 = sadd.s32 %s45, 1
      %s47 = scalar_select %p44, %s45, %s46
      %p50 = pneg %p44
      %p51 = scmp.eq.s32.totalorder %s35, 1
      %p52 = por %p50, %p51
      %p53 = scmp.ne.s32.totalorder %s45, %s48
      %p54 = scmp.eq.s32.totalorder %s35, 0
      %p55 = por %p53, %p54
      %p56 = scmp.ne.s32.totalorder %s45, %s48
      %p57 = scmp.eq.s32.totalorder %s40, 1
      %p58 = por %p56, %p57
      %p59 = scmp.ne.s32.totalorder %s48, %s49
      %p60 = scmp.eq.s32.totalorder %s40, 0
      %p61 = por %p59, %p60
      %p62 = scmp.ne.s32.totalorder %s48, %s49
      %p63 = scmp.eq.s32.totalorder %s41, 1
      %p64 = por %p62, %p63
      %p66 = scmp.ne.s32.totalorder %s49, %s65
      %p67 = scmp.eq.s32.totalorder %s41, 0
      %p68 = por %p66, %p67
      %s69 = ssub.s32 %s35, %s42
      %p70 = scmp.eq.s32.totalorder %s69, 0
      %s72 = sadd.s32 %s71, 1
      %s73 = scalar_select %p70, %s71, %s72
      %p76 = pneg %p70
      %p77 = scmp.eq.s32.totalorder %s35, 1
      %p78 = por %p76, %p77
      %p79 = scmp.ne.s32.totalorder %s71, %s74
      %p80 = scmp.eq.s32.totalorder %s35, 0
      %p81 = por %p79, %p80
      %p82 = scmp.ne.s32.totalorder %s71, %s74
      %p83 = scmp.eq.s32.totalorder %s40, 1
      %p84 = por %p82, %p83
      %p85 = scmp.ne.s32.totalorder %s74, %s75
      %p86 = scmp.eq.s32.totalorder %s40, 0
      %p87 = por %p85, %p86
      %p88 = scmp.ne.s32.totalorder %s74, %s75
      %p89 = scmp.eq.s32.totalorder %s41, 1
      %p90 = por %p88, %p89
      %p92 = scmp.ne.s32.totalorder %s75, %s91
      %p93 = scmp.eq.s32.totalorder %s41, 0
      %p94 = por %p92, %p93
      %s96 = sadd.s32 %s95, 1
      %p99 = scmp.eq.s32.totalorder %s35, 1
      %p100 = scmp.ne.s32.totalorder %s95, %s97
      %p101 = scmp.eq.s32.totalorder %s35, 0
      %p102 = por %p100, %p101
      %p103 = scmp.ne.s32.totalorder %s95, %s97
      %p104 = scmp.eq.s32.totalorder %s40, 1
      %p105 = por %p103, %p104
      %p106 = scmp.ne.s32.totalorder %s97, %s98
      %p107 = scmp.eq.s32.totalorder %s40, 0
      %p108 = por %p106, %p107
      %p109 = scmp.ne.s32.totalorder %s97, %s98
      %p110 = scmp.eq.s32.totalorder %s41, 1
      %p111 = por %p109, %p110
      %p113 = scmp.ne.s32.totalorder %s98, %s112
      %p114 = scmp.eq.s32.totalorder %s41, 0
      %p115 = por %p113, %p114
      %s117 = sadd.s32 %s116, 1
      %p120 = scmp.eq.s32.totalorder %s35, 1
      %p121 = scmp.ne.s32.totalorder %s116, %s118
      %p122 = scmp.eq.s32.totalorder %s35, 0
      %p123 = por %p121, %p122
      %p124 = scmp.ne.s32.totalorder %s116, %s118
      %p125 = scmp.eq.s32.totalorder %s40, 1
      %p126 = por %p124, %p125
      %p127 = scmp.ne.s32.totalorder %s118, %s119
      %p128 = scmp.eq.s32.totalorder %s40, 0
      %p129 = por %p127, %p128
      %p130 = scmp.ne.s32.totalorder %s118, %s119
      %p131 = scmp.eq.s32.totalorder %s41, 1
      %p132 = por %p130, %p131
      %p134 = scmp.ne.s32.totalorder %s119, %s133
      %p135 = scmp.eq.s32.totalorder %s41, 0
      %p136 = por %p134, %p135
      %s138 = sadd.s32 %s137, 1
      %p141 = scmp.eq.s32.totalorder %s35, 1
      %p142 = scmp.ne.s32.totalorder %s137, %s139
      %p143 = scmp.eq.s32.totalorder %s35, 0
      %p144 = por %p142, %p143
      %p145 = scmp.ne.s32.totalorder %s137, %s139
      %p146 = scmp.eq.s32.totalorder %s40, 1
      %p147 = por %p145, %p146
      %p148 = scmp.ne.s32.totalorder %s139, %s140
      %p149 = scmp.eq.s32.totalorder %s40, 0
      %p150 = por %p148, %p149
      %p151 = scmp.ne.s32.totalorder %s139, %s140
      %p152 = scmp.eq.s32.totalorder %s41, 1
      %p153 = por %p151, %p152
      %p155 = scmp.ne.s32.totalorder %s140, %s154
      %p156 = scmp.eq.s32.totalorder %s41, 0
      %p157 = por %p155, %p156
      %s159 = sadd.s32 %s158, 1
      %p162 = scmp.eq.s32.totalorder %s35, 1
      %p163 = scmp.ne.s32.totalorder %s158, %s160
      %p164 = scmp.eq.s32.totalorder %s35, 0
      %p165 = por %p163, %p164
      %p166 = scmp.ne.s32.totalorder %s158, %s160
      %p167 = scmp.eq.s32.totalorder %s40, 1
      %p168 = por %p166, %p167
      %p169 = scmp.ne.s32.totalorder %s160, %s161
      %p170 = scmp.eq.s32.totalorder %s40, 0
      %p171 = por %p169, %p170
      %p172 = scmp.ne.s32.totalorder %s160, %s161
      %p173 = scmp.eq.s32.totalorder %s41, 1
      %p174 = por %p172, %p173
      %p176 = scmp.ne.s32.totalorder %s161, %s175
      %p177 = scmp.eq.s32.totalorder %s41, 0
      %p178 = por %p176, %p177
      %s180 = sadd.s32 %s179, 1
      %p183 = scmp.eq.s32.totalorder %s35, 1
      %p184 = scmp.ne.s32.totalorder %s179, %s181
      %p185 = scmp.eq.s32.totalorder %s35, 0
      %p186 = por %p184, %p185
      %p187 = scmp.ne.s32.totalorder %s179, %s181
      %p188 = scmp.eq.s32.totalorder %s40, 1
      %p189 = por %p187, %p188
      %p190 = scmp.ne.s32.totalorder %s181, %s182
      %p191 = scmp.eq.s32.totalorder %s40, 0
      %p192 = por %p190, %p191
      %p193 = scmp.ne.s32.totalorder %s181, %s182
      %p194 = scmp.eq.s32.totalorder %s41, 1
      %p195 = por %p193, %p194
      %p197 = scmp.ne.s32.totalorder %s182, %s196
      %p198 = scmp.eq.s32.totalorder %s41, 0
      %p199 = por %p197, %p198
      %s201 = sadd.s32 %s200, 1
      %p204 = scmp.eq.s32.totalorder %s35, 1
      %p205 = scmp.ne.s32.totalorder %s200, %s202
      %p206 = scmp.eq.s32.totalorder %s35, 0
      %p207 = por %p205, %p206
      %p208 = scmp.ne.s32.totalorder %s200, %s202
      %p209 = scmp.eq.s32.totalorder %s40, 1
      %p210 = por %p208, %p209
      %p211 = scmp.ne.s32.totalorder %s202, %s203
      %p212 = scmp.eq.s32.totalorder %s40, 0
      %p213 = por %p211, %p212
      %p214 = scmp.ne.s32.totalorder %s202, %s203
      %p215 = scmp.eq.s32.totalorder %s41, 1
      %p216 = por %p214, %p215
      %p218 = scmp.ne.s32.totalorder %s203, %s217
      %p219 = scmp.eq.s32.totalorder %s41, 0
      %p220 = por %p218, %p219
      %s222 = sadd.s32 %s221, 1
      %p225 = scmp.eq.s32.totalorder %s35, 1
      %p226 = scmp.ne.s32.totalorder %s221, %s223
      %p227 = scmp.eq.s32.totalorder %s35, 0
      %p228 = por %p226, %p227
      %p229 = scmp.ne.s32.totalorder %s221, %s223
      %p230 = scmp.eq.s32.totalorder %s40, 1
      %p231 = por %p229, %p230
      %p232 = scmp.ne.s32.totalorder %s223, %s224
      %p233 = scmp.eq.s32.totalorder %s40, 0
      %p234 = por %p232, %p233
      %p235 = scmp.ne.s32.totalorder %s223, %s224
      %p236 = scmp.eq.s32.totalorder %s41, 1
      %p237 = por %p235, %p236
      %p239 = scmp.ne.s32.totalorder %s224, %s238
      %p240 = scmp.eq.s32.totalorder %s41, 0
      %p241 = por %p239, %p240
      %s243 = sadd.s32 %s242, 1
      %p246 = scmp.eq.s32.totalorder %s35, 1
      %p247 = scmp.ne.s32.totalorder %s242, %s244
      %p248 = scmp.eq.s32.totalorder %s35, 0
      %p249 = por %p247, %p248
      %p250 = scmp.ne.s32.totalorder %s242, %s244
      %p251 = scmp.eq.s32.totalorder %s40, 1
      %p252 = por %p250, %p251
      %p253 = scmp.ne.s32.totalorder %s244, %s245
      %p254 = scmp.eq.s32.totalorder %s40, 0
      %p255 = por %p253, %p254
      %p256 = scmp.ne.s32.totalorder %s244, %s245
      %p257 = scmp.eq.s32.totalorder %s41, 1
      %p258 = por %p256, %p257
      %p260 = scmp.ne.s32.totalorder %s245, %s259
      %p261 = scmp.eq.s32.totalorder %s41, 0
      %p262 = por %p260, %p261
      %s264 = sadd.s32 %s263, 1
      %p267 = scmp.eq.s32.totalorder %s35, 1
      %p268 = scmp.ne.s32.totalorder %s263, %s265
      %p269 = scmp.eq.s32.totalorder %s35, 0
      %p270 = por %p268, %p269
      %p271 = scmp.ne.s32.totalorder %s263, %s265
      %p272 = scmp.eq.s32.totalorder %s40, 1
      %p273 = por %p271, %p272
      %p274 = scmp.ne.s32.totalorder %s265, %s266
      %p275 = scmp.eq.s32.totalorder %s40, 0
      %p276 = por %p274, %p275
      %p277 = scmp.ne.s32.totalorder %s265, %s266
      %p278 = scmp.eq.s32.totalorder %s41, 1
      %p279 = por %p277, %p278
      %p281 = scmp.ne.s32.totalorder %s266, %s280
      %p282 = scmp.eq.s32.totalorder %s41, 0
      %p283 = por %p281, %p282
      %s285 = sadd.s32 %s284, 1
      %p288 = scmp.eq.s32.totalorder %s35, 1
      %p289 = scmp.ne.s32.totalorder %s284, %s286
      %p290 = scmp.eq.s32.totalorder %s35, 0
      %p291 = por %p289, %p290
      %p292 = scmp.ne.s32.totalorder %s284, %s286
      %p293 = scmp.eq.s32.totalorder %s40, 1
      %p294 = por %p292, %p293
      %p295 = scmp.ne.s32.totalorder %s286, %s287
      %p296 = scmp.eq.s32.totalorder %s40, 0
      %p297 = por %p295, %p296
      %p298 = scmp.ne.s32.totalorder %s286, %s287
      %p299 = scmp.eq.s32.totalorder %s41, 1
      %p300 = por %p298, %p299
      %p302 = scmp.ne.s32.totalorder %s287, %s301
      %p303 = scmp.eq.s32.totalorder %s41, 0
      %p304 = por %p302, %p303
      %s306 = sadd.s32 %s305, 1
      %p309 = scmp.eq.s32.totalorder %s35, 1
      %p310 = scmp.ne.s32.totalorder %s305, %s307
      %p311 = scmp.eq.s32.totalorder %s35, 0
      %p312 = por %p310, %p311
      %p313 = scmp.ne.s32.totalorder %s305, %s307
      %p314 = scmp.eq.s32.totalorder %s40, 1
      %p315 = por %p313, %p314
      %p316 = scmp.ne.s32.totalorder %s307, %s308
      %p317 = scmp.eq.s32.totalorder %s40, 0
      %p318 = por %p316, %p317
      %p319 = scmp.ne.s32.totalorder %s307, %s308
      %p320 = scmp.eq.s32.totalorder %s41, 1
      %p321 = por %p319, %p320
      %p323 = scmp.ne.s32.totalorder %s308, %s322
      %p324 = scmp.eq.s32.totalorder %s41, 0
      %p325 = por %p323, %p324
      %s327 = sadd.s32 %s326, 1
      %p330 = scmp.eq.s32.totalorder %s35, 1
      %p331 = scmp.ne.s32.totalorder %s326, %s328
      %p332 = scmp.eq.s32.totalorder %s35, 0
      %p333 = por %p331, %p332
      %p334 = scmp.ne.s32.totalorder %s326, %s328
      %p335 = scmp.eq.s32.totalorder %s40, 1
      %p336 = por %p334, %p335
      %p337 = scmp.ne.s32.totalorder %s328, %s329
      %p338 = scmp.eq.s32.totalorder %s40, 0
      %p339 = por %p337, %p338
      %p340 = scmp.ne.s32.totalorder %s328, %s329
      %p341 = scmp.eq.s32.totalorder %s41, 1
      %p342 = por %p340, %p341
      %p344 = scmp.ne.s32.totalorder %s329, %s343
      %p345 = scmp.eq.s32.totalorder %s41, 0
      %p346 = por %p344, %p345
      %s347 = ssub.s32 %s35, %s42
      %p348 = scmp.eq.s32.totalorder %s347, 0
      %s350 = sadd.s32 %s349, 1
      %s351 = scalar_select %p348, %s349, %s350
      %p354 = pneg %p348
      %p355 = scmp.eq.s32.totalorder %s35, 1
      %p356 = por %p354, %p355
      %p357 = scmp.ne.s32.totalorder %s349, %s352
      %p358 = scmp.eq.s32.totalorder %s35, 0
      %p359 = por %p357, %p358
      %p360 = scmp.ne.s32.totalorder %s349, %s352
      %p361 = scmp.eq.s32.totalorder %s40, 1
      %p362 = por %p360, %p361
      %p363 = scmp.ne.s32.totalorder %s352, %s353
      %p364 = scmp.eq.s32.totalorder %s40, 0
      %p365 = por %p363, %p364
      %p366 = scmp.ne.s32.totalorder %s352, %s353
      %p367 = scmp.eq.s32.totalorder %s41, 1
      %p368 = por %p366, %p367
      %p370 = scmp.ne.s32.totalorder %s353, %s369
      %p371 = scmp.eq.s32.totalorder %s41, 0
      %p372 = por %p370, %p371
      %p373 = scmp.le.s32.totalorder 1, %s35
      %p374 = scmp.lt.s32.totalorder %s35, 3
      %p375 = pnand %p373, %p374
      %p376 = pneg %p375
      // Predicated region
      $region9: #{vilt_forward.7} parent=5 // pred_check
        _
      $region10: #{vilt_forward.7} parent=5 // pred_check_branch
        %378 = sbr.rel (%p375) target = $region12
      $region11: #{vilt_forward.7} parent=5 // pred_region
        %s379 = ssub.s32 %s35, 1
        // Predicated region
        $region13: #{vilt_forward.7} parent=11 // pred_check
          %p380 = pneg %p108
        $region14: #{vilt_forward.7} parent=11 // pred_check_branch
          %382 = sbr.rel (%p380) target = $region16
        $region15: #{vilt_forward.7} parent=11 // pred_region
          %s384 = ssub.s32 16, 16
          %385 = vsyncadd [#allocation6], %s384
          %s387 = sshll.u32 [#allocation7], 4
          %s388 = int_to_ptr.vmem [resolvable:$true] %s387
          %390 = dma.hbm_to_vmem [thread:$0]  %s2, 16, %s388, [#allocation6]
        $region16: #{vilt_forward.7} parent=11 // pred_fallthru
          _
        // Predicated region
        $region17: #{vilt_forward.7} parent=11 // pred_check
          %p391 = pneg %p129
        $region18: #{vilt_forward.7} parent=11 // pred_check_branch
          %393 = sbr.rel (%p391) target = $region20
        $region19: #{vilt_forward.7} parent=11 // pred_region
          %s395 = ssub.s32 16, 16
          %396 = vsyncadd [#allocation9], %s395
          %s398 = sshll.u32 [#allocation8], 4
          %s399 = int_to_ptr.vmem [resolvable:$true] %s398
          %401 = dma.hbm_to_vmem [thread:$0]  %s3, 16, %s399, [#allocation9]
        $region20: #{vilt_forward.7} parent=11 // pred_fallthru
          _
        // Predicated region
        $region21: #{vilt_forward.7} parent=11 // pred_check
          %p402 = pneg %p150
        $region22: #{vilt_forward.7} parent=11 // pred_check_branch
          %404 = sbr.rel (%p402) target = $region24
        $region23: #{vilt_forward.7} parent=11 // pred_region
          %s406 = ssub.s32 256, 256
          %407 = vsyncadd [#allocation9], %s406
          %s408 = sshll.u32 [#allocation10], 4
          %s409 = int_to_ptr.vmem [resolvable:$true] %s408
          %414 = dma.hbm_to_vmem [thread:$0]  %s4, 256, %s409, [#allocation9], 64, 64, 4
        $region24: #{vilt_forward.7} parent=11 // pred_fallthru
          _
        // Predicated region
        $region25: #{vilt_forward.7} parent=11 // pred_check
          %p415 = pneg %p171
        $region26: #{vilt_forward.7} parent=11 // pred_check_branch
          %417 = sbr.rel (%p415) target = $region28
        $region27: #{vilt_forward.7} parent=11 // pred_region
          %s419 = ssub.s32 16, 16
          %420 = vsyncadd [#allocation12], %s419
          %s422 = sshll.u32 [#allocation11], 4
          %s423 = int_to_ptr.vmem [resolvable:$true] %s422
          %425 = dma.hbm_to_vmem [thread:$0]  %s5, 16, %s423, [#allocation12]
        $region28: #{vilt_forward.7} parent=11 // pred_fallthru
          _
        // Predicated region
        $region29: #{vilt_forward.7} parent=11 // pred_check
          %p426 = pneg %p192
        $region30: #{vilt_forward.7} parent=11 // pred_check_branch
          %428 = sbr.rel (%p426) target = $region32
        $region31: #{vilt_forward.7} parent=11 // pred_region
          %s430 = ssub.s32 256, 256
          %431 = vsyncadd [#allocation12], %s430
          %s432 = sshll.u32 [#allocation13], 4
          %s433 = int_to_ptr.vmem [resolvable:$true] %s432
          %438 = dma.hbm_to_vmem [thread:$0]  %s6, 256, %s433, [#allocation12], 64, 64, 4
        $region32: #{vilt_forward.7} parent=11 // pred_fallthru
          _
        // Predicated region
        $region33: #{vilt_forward.7} parent=11 // pred_check
          %p439 = pneg %p213
        $region34: #{vilt_forward.7} parent=11 // pred_check_branch
          %441 = sbr.rel (%p439) target = $region36
        $region35: #{vilt_forward.7} parent=11 // pred_region
          %s443 = ssub.s32 16, 16
          %444 = vsyncadd [#allocation15], %s443
          %s446 = sshll.u32 [#allocation14], 4
          %s447 = int_to_ptr.vmem [resolvable:$true] %s446
          %449 = dma.hbm_to_vmem [thread:$0]  %s7, 16, %s447, [#allocation15]
        $region36: #{vilt_forward.7} parent=11 // pred_fallthru
          _
        // Predicated region
        $region37: #{vilt_forward.7} parent=11 // pred_check
          %p450 = pneg %p234
        $region38: #{vilt_forward.7} parent=11 // pred_check_branch
          %452 = sbr.rel (%p450) target = $region40
        $region39: #{vilt_forward.7} parent=11 // pred_region
          %s454 = ssub.s32 16, 16
          %455 = vsyncadd [#allocation15], %s454
          %s457 = sshll.u32 [#allocation16], 4
          %s458 = int_to_ptr.vmem [resolvable:$true] %s457
          %460 = dma.hbm_to_vmem [thread:$0]  %s8, 16, %s458, [#allocation15]
        $region40: #{vilt_forward.7} parent=11 // pred_fallthru
          _
        // Predicated region
        $region41: #{vilt_forward.7} parent=11 // pred_check
          %p461 = pneg %p255
        $region42: #{vilt_forward.7} parent=11 // pred_check_branch
          %463 = sbr.rel (%p461) target = $region44
        $region43: #{vilt_forward.7} parent=11 // pred_region
          %s465 = ssub.s32 16, 16
          %466 = vsyncadd [#allocation18], %s465
          %s468 = sshll.u32 [#allocation17], 4
          %s469 = int_to_ptr.vmem [resolvable:$true] %s468
          %471 = dma.hbm_to_vmem [thread:$0]  %s9, 16, %s469, [#allocation18]
        $region44: #{vilt_forward.7} parent=11 // pred_fallthru
          _
        // Predicated region
        $region45: #{vilt_forward.7} parent=11 // pred_check
          %p472 = pneg %p276
        $region46: #{vilt_forward.7} parent=11 // pred_check_branch
          %474 = sbr.rel (%p472) target = $region48
        $region47: #{vilt_forward.7} parent=11 // pred_region
          %s476 = ssub.s32 256, 256
          %477 = vsyncadd [#allocation18], %s476
          %s478 = sshll.u32 [#allocation19], 4
          %s479 = int_to_ptr.vmem [resolvable:$true] %s478
          %484 = dma.hbm_to_vmem [thread:$0]  %s10, 256, %s479, [#allocation18], 64, 64, 4
        $region48: #{vilt_forward.7} parent=11 // pred_fallthru
          _
        // Predicated region
        $region49: #{vilt_forward.7} parent=11 // pred_check
          %p485 = pneg %p297
        $region50: #{vilt_forward.7} parent=11 // pred_check_branch
          %487 = sbr.rel (%p485) target = $region52
        $region51: #{vilt_forward.7} parent=11 // pred_region
          %s489 = ssub.s32 16, 16
          %490 = vsyncadd [#allocation21], %s489
          %s492 = sshll.u32 [#allocation20], 4
          %s493 = int_to_ptr.vmem [resolvable:$true] %s492
          %495 = dma.hbm_to_vmem [thread:$0]  %s11, 16, %s493, [#allocation21]
        $region52: #{vilt_forward.7} parent=11 // pred_fallthru
          _
        // Predicated region
        $region53: #{vilt_forward.7} parent=11 // pred_check
          %p496 = pneg %p318
        $region54: #{vilt_forward.7} parent=11 // pred_check_branch
          %498 = sbr.rel (%p496) target = $region56
        $region55: #{vilt_forward.7} parent=11 // pred_region
          %s500 = ssub.s32 1024, 1024
          %501 = vsyncadd [#allocation21], %s500
          %s502 = sshll.u32 [#allocation22], 4
          %s503 = int_to_ptr.vmem [resolvable:$true] %s502
          %508 = dma.hbm_to_vmem [thread:$0]  %s12, 1024, %s503, [#allocation21], 64, 64, 4
        $region56: #{vilt_forward.7} parent=11 // pred_fallthru
          _
        // Predicated region
        $region57: #{vilt_forward.7} parent=11 // pred_check
          %p509 = pneg %p339
        $region58: #{vilt_forward.7} parent=11 // pred_check_branch
          %511 = sbr.rel (%p509) target = $region60
        $region59: #{vilt_forward.7} parent=11 // pred_region
          %s513 = ssub.s32 16, 16
          %514 = vsyncadd [#allocation24], %s513
          %s516 = sshll.u32 [#allocation23], 4
          %s517 = int_to_ptr.vmem [resolvable:$true] %s516
          %519 = dma.hbm_to_vmem [thread:$0]  %s13, 16, %s517, [#allocation24]
        $region60: #{vilt_forward.7} parent=11 // pred_fallthru
          _
      $region12: #{vilt_forward.7} parent=5 // pred_fallthru
        _
      %p520 = scmp.lt.s32.totalorder %s35, 2
      // Predicated region
      $region61: #{vilt_forward.7} parent=5 // pred_check
        %p521 = pneg %p520
      $region62: #{vilt_forward.7} parent=5 // pred_check_branch
        %523 = sbr.rel (%p521) target = $region64
      $region63: #{vilt_forward.7} parent=5 // pred_region
        // Predicated region
        $region65: #{vilt_forward.7} parent=63 // pred_check
          %p524 = pneg %p55
        $region66: #{vilt_forward.7} parent=63 // pred_check_branch
          %526 = sbr.rel (%p524) target = $region68
        $region67: #{vilt_forward.7} parent=63 // pred_region
          %s527 = sand.u32 %s45, 1
          %s528 = scalar_lea.sflag [#allocation3], %s527
          %s529 = sand.u32 %s45, 1
          %s530 = smul.addr %s529, 16
          %s531 = scalar_lea.vmem [#allocation2], %s530
          %s533 = ssub.s32 256, 256
          %534 = vsyncadd %s528, %s533
          %s535 = smul.addr %s35, 2
          %s536 = smul.addr %s535, 128
          %s537 = scalar_lea.hbm %s0, %s536
          %s538 = sshll.u32 %s531, 4
          %s539 = int_to_ptr.vmem [resolvable:$true] %s538
          %544 = dma.hbm_to_vmem [thread:$0]  %s537, 256, %s539, %s528, 128, 128, 8
        $region68: #{vilt_forward.7} parent=63 // pred_fallthru
          _
        // Predicated region
        $region69: #{vilt_forward.7} parent=63 // pred_check
          %p545 = pneg %p81
        $region70: #{vilt_forward.7} parent=63 // pred_check_branch
          %547 = sbr.rel (%p545) target = $region72
        $region71: #{vilt_forward.7} parent=63 // pred_region
          %s548 = sand.u32 %s35, 1
          %s549 = scalar_lea.sflag [#allocation6], %s548
          %s550 = sand.u32 %s71, 1
          %s551 = scalar_lea.vmem [#allocation5], %s550
          %s553 = ssub.s32 16, 16
          %554 = vsyncadd %s549, %s553
          %s555 = smul.addr %s35, 16
          %s556 = scalar_lea.hbm %s1, %s555
          %s558 = sshll.u32 %s551, 4
          %s559 = int_to_ptr.vmem [resolvable:$true] %s558
          %561 = dma.hbm_to_vmem [thread:$0]  %s556, 16, %s559, %s549
        $region72: #{vilt_forward.7} parent=63 // pred_fallthru
          _
      $region64: #{vilt_forward.7} parent=5 // pred_fallthru
        _
      %p562 = scmp.le.s32.totalorder 1, %s35
      %p563 = scmp.lt.s32.totalorder %s35, 3
      %p564 = pnand %p562, %p563
      %p565 = pneg %p564
      // Predicated region
      $region73: #{vilt_forward.7} parent=5 // pred_check
        _
      $region74: #{vilt_forward.7} parent=5 // pred_check_branch
        %567 = sbr.rel (%p564) target = $region76
      $region75: #{vilt_forward.7} parent=5 // pred_region
        %s568 = ssub.s32 %s35, 1
        %s569 = sand.u32 %s48, 1
        %s570 = scalar_lea.sflag [#allocation3], %s569
        %s571 = sand.u32 %s48, 1
        %s572 = smul.addr %s571, 16
        %s573 = scalar_lea.vmem [#allocation2], %s572
        // Predicated region
        $region77: #{vilt_forward.7} parent=75 // pred_check
          %p574 = pneg %p61
        $region78: #{vilt_forward.7} parent=75 // pred_check_branch
          %576 = sbr.rel (%p574) target = $region80
        $region79: #{vilt_forward.7} parent=75 // pred_region
          %577 = dma.done %s570, 256
        $region80: #{vilt_forward.7} parent=75 // pred_fallthru
          _
        %s578 = sand.u32 %s40, 1
        %s579 = scalar_lea.sflag [#allocation6], %s578
        %s580 = sand.u32 %s74, 1
        %s581 = scalar_lea.vmem [#allocation5], %s580
        // Predicated region
        $region81: #{vilt_forward.7} parent=75 // pred_check
          %p582 = pneg %p87
        $region82: #{vilt_forward.7} parent=75 // pred_check_branch
          %584 = sbr.rel (%p582) target = $region84
        $region83: #{vilt_forward.7} parent=75 // pred_region
          %585 = dma.done %s579, 16
        $region84: #{vilt_forward.7} parent=75 // pred_fallthru
          _
        // Predicated region
        $region85: #{vilt_forward.7} parent=75 // pred_check
          %p586 = pneg %p108
        $region86: #{vilt_forward.7} parent=75 // pred_check_branch
          %588 = sbr.rel (%p586) target = $region88
        $region87: #{vilt_forward.7} parent=75 // pred_region
          %589 = dma.done [#allocation6], 16
        $region88: #{vilt_forward.7} parent=75 // pred_fallthru
          _
        // Predicated region
        $region89: #{vilt_forward.7} parent=75 // pred_check
          %p590 = pneg %p129
        $region90: #{vilt_forward.7} parent=75 // pred_check_branch
          %592 = sbr.rel (%p590) target = $region92
        $region91: #{vilt_forward.7} parent=75 // pred_region
          %593 = dma.done [#allocation9], 16
        $region92: #{vilt_forward.7} parent=75 // pred_fallthru
          _
        // Predicated region
        $region93: #{vilt_forward.7} parent=75 // pred_check
          %p594 = pneg %p150
        $region94: #{vilt_forward.7} parent=75 // pred_check_branch
          %596 = sbr.rel (%p594) target = $region96
        $region95: #{vilt_forward.7} parent=75 // pred_region
          %597 = dma.done [#allocation9], 256
        $region96: #{vilt_forward.7} parent=75 // pred_fallthru
          _
        // Predicated region
        $region97: #{vilt_forward.7} parent=75 // pred_check
          %p598 = pneg %p171
        $region98: #{vilt_forward.7} parent=75 // pred_check_branch
          %600 = sbr.rel (%p598) target = $region100
        $region99: #{vilt_forward.7} parent=75 // pred_region
          %601 = dma.done [#allocation12], 16
        $region100: #{vilt_forward.7} parent=75 // pred_fallthru
          _
        // Predicated region
        $region101: #{vilt_forward.7} parent=75 // pred_check
          %p602 = pneg %p192
        $region102: #{vilt_forward.7} parent=75 // pred_check_branch
          %604 = sbr.rel (%p602) target = $region104
        $region103: #{vilt_forward.7} parent=75 // pred_region
          %605 = dma.done [#allocation12], 256
        $region104: #{vilt_forward.7} parent=75 // pred_fallthru
          _
        // Predicated region
        $region105: #{vilt_forward.7} parent=75 // pred_check
          %p606 = pneg %p213
        $region106: #{vilt_forward.7} parent=75 // pred_check_branch
          %608 = sbr.rel (%p606) target = $region108
        $region107: #{vilt_forward.7} parent=75 // pred_region
          %609 = dma.done [#allocation15], 16
        $region108: #{vilt_forward.7} parent=75 // pred_fallthru
          _
        // Predicated region
        $region109: #{vilt_forward.7} parent=75 // pred_check
          %p610 = pneg %p234
        $region110: #{vilt_forward.7} parent=75 // pred_check_branch
          %612 = sbr.rel (%p610) target = $region112
        $region111: #{vilt_forward.7} parent=75 // pred_region
          %613 = dma.done [#allocation15], 16
        $region112: #{vilt_forward.7} parent=75 // pred_fallthru
          _
        // Predicated region
        $region113: #{vilt_forward.7} parent=75 // pred_check
          %p614 = pneg %p255
        $region114: #{vilt_forward.7} parent=75 // pred_check_branch
          %616 = sbr.rel (%p614) target = $region116
        $region115: #{vilt_forward.7} parent=75 // pred_region
          %617 = dma.done [#allocation18], 16
        $region116: #{vilt_forward.7} parent=75 // pred_fallthru
          _
        // Predicated region
        $region117: #{vilt_forward.7} parent=75 // pred_check
          %p618 = pneg %p276
        $region118: #{vilt_forward.7} parent=75 // pred_check_branch
          %620 = sbr.rel (%p618) target = $region120
        $region119: #{vilt_forward.7} parent=75 // pred_region
          %621 = dma.done [#allocation18], 256
        $region120: #{vilt_forward.7} parent=75 // pred_fallthru
          _
        // Predicated region
        $region121: #{vilt_forward.7} parent=75 // pred_check
          %p622 = pneg %p297
        $region122: #{vilt_forward.7} parent=75 // pred_check_branch
          %624 = sbr.rel (%p622) target = $region124
        $region123: #{vilt_forward.7} parent=75 // pred_region
          %625 = dma.done [#allocation21], 16
        $region124: #{vilt_forward.7} parent=75 // pred_fallthru
          _
        // Predicated region
        $region125: #{vilt_forward.7} parent=75 // pred_check
          %p626 = pneg %p318
        $region126: #{vilt_forward.7} parent=75 // pred_check_branch
          %628 = sbr.rel (%p626) target = $region128
        $region127: #{vilt_forward.7} parent=75 // pred_region
          %629 = dma.done [#allocation21], 1024
        $region128: #{vilt_forward.7} parent=75 // pred_fallthru
          _
        // Predicated region
        $region129: #{vilt_forward.7} parent=75 // pred_check
          %p630 = pneg %p339
        $region130: #{vilt_forward.7} parent=75 // pred_check_branch
          %632 = sbr.rel (%p630) target = $region132
        $region131: #{vilt_forward.7} parent=75 // pred_region
          %633 = dma.done [#allocation24], 16
        $region132: #{vilt_forward.7} parent=75 // pred_fallthru
          _
        %s634 = sand.u32 %s48, 1
        %s635 = scalar_lea.sflag [#allocation3], %s634
        %s636 = sand.u32 %s48, 1
        %s637 = smul.addr %s636, 16
        %s638 = scalar_lea.vmem [#allocation2], %s637
        %p639 = pneg %p61
        %p640 = pneg %p58
        %s641 = sand.u32 %s40, 1
        %s642 = scalar_lea.sflag [#allocation6], %s641
        %s643 = sand.u32 %s74, 1
        %s644 = scalar_lea.vmem [#allocation5], %s643
        %p645 = pneg %p87
        %p646 = pneg %p84
        %p647 = pneg %p108
        %p648 = pneg %p105
        %p649 = pneg %p129
        %p650 = pneg %p126
        %p651 = pneg %p150
        %p652 = pneg %p147
        %p653 = pneg %p171
        %p654 = pneg %p168
        %p655 = pneg %p192
        %p656 = pneg %p189
        %p657 = pneg %p213
        %p658 = pneg %p210
        %p659 = pneg %p234
        %p660 = pneg %p231
        %p661 = pneg %p255
        %p662 = pneg %p252
        %p663 = pneg %p276
        %p664 = pneg %p273
        %p665 = pneg %p297
        %p666 = pneg %p294
        %p667 = pneg %p318
        %p668 = pneg %p315
        %p669 = pneg %p339
        %p670 = pneg %p336
        %p671 = pneg %p365
        %p672 = pneg %p362
        %s673 = sand.u32 %s352, 1
        %s674 = scalar_lea.sflag [#allocation4], %s673
        %s675 = sand.u32 %s352, 1
        %s676 = smul.addr %s675, 16
        %s677 = scalar_lea.vmem [#allocation25], %s676
        %v679 = vld [vmem:[%s573] sm:$0xff]
        %v680 = vld [vmem:[%s573 + $0x8] sm:$0xff]
        %v681 = vld [vmem:[%s581] sm:$0x1]
        %vm682 = vcmask 261120
        %v683 = vsel %vm682, %v679, 0.0
        %684 = vadd.xlane.f32.xlu0 %v683
        %v685 = vpop.xlane.xlu0 %684
        %v686 = vsel %vm682, %v680, 0.0
        %687 = vadd.xlane.f32.xlu0 %v686
        %v688 = vpop.xlane.xlu0 %687
        %v689 = vrcp.pop 32.0
        %v690 = vmul.f32 %v685, %v689
        %v691 = vmul.f32 %v688, %v689
        %v692 = vsub.f32 %v679, %v690
        %v693 = vsub.f32 %v680, %v691
        %v694 = vmul.f32 %v692, %v692
        %v695 = vmul.f32 %v693, %v693
        %v696 = vsel %vm682, %v694, 0.0
        %697 = vadd.xlane.f32.xlu0 %v696
        %v698 = vpop.xlane.xlu0 %697
        %v699 = vsel %vm682, %v695, 0.0
        %700 = vadd.xlane.f32.xlu0 %v699
        %v701 = vpop.xlane.xlu0 %700
        %v702 = vmul.f32 %v698, %v689
        %v703 = vmul.f32 %v701, %v689
        %v704 = vadd.f32 %v702, 1e-12
        %v705 = vadd.f32 %v703, 1e-12
        %v706 = vrsqrt.pop %v704
        %v707 = vrsqrt.pop %v705
        %v708 = vmul.f32 %v692, %v706
        %v709 = vmul.f32 %v693, %v707
        %v710 = vld [vmem:[#allocation7] sm:$0x1]
        %v712 = vlaneseq
        %v713 = vshrl.u32 %v712, 7
        %v714 = vsub.s32 0, %v713
        %v715 = vrot.slane %v710, %v714
        %v717 = vmul.f32 %v708, %v715
        %v718 = vmul.f32 %v709, %v715
        %v719 = vld [vmem:[#allocation8] sm:$0x1]
        %v721 = vlaneseq
        %v722 = vshrl.u32 %v721, 7
        %v723 = vsub.s32 0, %v722
        %v724 = vrot.slane %v719, %v723
        %v726 = vadd.f32 %v717, %v724
        %v727 = vadd.f32 %v718, %v724
        %v728 = vpack.c.bf16 %v727, %v726
        %v729 = vld [vmem:[#allocation10] sm:$0xf]
        %v730 = vld [vmem:[#allocation10 + $0x4] sm:$0xf]
        %v731 = vld [vmem:[#allocation10 + $0x8] sm:$0xf]
        %v732 = vld [vmem:[#allocation10 + $0xc] sm:$0xf]
        %v733 = vld [vmem:[#allocation11] sm:$0x1]
        %v735 = vlaneseq
        %v736 = vshrl.u32 %v735, 7
        %v737 = vsub.s32 0, %v736
        %v738 = vrot.slane %v733, %v737
        %v744 = vunpack.c.l.b16 %v729
        %v745 = vunpack.c.l.b16 %v730
        %v746 = vunpack.c.l.b16 %v731
        %v747 = vunpack.c.l.b16 %v732
        %v748 = vpack.c.b16 %v745, %v744
        %v749 = vpack.c.b16 %v747, %v746
        %v753 = vsel %vm682, %v728, 0
        %755 = vmatprep.subr.bf16.mxu0 0
        %756 = vmatpush1.bf16.msra.mxu0 %v748
        %757 = vmatprep.subr.bf16.mxu0 0
        %758 = vmatpush1.bf16.msra.mxu0 %v749
        %759 = vmatprep.subr.bf16.mxu0 0
        %760 = vmatpush1.bf16.msra.mxu0 0
        %761 = vmatprep.subr.bf16.mxu0 0
        %762 = vmatpush1.bf16.msra.mxu0 0
        %763 = vmatprep.subr.bf16.mxu0 0
        %764 = vmatpush1.bf16.msra.mxu0 0
        %765 = vmatprep.subr.bf16.mxu0 0
        %766 = vmatpush1.bf16.msra.mxu0 0
        %767 = vmatprep.subr.bf16.mxu0 0
        %768 = vmatpush1.bf16.msra.mxu0 0
        %769 = vmatprep.subr.bf16.mxu0 0
        %770 = vmatpush1.bf16.msra.mxu0 0
        %771 = vmatprep.subr.bf16.mxu0 0
        %772 = vmatpush1.bf16.msra.mxu0 0
        %773 = vmatprep.subr.bf16.mxu0 0
        %774 = vmatpush1.bf16.msra.mxu0 0
        %775 = vmatprep.subr.bf16.mxu0 0
        %776 = vmatpush1.bf16.msra.mxu0 0
        %777 = vmatprep.subr.bf16.mxu0 0
        %778 = vmatpush1.bf16.msra.mxu0 0
        %779 = vmatprep.subr.bf16.mxu0 0
        %780 = vmatpush1.bf16.msra.mxu0 0
        %781 = vmatprep.subr.bf16.mxu0 0
        %782 = vmatpush1.bf16.msra.mxu0 0
        %783 = vmatprep.subr.bf16.mxu0 0
        %784 = vmatpush1.bf16.msra.mxu0 0
        %785 = vmatprep.subr.bf16.mxu0 0
        %786 = vmatpush1.bf16.msra.mxu0 0
        %787 = vmatprep.mubr.bf16.mxu0 0
        %788 = vmatmul.mubr.bf16.gmra.mrb[0].mxu0 %v753
        %v789 = vpop.f32.mrb[0].mxu0
        %v790 = vadd.f32 %v738, %v789
        %v791 = vpop.f32.mrb[0].mxu0
        %v792 = vpop.f32.mrb[0].mxu0
        %v793 = vadd.f32 %v738, %v792
        %v794 = vpop.f32.mrb[0].mxu0
        %795 = vdwg.mxu0
        %v796 = vpack.c.bf16 %v793, %v790
        %v798 = vlaneseq
        %v799 = vshrl.u32 %v798, 7
        %v800 = vsub.s32 0, %v799
        %v801 = vrot.slane %v681, %v800
        %804 = vrot.lane.b32.xlu0 %v796, 96
        %v805 = vpop.permute.xlu0 %804
        %vm806 = vcmask 64512
        %v808 = vsel %vm806, %v796, 0
        %v811 = vsel %vm806, %v805, 0
        %813 = vmatprep.subr.bf16.mxu0 0
        %814 = vmatpush1.bf16.xpose.msra.mxu0 %v811
        %815 = vmatprep.subr.bf16.mxu0 0
        %816 = vmatpush1.bf16.xpose.msra.mxu0 0
        %817 = vmatprep.subr.bf16.mxu0 0
        %818 = vmatpush1.bf16.xpose.msra.mxu0 0
        %819 = vmatprep.subr.bf16.mxu0 0
        %820 = vmatpush1.bf16.xpose.msra.mxu0 0
        %821 = vmatprep.subr.bf16.mxu0 0
        %822 = vmatpush1.bf16.xpose.msra.mxu0 0
        %823 = vmatprep.subr.bf16.mxu0 0
        %824 = vmatpush1.bf16.xpose.msra.mxu0 0
        %825 = vmatprep.subr.bf16.mxu0 0
        %826 = vmatpush1.bf16.xpose.msra.mxu0 0
        %827 = vmatprep.subr.bf16.mxu0 0
        %828 = vmatpush1.bf16.xpose.msra.mxu0 0
        %829 = vmatprep.subr.bf16.mxu0 0
        %830 = vmatpush1.bf16.xpose.msra.mxu0 0
        %831 = vmatprep.subr.bf16.mxu0 0
        %832 = vmatpush1.bf16.xpose.msra.mxu0 0
        %833 = vmatprep.subr.bf16.mxu0 0
        %834 = vmatpush1.bf16.xpose.msra.mxu0 0
        %835 = vmatprep.subr.bf16.mxu0 0
        %836 = vmatpush1.bf16.xpose.msra.mxu0 0
        %837 = vmatprep.subr.bf16.mxu0 0
        %838 = vmatpush1.bf16.xpose.msra.mxu0 0
        %839 = vmatprep.subr.bf16.mxu0 0
        %840 = vmatpush1.bf16.xpose.msra.mxu0 0
        %841 = vmatprep.subr.bf16.mxu0 0
        %842 = vmatpush1.bf16.xpose.msra.mxu0 0
        %843 = vmatprep.subr.bf16.mxu0 0
        %844 = vmatpush1.bf16.xpose.msra.mxu0 0
        %845 = vmatprep.mubr.bf16.mxu0 0
        %846 = vmatmul.mubr.bf16.gmra.mrb[0].mxu0 %v808
        %v847 = vpop.f32.mrb[0].mxu0
        %v848 = vadd.f32 %v801, %v847
        %v849 = vpop.f32.mrb[0].mxu0
        %v850 = vpop.f32.mrb[0].mxu0
        %v851 = vadd.f32 %v801, %v850
        %v852 = vpop.f32.mrb[0].mxu0
        %853 = vdwg.mxu0
        %vm854 = vcmask 130048
        %v855 = vsel %vm854, %v848, -inf
        %856 = vmax.xlane.f32.xlu0 %v855
        %v857 = vpop.xlane.xlu0 %856
        %v858 = vsel %vm854, %v851, -inf
        %859 = vmax.xlane.f32.xlu0 %v858
        %v860 = vpop.xlane.xlu0 %859
        %v861 = vsub.f32 %v848, %v857
        %v862 = vsub.f32 %v851, %v860
        %v863 = vmul.f32 %v861, 1.442695
        %v864 = vpow.pop %v863
        %v865 = vmul.f32 %v862, 1.442695
        %v866 = vpow.pop %v865
        %v867 = vsel %vm854, %v864, 0.0
        %868 = vadd.xlane.f32.xlu0 %v867
        %v869 = vpop.xlane.xlu0 %868
        %v870 = vsel %vm854, %v866, 0.0
        %871 = vadd.xlane.f32.xlu0 %v870
        %v872 = vpop.xlane.xlu0 %871
        %v873 = vrcp.pop %v869
        %v874 = vrcp.pop %v872
        %v875 = vmul.f32 %v864, %v873
        %v876 = vmul.f32 %v866, %v874
        %v877 = vpack.c.bf16 %v876, %v875
        %878 = vrot.lane.b32.xlu0 %v796, 64
        %v879 = vpop.permute.xlu0 %878
        %v882 = vsel %vm854, %v877, 0
        %884 = vmatprep.subr.bf16.mxu0 0
        %885 = vmatpush1.bf16.msra.mxu0 %v879
        %886 = vmatprep.subr.bf16.mxu0 0
        %887 = vmatpush1.bf16.msra.mxu0 0
        %888 = vmatprep.subr.bf16.mxu0 0
        %889 = vmatpush1.bf16.msra.mxu0 0
        %890 = vmatprep.subr.bf16.mxu0 0
        %891 = vmatpush1.bf16.msra.mxu0 0
        %892 = vmatprep.subr.bf16.mxu0 0
        %893 = vmatpush1.bf16.msra.mxu0 0
        %894 = vmatprep.subr.bf16.mxu0 0
        %895 = vmatpush1.bf16.msra.mxu0 0
        %896 = vmatprep.subr.bf16.mxu0 0
        %897 = vmatpush1.bf16.msra.mxu0 0
        %898 = vmatprep.subr.bf16.mxu0 0
        %899 = vmatpush1.bf16.msra.mxu0 0
        %900 = vmatprep.subr.bf16.mxu0 0
        %901 = vmatpush1.bf16.msra.mxu0 0
        %902 = vmatprep.subr.bf16.mxu0 0
        %903 = vmatpush1.bf16.msra.mxu0 0
        %904 = vmatprep.subr.bf16.mxu0 0
        %905 = vmatpush1.bf16.msra.mxu0 0
        %906 = vmatprep.subr.bf16.mxu0 0
        %907 = vmatpush1.bf16.msra.mxu0 0
        %908 = vmatprep.subr.bf16.mxu0 0
        %909 = vmatpush1.bf16.msra.mxu0 0
        %910 = vmatprep.subr.bf16.mxu0 0
        %911 = vmatpush1.bf16.msra.mxu0 0
        %912 = vmatprep.subr.bf16.mxu0 0
        %913 = vmatpush1.bf16.msra.mxu0 0
        %914 = vmatprep.subr.bf16.mxu0 0
        %915 = vmatpush1.bf16.msra.mxu0 0
        %916 = vmatprep.mubr.bf16.mxu0 0
        %917 = vmatmul.mubr.bf16.gmra.mrb[0].mxu0 %v882
        %v918 = vpop.f32.mrb[0].mxu0
        %v919 = vadd.f32 0.0, %v918
        %v920 = vpop.f32.mrb[0].mxu0
        %v921 = vpop.f32.mrb[0].mxu0
        %v922 = vadd.f32 0.0, %v921
        %v923 = vpop.f32.mrb[0].mxu0
        %924 = vdwg.mxu0
        %925 = vrot.lane.b32.xlu0 %v796, 120
        %v926 = vpop.permute.xlu0 %925
        %927 = vrot.lane.b32.xlu0 %v796, 88
        %v928 = vpop.permute.xlu0 %927
        %v930 = vsel %vm806, %v926, 0
        %v933 = vsel %vm806, %v928, 0
        %935 = vmatprep.subr.bf16.mxu0 0
        %936 = vmatpush1.bf16.xpose.msra.mxu0 %v933
        %937 = vmatprep.subr.bf16.mxu0 0
        %938 = vmatpush1.bf16.xpose.msra.mxu0 0
        %939 = vmatprep.subr.bf16.mxu0 0
        %940 = vmatpush1.bf16.xpose.msra.mxu0 0
        %941 = vmatprep.subr.bf16.mxu0 0
        %942 = vmatpush1.bf16.xpose.msra.mxu0 0
        %943 = vmatprep.subr.bf16.mxu0 0
        %944 = vmatpush1.bf16.xpose.msra.mxu0 0
        %945 = vmatprep.subr.bf16.mxu0 0
        %946 = vmatpush1.bf16.xpose.msra.mxu0 0
        %947 = vmatprep.subr.bf16.mxu0 0
        %948 = vmatpush1.bf16.xpose.msra.mxu0 0
        %949 = vmatprep.subr.bf16.mxu0 0
        %950 = vmatpush1.bf16.xpose.msra.mxu0 0
        %951 = vmatprep.subr.bf16.mxu0 0
        %952 = vmatpush1.bf16.xpose.msra.mxu0 0
        %953 = vmatprep.subr.bf16.mxu0 0
        %954 = vmatpush1.bf16.xpose.msra.mxu0 0
        %955 = vmatprep.subr.bf16.mxu0 0
        %956 = vmatpush1.bf16.xpose.msra.mxu0 0
        %957 = vmatprep.subr.bf16.mxu0 0
        %958 = vmatpush1.bf16.xpose.msra.mxu0 0
        %959 = vmatprep.subr.bf16.mxu0 0
        %960 = vmatpush1.bf16.xpose.msra.mxu0 0
        %961 = vmatprep.subr.bf16.mxu0 0
        %962 = vmatpush1.bf16.xpose.msra.mxu0 0
        %963 = vmatprep.subr.bf16.mxu0 0
        %964 = vmatpush1.bf16.xpose.msra.mxu0 0
        %965 = vmatprep.subr.bf16.mxu0 0
        %966 = vmatpush1.bf16.xpose.msra.mxu0 0
        %967 = vmatprep.mubr.bf16.mxu0 0
        %968 = vmatmul.mubr.bf16.gmra.mrb[0].mxu0 %v930
        %v969 = vpop.f32.mrb[0].mxu0
        %v970 = vadd.f32 %v801, %v969
        %v971 = vpop.f32.mrb[0].mxu0
        %v972 = vpop.f32.mrb[0].mxu0
        %v973 = vadd.f32 %v801, %v972
        %v974 = vpop.f32.mrb[0].mxu0
        %975 = vdwg.mxu0
        %v976 = vsel %vm854, %v970, -inf
        %977 = vmax.xlane.f32.xlu0 %v976
        %v978 = vpop.xlane.xlu0 %977
        %v979 = vsel %vm854, %v973, -inf
        %980 = vmax.xlane.f32.xlu0 %v979
        %v981 = vpop.xlane.xlu0 %980
        %v982 = vsub.f32 %v970, %v978
        %v983 = vsub.f32 %v973, %v981
        %v984 = vmul.f32 %v982, 1.442695
        %v985 = vpow.pop %v984
        %v986 = vmul.f32 %v983, 1.442695
        %v987 = vpow.pop %v986
        %v988 = vsel %vm854, %v985, 0.0
        %989 = vadd.xlane.f32.xlu0 %v988
        %v990 = vpop.xlane.xlu0 %989
        %v991 = vsel %vm854, %v987, 0.0
        %992 = vadd.xlane.f32.xlu0 %v991
        %v993 = vpop.xlane.xlu0 %992
        %v994 = vrcp.pop %v990
        %v995 = vrcp.pop %v993
        %v996 = vmul.f32 %v985, %v994
        %v997 = vmul.f32 %v987, %v995
        %v998 = vpack.c.bf16 %v997, %v996
        %999 = vrot.lane.b32.xlu0 %v796, 56
        %v1000 = vpop.permute.xlu0 %999
        %v1003 = vsel %vm854, %v998, 0
        %1005 = vmatprep.subr.bf16.mxu0 0
        %1006 = vmatpush1.bf16.msra.mxu0 %v1000
        %1007 = vmatprep.subr.bf16.mxu0 0
        %1008 = vmatpush1.bf16.msra.mxu0 0
        %1009 = vmatprep.subr.bf16.mxu0 0
        %1010 = vmatpush1.bf16.msra.mxu0 0
        %1011 = vmatprep.subr.bf16.mxu0 0
        %1012 = vmatpush1.bf16.msra.mxu0 0
        %1013 = vmatprep.subr.bf16.mxu0 0
        %1014 = vmatpush1.bf16.msra.mxu0 0
        %1015 = vmatprep.subr.bf16.mxu0 0
        %1016 = vmatpush1.bf16.msra.mxu0 0
        %1017 = vmatprep.subr.bf16.mxu0 0
        %1018 = vmatpush1.bf16.msra.mxu0 0
        %1019 = vmatprep.subr.bf16.mxu0 0
        %1020 = vmatpush1.bf16.msra.mxu0 0
        %1021 = vmatprep.subr.bf16.mxu0 0
        %1022 = vmatpush1.bf16.msra.mxu0 0
        %1023 = vmatprep.subr.bf16.mxu0 0
        %1024 = vmatpush1.bf16.msra.mxu0 0
        %1025 = vmatprep.subr.bf16.mxu0 0
        %1026 = vmatpush1.bf16.msra.mxu0 0
        %1027 = vmatprep.subr.bf16.mxu0 0
        %1028 = vmatpush1.bf16.msra.mxu0 0
        %1029 = vmatprep.subr.bf16.mxu0 0
        %1030 = vmatpush1.bf16.msra.mxu0 0
        %1031 = vmatprep.subr.bf16.mxu0 0
        %1032 = vmatpush1.bf16.msra.mxu0 0
        %1033 = vmatprep.subr.bf16.mxu0 0
        %1034 = vmatpush1.bf16.msra.mxu0 0
        %1035 = vmatprep.subr.bf16.mxu0 0
        %1036 = vmatpush1.bf16.msra.mxu0 0
        %1037 = vmatprep.mubr.bf16.mxu0 0
        %1038 = vmatmul.mubr.bf16.gmra.mrb[0].mxu0 %v1003
        %v1039 = vpop.f32.mrb[0].mxu0
        %v1040 = vadd.f32 0.0, %v1039
        %v1041 = vpop.f32.mrb[0].mxu0
        %v1042 = vpop.f32.mrb[0].mxu0
        %v1043 = vadd.f32 0.0, %v1042
        %v1044 = vpop.f32.mrb[0].mxu0
        %1045 = vdwg.mxu0
        %1046 = vrot.lane.b32.xlu0 %v796, 112
        %v1047 = vpop.permute.xlu0 %1046
        %1048 = vrot.lane.b32.xlu0 %v796, 80
        %v1049 = vpop.permute.xlu0 %1048
        %v1051 = vsel %vm806, %v1047, 0
        %v1054 = vsel %vm806, %v1049, 0
        %1056 = vmatprep.subr.bf16.mxu0 0
        %1057 = vmatpush1.bf16.xpose.msra.mxu0 %v1054
        %1058 = vmatprep.subr.bf16.mxu0 0
        %1059 = vmatpush1.bf16.xpose.msra.mxu0 0
        %1060 = vmatprep.subr.bf16.mxu0 0
        %1061 = vmatpush1.bf16.xpose.msra.mxu0 0
        %1062 = vmatprep.subr.bf16.mxu0 0
        %1063 = vmatpush1.bf16.xpose.msra.mxu0 0
        %1064 = vmatprep.subr.bf16.mxu0 0
        %1065 = vmatpush1.bf16.xpose.msra.mxu0 0
        %1066 = vmatprep.subr.bf16.mxu0 0
        %1067 = vmatpush1.bf16.xpose.msra.mxu0 0
        %1068 = vmatprep.subr.bf16.mxu0 0
        %1069 = vmatpush1.bf16.xpose.msra.mxu0 0
        %1070 = vmatprep.subr.bf16.mxu0 0
        %1071 = vmatpush1.bf16.xpose.msra.mxu0 0
        %1072 = vmatprep.subr.bf16.mxu0 0
        %1073 = vmatpush1.bf16.xpose.msra.mxu0 0
        %1074 = vmatprep.subr.bf16.mxu0 0
        %1075 = vmatpush1.bf16.xpose.msra.mxu0 0
        %1076 = vmatprep.subr.bf16.mxu0 0
        %1077 = vmatpush1.bf16.xpose.msra.mxu0 0
        %1078 = vmatprep.subr.bf16.mxu0 0
        %1079 = vmatpush1.bf16.xpose.msra.mxu0 0
        %1080 = vmatprep.subr.bf16.mxu0 0
        %1081 = vmatpush1.bf16.xpose.msra.mxu0 0
        %1082 = vmatprep.subr.bf16.mxu0 0
        %1083 = vmatpush1.bf16.xpose.msra.mxu0 0
        %1084 = vmatprep.subr.bf16.mxu0 0
        %1085 = vmatpush1.bf16.xpose.msra.mxu0 0
        %1086 = vmatprep.subr.bf16.mxu0 0
        %1087 = vmatpush1.bf16.xpose.msra.mxu0 0
        %1088 = vmatprep.mubr.bf16.mxu0 0
        %1089 = vmatmul.mubr.bf16.gmra.mrb[0].mxu0 %v1051
        %v1090 = vpop.f32.mrb[0].mxu0
        %v1091 = vadd.f32 %v801, %v1090
        %v1092 = vpop.f32.mrb[0].mxu0
        %v1093 = vpop.f32.mrb[0].mxu0
        %v1094 = vadd.f32 %v801, %v1093
        %v1095 = vpop.f32.mrb[0].mxu0
        %1096 = vdwg.mxu0
        %v1097 = vsel %vm854, %v1091, -inf
        %1098 = vmax.xlane.f32.xlu0 %v1097
        %v1099 = vpop.xlane.xlu0 %1098
        %v1100 = vsel %vm854, %v1094, -inf
        %1101 = vmax.xlane.f32.xlu0 %v1100
        %v1102 = vpop.xlane.xlu0 %1101
        %v1103 = vsub.f32 %v1091, %v1099
        %v1104 = vsub.f32 %v1094, %v1102
        %v1105 = vmul.f32 %v1103, 1.442695
        %v1106 = vpow.pop %v1105
        %v1107 = vmul.f32 %v1104, 1.442695
        %v1108 = vpow.pop %v1107
        %v1109 = vsel %vm854, %v1106, 0.0
        %1110 = vadd.xlane.f32.xlu0 %v1109
        %v1111 = vpop.xlane.xlu0 %1110
        %v1112 = vsel %vm854, %v1108, 0.0
        %1113 = vadd.xlane.f32.xlu0 %v1112
        %v1114 = vpop.xlane.xlu0 %1113
        %v1115 = vrcp.pop %v1111
        %v1116 = vrcp.pop %v1114
        %v1117 = vmul.f32 %v1106, %v1115
        %v1118 = vmul.f32 %v1108, %v1116
        %v1119 = vpack.c.bf16 %v1118, %v1117
        %1120 = vrot.lane.b32.xlu0 %v796, 48
        %v1121 = vpop.permute.xlu0 %1120
        %v1124 = vsel %vm854, %v1119, 0
        %1126 = vmatprep.subr.bf16.mxu0 0
        %1127 = vmatpush1.bf16.msra.mxu0 %v1121
        %1128 = vmatprep.subr.bf16.mxu0 0
        %1129 = vmatpush1.bf16.msra.mxu0 0
        %1130 = vmatprep.subr.bf16.mxu0 0
        %1131 = vmatpush1.bf16.msra.mxu0 0
        %1132 = vmatprep.subr.bf16.mxu0 0
        %1133 = vmatpush1.bf16.msra.mxu0 0
        %1134 = vmatprep.subr.bf16.mxu0 0
        %1135 = vmatpush1.bf16.msra.mxu0 0
        %1136 = vmatprep.subr.bf16.mxu0 0
        %1137 = vmatpush1.bf16.msra.mxu0 0
        %1138 = vmatprep.subr.bf16.mxu0 0
        %1139 = vmatpush1.bf16.msra.mxu0 0
        %1140 = vmatprep.subr.bf16.mxu0 0
        %1141 = vmatpush1.bf16.msra.mxu0 0
        %1142 = vmatprep.subr.bf16.mxu0 0
        %1143 = vmatpush1.bf16.msra.mxu0 0
        %1144 = vmatprep.subr.bf16.mxu0 0
        %1145 = vmatpush1.bf16.msra.mxu0 0
        %1146 = vmatprep.subr.bf16.mxu0 0
        %1147 = vmatpush1.bf16.msra.mxu0 0
        %1148 = vmatprep.subr.bf16.mxu0 0
        %1149 = vmatpush1.bf16.msra.mxu0 0
        %1150 = vmatprep.subr.bf16.mxu0 0
        %1151 = vmatpush1.bf16.msra.mxu0 0
        %1152 = vmatprep.subr.bf16.mxu0 0
        %1153 = vmatpush1.bf16.msra.mxu0 0
        %1154 = vmatprep.subr.bf16.mxu0 0
        %1155 = vmatpush1.bf16.msra.mxu0 0
        %1156 = vmatprep.subr.bf16.mxu0 0
        %1157 = vmatpush1.bf16.msra.mxu0 0
        %1158 = vmatprep.mubr.bf16.mxu0 0
        %1159 = vmatmul.mubr.bf16.gmra.mrb[0].mxu0 %v1124
        %v1160 = vpop.f32.mrb[0].mxu0
        %v1161 = vadd.f32 0.0, %v1160
        %v1162 = vpop.f32.mrb[0].mxu0
        %v1163 = vpop.f32.mrb[0].mxu0
        %v1164 = vadd.f32 0.0, %v1163
        %v1165 = vpop.f32.mrb[0].mxu0
        %1166 = vdwg.mxu0
        %1167 = vrot.lane.b32.xlu0 %v796, 104
        %v1168 = vpop.permute.xlu0 %1167
        %1169 = vrot.lane.b32.xlu0 %v796, 72
        %v1170 = vpop.permute.xlu0 %1169
        %v1172 = vsel %vm806, %v1168, 0
        %v1175 = vsel %vm806, %v1170, 0
        %1177 = vmatprep.subr.bf16.mxu0 0
        %1178 = vmatpush1.bf16.xpose.msra.mxu0 %v1175
        %1179 = vmatprep.subr.bf16.mxu0 0
        %1180 = vmatpush1.bf16.xpose.msra.mxu0 0
        %1181 = vmatprep.subr.bf16.mxu0 0
        %1182 = vmatpush1.bf16.xpose.msra.mxu0 0
        %1183 = vmatprep.subr.bf16.mxu0 0
        %1184 = vmatpush1.bf16.xpose.msra.mxu0 0
        %1185 = vmatprep.subr.bf16.mxu0 0
        %1186 = vmatpush1.bf16.xpose.msra.mxu0 0
        %1187 = vmatprep.subr.bf16.mxu0 0
        %1188 = vmatpush1.bf16.xpose.msra.mxu0 0
        %1189 = vmatprep.subr.bf16.mxu0 0
        %1190 = vmatpush1.bf16.xpose.msra.mxu0 0
        %1191 = vmatprep.subr.bf16.mxu0 0
        %1192 = vmatpush1.bf16.xpose.msra.mxu0 0
        %1193 = vmatprep.subr.bf16.mxu0 0
        %1194 = vmatpush1.bf16.xpose.msra.mxu0 0
        %1195 = vmatprep.subr.bf16.mxu0 0
        %1196 = vmatpush1.bf16.xpose.msra.mxu0 0
        %1197 = vmatprep.subr.bf16.mxu0 0
        %1198 = vmatpush1.bf16.xpose.msra.mxu0 0
        %1199 = vmatprep.subr.bf16.mxu0 0
        %1200 = vmatpush1.bf16.xpose.msra.mxu0 0
        %1201 = vmatprep.subr.bf16.mxu0 0
        %1202 = vmatpush1.bf16.xpose.msra.mxu0 0
        %1203 = vmatprep.subr.bf16.mxu0 0
        %1204 = vmatpush1.bf16.xpose.msra.mxu0 0
        %1205 = vmatprep.subr.bf16.mxu0 0
        %1206 = vmatpush1.bf16.xpose.msra.mxu0 0
        %1207 = vmatprep.subr.bf16.mxu0 0
        %1208 = vmatpush1.bf16.xpose.msra.mxu0 0
        %1209 = vmatprep.mubr.bf16.mxu0 0
        %1210 = vmatmul.mubr.bf16.gmra.mrb[0].mxu0 %v1172
        %v1211 = vpop.f32.mrb[0].mxu0
        %v1212 = vadd.f32 %v801, %v1211
        %v1213 = vpop.f32.mrb[0].mxu0
        %v1214 = vpop.f32.mrb[0].mxu0
        %v1215 = vadd.f32 %v801, %v1214
        %v1216 = vpop.f32.mrb[0].mxu0
        %1217 = vdwg.mxu0
        %v1218 = vsel %vm854, %v1212, -inf
        %1219 = vmax.xlane.f32.xlu0 %v1218
        %v1220 = vpop.xlane.xlu0 %1219
        %v1221 = vsel %vm854, %v1215, -inf
        %1222 = vmax.xlane.f32.xlu0 %v1221
        %v1223 = vpop.xlane.xlu0 %1222
        %v1224 = vsub.f32 %v1212, %v1220
        %v1225 = vsub.f32 %v1215, %v1223
        %v1226 = vmul.f32 %v1224, 1.442695
        %v1227 = vpow.pop %v1226
        %v1228 = vmul.f32 %v1225, 1.442695
        %v1229 = vpow.pop %v1228
        %v1230 = vsel %vm854, %v1227, 0.0
        %1231 = vadd.xlane.f32.xlu0 %v1230
        %v1232 = vpop.xlane.xlu0 %1231
        %v1233 = vsel %vm854, %v1229, 0.0
        %1234 = vadd.xlane.f32.xlu0 %v1233
        %v1235 = vpop.xlane.xlu0 %1234
        %v1236 = vrcp.pop %v1232
        %v1237 = vrcp.pop %v1235
        %v1238 = vmul.f32 %v1227, %v1236
        %v1239 = vmul.f32 %v1229, %v1237
        %v1240 = vpack.c.bf16 %v1239, %v1238
        %1241 = vrot.lane.b32.xlu0 %v796, 40
        %v1242 = vpop.permute.xlu0 %1241
        %v1245 = vsel %vm854, %v1240, 0
        %1247 = vmatprep.subr.bf16.mxu0 0
        %1248 = vmatpush1.bf16.msra.mxu0 %v1242
        %1249 = vmatprep.subr.bf16.mxu0 0
        %1250 = vmatpush1.bf16.msra.mxu0 0
        %1251 = vmatprep.subr.bf16.mxu0 0
        %1252 = vmatpush1.bf16.msra.mxu0 0
        %1253 = vmatprep.subr.bf16.mxu0 0
        %1254 = vmatpush1.bf16.msra.mxu0 0
        %1255 = vmatprep.subr.bf16.mxu0 0
        %1256 = vmatpush1.bf16.msra.mxu0 0
        %1257 = vmatprep.subr.bf16.mxu0 0
        %1258 = vmatpush1.bf16.msra.mxu0 0
        %1259 = vmatprep.subr.bf16.mxu0 0
        %1260 = vmatpush1.bf16.msra.mxu0 0
        %1261 = vmatprep.subr.bf16.mxu0 0
        %1262 = vmatpush1.bf16.msra.mxu0 0
        %1263 = vmatprep.subr.bf16.mxu0 0
        %1264 = vmatpush1.bf16.msra.mxu0 0
        %1265 = vmatprep.subr.bf16.mxu0 0
        %1266 = vmatpush1.bf16.msra.mxu0 0
        %1267 = vmatprep.subr.bf16.mxu0 0
        %1268 = vmatpush1.bf16.msra.mxu0 0
        %1269 = vmatprep.subr.bf16.mxu0 0
        %1270 = vmatpush1.bf16.msra.mxu0 0
        %1271 = vmatprep.subr.bf16.mxu0 0
        %1272 = vmatpush1.bf16.msra.mxu0 0
        %1273 = vmatprep.subr.bf16.mxu0 0
        %1274 = vmatpush1.bf16.msra.mxu0 0
        %1275 = vmatprep.subr.bf16.mxu0 0
        %1276 = vmatpush1.bf16.msra.mxu0 0
        %1277 = vmatprep.subr.bf16.mxu0 0
        %1278 = vmatpush1.bf16.msra.mxu0 0
        %1279 = vmatprep.mubr.bf16.mxu0 0
        %1280 = vmatmul.mubr.bf16.gmra.mrb[0].mxu0 %v1245
        %v1281 = vpop.f32.mrb[0].mxu0
        %v1282 = vadd.f32 0.0, %v1281
        %v1283 = vpop.f32.mrb[0].mxu0
        %v1284 = vpop.f32.mrb[0].mxu0
        %v1285 = vadd.f32 0.0, %v1284
        %v1286 = vpop.f32.mrb[0].mxu0
        %1287 = vdwg.mxu0
        %1290 = vrot.lane.b32.xlu0 %v1040, 8
        %v1291 = vpop.permute.xlu0 %1290
        %1292 = vrot.lane.b32.xlu0 %v1043, 8
        %v1293 = vpop.permute.xlu0 %1292
        %1298 = vrot.lane.b32.xlu0 %v1161, 16
        %v1299 = vpop.permute.xlu0 %1298
        %1300 = vrot.lane.b32.xlu0 %v1164, 16
        %v1301 = vpop.permute.xlu0 %1300
        %1306 = vrot.lane.b32.xlu0 %v1282, 24
        %v1307 = vpop.permute.xlu0 %1306
        %1308 = vrot.lane.b32.xlu0 %v1285, 24
        %v1309 = vpop.permute.xlu0 %1308
        %v1312 = vsel %vm806, %v919, %v1291
        %v1313 = vsel %vm806, %v922, %v1293
        %v1314 = vsel %vm854, %v1312, %v1299
        %v1315 = vsel %vm854, %v1313, %v1301
        %vm1316 = vcmask 195584
        %v1317 = vsel %vm1316, %v1314, %v1307
        %v1318 = vsel %vm1316, %v1315, %v1309
        %v1319 = vpack.c.bf16 %v1318, %v1317
        %v1320 = vld [vmem:[#allocation13] sm:$0xf]
        %v1321 = vld [vmem:[#allocation13 + $0x4] sm:$0xf]
        %v1322 = vld [vmem:[#allocation13 + $0x8] sm:$0xf]
        %v1323 = vld [vmem:[#allocation13 + $0xc] sm:$0xf]
        %v1328 = vunpack.c.l.b16 %v1320
        %v1329 = vunpack.c.l.b16 %v1321
        %v1330 = vunpack.c.l.b16 %v1322
        %v1331 = vunpack.c.l.b16 %v1323
        %v1332 = vpack.c.b16 %v1329, %v1328
        %v1333 = vpack.c.b16 %v1331, %v1330
        %v1337 = vsel %vm682, %v1319, 0
        %1339 = vmatprep.subr.bf16.mxu0 0
        %1340 = vmatpush1.bf16.msra.mxu0 %v1332
        %1341 = vmatprep.subr.bf16.mxu0 0
        %1342 = vmatpush1.bf16.msra.mxu0 %v1333
        %1343 = vmatprep.subr.bf16.mxu0 0
        %1344 = vmatpush1.bf16.msra.mxu0 0
        %1345 = vmatprep.subr.bf16.mxu0 0
        %1346 = vmatpush1.bf16.msra.mxu0 0
        %1347 = vmatprep.subr.bf16.mxu0 0
        %1348 = vmatpush1.bf16.msra.mxu0 0
        %1349 = vmatprep.subr.bf16.mxu0 0
        %1350 = vmatpush1.bf16.msra.mxu0 0
        %1351 = vmatprep.subr.bf16.mxu0 0
        %1352 = vmatpush1.bf16.msra.mxu0 0
        %1353 = vmatprep.subr.bf16.mxu0 0
        %1354 = vmatpush1.bf16.msra.mxu0 0
        %1355 = vmatprep.subr.bf16.mxu0 0
        %1356 = vmatpush1.bf16.msra.mxu0 0
        %1357 = vmatprep.subr.bf16.mxu0 0
        %1358 = vmatpush1.bf16.msra.mxu0 0
        %1359 = vmatprep.subr.bf16.mxu0 0
        %1360 = vmatpush1.bf16.msra.mxu0 0
        %1361 = vmatprep.subr.bf16.mxu0 0
        %1362 = vmatpush1.bf16.msra.mxu0 0
        %1363 = vmatprep.subr.bf16.mxu0 0
        %1364 = vmatpush1.bf16.msra.mxu0 0
        %1365 = vmatprep.subr.bf16.mxu0 0
        %1366 = vmatpush1.bf16.msra.mxu0 0
        %1367 = vmatprep.subr.bf16.mxu0 0
        %1368 = vmatpush1.bf16.msra.mxu0 0
        %1369 = vmatprep.subr.bf16.mxu0 0
        %1370 = vmatpush1.bf16.msra.mxu0 0
        %1371 = vmatprep.mubr.bf16.mxu0 0
        %1372 = vmatmul.mubr.bf16.gmra.mrb[0].mxu0 %v1337
        %v1373 = vpop.f32.mrb[0].mxu0
        %v1374 = vadd.f32 0.0, %v1373
        %v1375 = vpop.f32.mrb[0].mxu0
        %v1376 = vpop.f32.mrb[0].mxu0
        %v1377 = vadd.f32 0.0, %v1376
        %v1378 = vpop.f32.mrb[0].mxu0
        %1379 = vdwg.mxu0
        %v1380 = vadd.f32 %v679, %v1374
        %v1381 = vadd.f32 %v680, %v1377
        %v1382 = vld [vmem:[#allocation14] sm:$0x1]
        %v1384 = vlaneseq
        %v1385 = vshrl.u32 %v1384, 7
        %v1386 = vsub.s32 0, %v1385
        %v1387 = vrot.slane %v1382, %v1386
        %v1389 = vadd.f32 %v1380, %v1387
        %v1390 = vadd.f32 %v1381, %v1387
        %v1391 = vsel %vm682, %v1389, 0.0
        %1392 = vadd.xlane.f32.xlu0 %v1391
        %v1393 = vpop.xlane.xlu0 %1392
        %v1394 = vsel %vm682, %v1390, 0.0
        %1395 = vadd.xlane.f32.xlu0 %v1394
        %v1396 = vpop.xlane.xlu0 %1395
        %v1397 = vmul.f32 %v1393, %v689
        %v1398 = vmul.f32 %v1396, %v689
        %v1399 = vsub.f32 %v1389, %v1397
        %v1400 = vsub.f32 %v1390, %v1398
        %v1401 = vmul.f32 %v1399, %v1399
        %v1402 = vmul.f32 %v1400, %v1400
        %v1403 = vsel %vm682, %v1401, 0.0
        %1404 = vadd.xlane.f32.xlu0 %v1403
        %v1405 = vpop.xlane.xlu0 %1404
        %v1406 = vsel %vm682, %v1402, 0.0
        %1407 = vadd.xlane.f32.xlu0 %v1406
        %v1408 = vpop.xlane.xlu0 %1407
        %v1409 = vmul.f32 %v1405, %v689
        %v1410 = vmul.f32 %v1408, %v689
        %v1411 = vadd.f32 %v1409, 1e-12
        %v1412 = vadd.f32 %v1410, 1e-12
        %v1413 = vrsqrt.pop %v1411
        %v1414 = vrsqrt.pop %v1412
        %v1415 = vmul.f32 %v1399, %v1413
        %v1416 = vmul.f32 %v1400, %v1414
        %v1417 = vld [vmem:[#allocation16] sm:$0x1]
        %v1419 = vlaneseq
        %v1420 = vshrl.u32 %v1419, 7
        %v1421 = vsub.s32 0, %v1420
        %v1422 = vrot.slane %v1417, %v1421
        %v1424 = vmul.f32 %v1415, %v1422
        %v1425 = vmul.f32 %v1416, %v1422
        %v1426 = vld [vmem:[#allocation17] sm:$0x1]
        %v1428 = vlaneseq
        %v1429 = vshrl.u32 %v1428, 7
        %v1430 = vsub.s32 0, %v1429
        %v1431 = vrot.slane %v1426, %v1430
        %v1433 = vadd.f32 %v1424, %v1431
        %v1434 = vadd.f32 %v1425, %v1431
        %v1435 = vpack.c.bf16 %v1434, %v1433
        %v1436 = vld [vmem:[#allocation19] sm:$0xf]
        %v1437 = vld [vmem:[#allocation19 + $0x4] sm:$0xf]
        %v1438 = vld [vmem:[#allocation19 + $0x8] sm:$0xf]
        %v1439 = vld [vmem:[#allocation19 + $0xc] sm:$0xf]
        %v1440 = vld [vmem:[#allocation20] sm:$0x1]
        %v1442 = vlaneseq
        %v1443 = vshrl.u32 %v1442, 7
        %v1444 = vsub.s32 0, %v1443
        %v1445 = vrot.slane %v1440, %v1444
        %v1451 = vunpack.c.l.b16 %v1436
        %v1452 = vunpack.c.l.b16 %v1437
        %v1453 = vunpack.c.l.b16 %v1438
        %v1454 = vunpack.c.l.b16 %v1439
        %v1455 = vpack.c.b16 %v1452, %v1451
        %v1456 = vpack.c.b16 %v1454, %v1453
        %v1460 = vsel %vm682, %v1435, 0
        %1462 = vmatprep.subr.bf16.mxu0 0
        %1463 = vmatpush1.bf16.msra.mxu0 %v1455
        %1464 = vmatprep.subr.bf16.mxu0 0
        %1465 = vmatpush1.bf16.msra.mxu0 %v1456
        %1466 = vmatprep.subr.bf16.mxu0 0
        %1467 = vmatpush1.bf16.msra.mxu0 0
        %1468 = vmatprep.subr.bf16.mxu0 0
        %1469 = vmatpush1.bf16.msra.mxu0 0
        %1470 = vmatprep.subr.bf16.mxu0 0
        %1471 = vmatpush1.bf16.msra.mxu0 0
        %1472 = vmatprep.subr.bf16.mxu0 0
        %1473 = vmatpush1.bf16.msra.mxu0 0
        %1474 = vmatprep.subr.bf16.mxu0 0
        %1475 = vmatpush1.bf16.msra.mxu0 0
        %1476 = vmatprep.subr.bf16.mxu0 0
        %1477 = vmatpush1.bf16.msra.mxu0 0
        %1478 = vmatprep.subr.bf16.mxu0 0
        %1479 = vmatpush1.bf16.msra.mxu0 0
        %1480 = vmatprep.subr.bf16.mxu0 0
        %1481 = vmatpush1.bf16.msra.mxu0 0
        %1482 = vmatprep.subr.bf16.mxu0 0
        %1483 = vmatpush1.bf16.msra.mxu0 0
        %1484 = vmatprep.subr.bf16.mxu0 0
        %1485 = vmatpush1.bf16.msra.mxu0 0
        %1486 = vmatprep.subr.bf16.mxu0 0
        %1487 = vmatpush1.bf16.msra.mxu0 0
        %1488 = vmatprep.subr.bf16.mxu0 0
        %1489 = vmatpush1.bf16.msra.mxu0 0
        %1490 = vmatprep.subr.bf16.mxu0 0
        %1491 = vmatpush1.bf16.msra.mxu0 0
        %1492 = vmatprep.subr.bf16.mxu0 0
        %1493 = vmatpush1.bf16.msra.mxu0 0
        %1494 = vmatprep.mubr.bf16.mxu0 0
        %1495 = vmatmul.mubr.bf16.gmra.mrb[0].mxu0 %v1460
        %v1496 = vpop.f32.mrb[0].mxu0
        %v1497 = vadd.f32 %v1445, %v1496
        %v1498 = vpop.f32.mrb[0].mxu0
        %v1499 = vpop.f32.mrb[0].mxu0
        %v1500 = vadd.f32 %v1445, %v1499
        %v1501 = vpop.f32.mrb[0].mxu0
        %1502 = vdwg.mxu0
        %v1503 = vmul.f32 %v1497, 0.5
        %v1504 = vmul.f32 %v1500, 0.5
        %v1505 = vmul.f32 %v1497, 0.044715
        %v1506 = vmul.f32 %v1500, 0.044715
        %v1507 = vmul.f32 %v1505, %v1497
        %v1508 = vmul.f32 %v1506, %v1500
        %v1509 = vmul.f32 %v1507, %v1497
        %v1510 = vmul.f32 %v1508, %v1500
        %v1511 = vadd.f32 %v1497, %v1509
        %v1512 = vadd.f32 %v1500, %v1510
        %v1513 = vmul.f32 %v1511, 0.7978846
        %v1514 = vmul.f32 %v1512, 0.7978846
        %v1515 = vtanh.pop %v1513
        %v1516 = vtanh.pop %v1514
        %v1517 = vadd.f32 %v1515, 1.0
        %v1518 = vadd.f32 %v1516, 1.0
        %v1519 = vmul.f32 %v1503, %v1517
        %v1520 = vmul.f32 %v1504, %v1518
        %v1521 = vpack.c.bf16 %v1520, %v1519
        %v1522 = vld [vmem:[#allocation22] sm:$0xf]
        %v1523 = vld [vmem:[#allocation22 + $0x4] sm:$0xf]
        %v1524 = vld [vmem:[#allocation22 + $0x8] sm:$0xf]
        %v1525 = vld [vmem:[#allocation22 + $0xc] sm:$0xf]
        %v1526 = vld [vmem:[#allocation22 + $0x10] sm:$0xf]
        %v1527 = vld [vmem:[#allocation22 + $0x14] sm:$0xf]
        %v1528 = vld [vmem:[#allocation22 + $0x18] sm:$0xf]
        %v1529 = vld [vmem:[#allocation22 + $0x1c] sm:$0xf]
        %v1530 = vld [vmem:[#allocation22 + $0x20] sm:$0xf]
        %v1531 = vld [vmem:[#allocation22 + $0x24] sm:$0xf]
        %v1532 = vld [vmem:[#allocation22 + $0x28] sm:$0xf]
        %v1533 = vld [vmem:[#allocation22 + $0x2c] sm:$0xf]
        %v1534 = vld [vmem:[#allocation22 + $0x30] sm:$0xf]
        %v1535 = vld [vmem:[#allocation22 + $0x34] sm:$0xf]
        %v1536 = vld [vmem:[#allocation22 + $0x38] sm:$0xf]
        %v1537 = vld [vmem:[#allocation22 + $0x3c] sm:$0xf]
        %v1554 = vunpack.c.l.b16 %v1522
        %v1555 = vunpack.c.l.b16 %v1523
        %v1556 = vunpack.c.l.b16 %v1524
        %v1557 = vunpack.c.l.b16 %v1525
        %v1558 = vunpack.c.l.b16 %v1526
        %v1559 = vunpack.c.l.b16 %v1527
        %v1560 = vunpack.c.l.b16 %v1528
        %v1561 = vunpack.c.l.b16 %v1529
        %v1562 = vunpack.c.l.b16 %v1530
        %v1563 = vunpack.c.l.b16 %v1531
        %v1564 = vunpack.c.l.b16 %v1532
        %v1565 = vunpack.c.l.b16 %v1533
        %v1566 = vunpack.c.l.b16 %v1534
        %v1567 = vunpack.c.l.b16 %v1535
        %v1568 = vunpack.c.l.b16 %v1536
        %v1569 = vunpack.c.l.b16 %v1537
        %v1570 = vpack.c.b16 %v1555, %v1554
        %v1571 = vpack.c.b16 %v1557, %v1556
        %v1572 = vpack.c.b16 %v1559, %v1558
        %v1573 = vpack.c.b16 %v1561, %v1560
        %v1574 = vpack.c.b16 %v1563, %v1562
        %v1575 = vpack.c.b16 %v1565, %v1564
        %v1576 = vpack.c.b16 %v1567, %v1566
        %v1577 = vpack.c.b16 %v1569, %v1568
        %1586 = vmatprep.subr.bf16.mxu0 0
        %1587 = vmatpush1.bf16.msra.mxu0 %v1570
        %1588 = vmatprep.subr.bf16.mxu0 0
        %1589 = vmatpush1.bf16.msra.mxu0 %v1571
        %1590 = vmatprep.subr.bf16.mxu0 0
        %1591 = vmatpush1.bf16.msra.mxu0 %v1572
        %1592 = vmatprep.subr.bf16.mxu0 0
        %1593 = vmatpush1.bf16.msra.mxu0 %v1573
        %1594 = vmatprep.subr.bf16.mxu0 0
        %1595 = vmatpush1.bf16.msra.mxu0 %v1574
        %1596 = vmatprep.subr.bf16.mxu0 0
        %1597 = vmatpush1.bf16.msra.mxu0 %v1575
        %1598 = vmatprep.subr.bf16.mxu0 0
        %1599 = vmatpush1.bf16.msra.mxu0 %v1576
        %1600 = vmatprep.subr.bf16.mxu0 0
        %1601 = vmatpush1.bf16.msra.mxu0 %v1577
        %1602 = vmatprep.subr.bf16.mxu0 0
        %1603 = vmatpush1.bf16.msra.mxu0 0
        %1604 = vmatprep.subr.bf16.mxu0 0
        %1605 = vmatpush1.bf16.msra.mxu0 0
        %1606 = vmatprep.subr.bf16.mxu0 0
        %1607 = vmatpush1.bf16.msra.mxu0 0
        %1608 = vmatprep.subr.bf16.mxu0 0
        %1609 = vmatpush1.bf16.msra.mxu0 0
        %1610 = vmatprep.subr.bf16.mxu0 0
        %1611 = vmatpush1.bf16.msra.mxu0 0
        %1612 = vmatprep.subr.bf16.mxu0 0
        %1613 = vmatpush1.bf16.msra.mxu0 0
        %1614 = vmatprep.subr.bf16.mxu0 0
        %1615 = vmatpush1.bf16.msra.mxu0 0
        %1616 = vmatprep.subr.bf16.mxu0 0
        %1617 = vmatpush1.bf16.msra.mxu0 0
        %1618 = vmatprep.mubr.bf16.mxu0 0
        %1619 = vmatmul.mubr.bf16.gmra.mrb[0].mxu0 %v1521
        %v1620 = vpop.f32.mrb[0].mxu0
        %v1621 = vadd.f32 0.0, %v1620
        %v1622 = vpop.f32.mrb[0].mxu0
        %v1623 = vpop.f32.mrb[0].mxu0
        %v1624 = vadd.f32 0.0, %v1623
        %v1625 = vpop.f32.mrb[0].mxu0
        %1626 = vdwg.mxu0
        %v1627 = vadd.f32 %v1389, %v1621
        %v1628 = vadd.f32 %v1390, %v1624
        %v1629 = vld [vmem:[#allocation23] sm:$0x1]
        %v1631 = vlaneseq
        %v1632 = vshrl.u32 %v1631, 7
        %v1633 = vsub.s32 0, %v1632
        %v1634 = vrot.slane %v1629, %v1633
        %v1636 = vadd.f32 %v1627, %v1634
        %v1637 = vadd.f32 %v1628, %v1634
        %1638 = vst.msk [vmem:[%s677] sm:$0xff] %vm682, %v1636
        %1639 = vst.msk [vmem:[%s677 + $0x8] sm:$0xff] %vm682, %v1637
        %s1640 = sand.u32 %s352, 1
        %s1641 = scalar_lea.sflag [#allocation4], %s1640
        %s1642 = sand.u32 %s352, 1
        %s1643 = smul.addr %s1642, 16
        %s1644 = scalar_lea.vmem [#allocation25], %s1643
        // Predicated region
        $region133: #{vilt_forward.7} parent=75 // pred_check
          %p1645 = pneg %p362
        $region134: #{vilt_forward.7} parent=75 // pred_check_branch
          %1647 = sbr.rel (%p1645) target = $region136
        $region135: #{vilt_forward.7} parent=75 // pred_region
          %s1649 = ssub.s32 256, 256
          %1650 = vsyncadd %s1641, %s1649
          %s1651 = smul.addr %s40, 2
          %s1652 = smul.addr %s1651, 128
          %s1653 = scalar_lea.hbm %s14, %s1652
          %s1654 = sshll.u32 %s1644, 4
          %s1655 = int_to_ptr.vmem [resolvable:$true] %s1654
          %1660 = dma.vmem_to_hbm [thread:$0]  %s1655, 256, %s1653, %s1641, 128, 128, 8
        $region136: #{vilt_forward.7} parent=75 // pred_fallthru
          _
      $region76: #{vilt_forward.7} parent=5 // pred_fallthru
        _
      %p1661 = scmp.le.s32.totalorder 2, %s35
      // Predicated region
      $region137: #{vilt_forward.7} parent=5 // pred_check
        %p1662 = pneg %p1661
      $region138: #{vilt_forward.7} parent=5 // pred_check_branch
        %1664 = sbr.rel (%p1662) target = $region140
      $region139: #{vilt_forward.7} parent=5 // pred_region
        %s1665 = ssub.s32 %s35, 2
        // Predicated region
        $region141: #{vilt_forward.7} parent=139 // pred_check
          %p1666 = pneg %p368
        $region142: #{vilt_forward.7} parent=139 // pred_check_branch
          %1668 = sbr.rel (%p1666) target = $region144
        $region143: #{vilt_forward.7} parent=139 // pred_region
          %s1669 = sand.u32 %s353, 1
          %s1670 = scalar_lea.sflag [#allocation4], %s1669
          %s1671 = sand.u32 %s353, 1
          %s1672 = smul.addr %s1671, 16
          %s1673 = scalar_lea.vmem [#allocation25], %s1672
          %1674 = dma.done %s1670, 256
        $region144: #{vilt_forward.7} parent=139 // pred_fallthru
          _
      $region140: #{vilt_forward.7} parent=5 // pred_fallthru
        _
    $region6: #{vilt_forward.7} parent=1 // loop_footer
      %s39 = sadd.s32 1, %s35
    $region7: #{vilt_forward.7} parent=1 // loop_footer_branch
      %34 = sbr.rel target = $region3
    $region8: #{vilt_forward.7} parent=1 // loop_exit
      _
    %1675 = vsyncpa [#allocation3], 1
    %s1676 = scalar_lea.sflag [#allocation3], 1
    %1677 = vsyncpa %s1676, 1
    %1678 = vsyncpa [#allocation6], 1
    %s1679 = scalar_lea.sflag [#allocation6], 1
    %1680 = vsyncpa %s1679, 1
    %1681 = vsyncpa [#allocation9], 1
    %1682 = vsyncpa [#allocation12], 1
    %1683 = vsyncpa [#allocation15], 1
    %1684 = vsyncpa [#allocation18], 1
    %1685 = vsyncpa [#allocation21], 1
    %1686 = vsyncpa [#allocation24], 1
    %1687 = vsyncpa [#allocation4], 1
    %s1688 = scalar_lea.sflag [#allocation4], 1
    %1689 = vsyncpa %s1688, 1

</llo_original>
